<compile_context>
chip_gen: v7x
topology: tpu7x:2x2x1
jax: 0.10.0
libtpu: 0.0.40
codegen_flags: <defaults>
</compile_context>

<pallas_src>
import jax
import jax.numpy as jnp
from jax import lax
from jax.experimental import pallas as pl
from jax.experimental.pallas import tpu as pltpu


# Scoped-VMEM budget we compile against.  32 MiB is the v7x scoped default and
# is safe on v5e/v6e (128 MiB physical) too; kept explicit so the batch_block
# guard below is meaningful on every generation.
VMEM_LIMIT_BYTES = 32 * 1024 * 1024


def _vmem_bytes_per_step(Bblk, H, W, C, F, K, P):
    """Rough per-grid-step VMEM footprint (double-buffered blocks + f32 temps)."""
    HW = H * W
    M = Bblk * HW
    Hp, Wp = H + 2 * P, W + 2 * P
    comb = 2 * Bblk * Hp * Wp * C * 2          # padded input block, bf16, x2 buffers
    wgt = 2 * K * K * C * 4 * F * 2            # weight, bf16 (Pallas double-buffers)
    cxb = 2 * M * F * 4                        # cx, f32
    outb = 2 * 2 * M * F * 4                   # hy + cy outputs, f32
    tmps = 3 * M * 4 * F * 4                   # gates / sigmoid / misc f32 temps
    return comb + wgt + cxb + outb + tmps


def make_convlstm_kernel(H, W, C, F, K, M_blk):
    """Kernel body for fixed spatial size / channel counts."""

    def kernel(comb_ref, w_ref, cx_ref, hy_ref, cy_ref):
        # comb_ref: (Bblk, H+2P, W+2P, C) bf16  padded concat([x, h]) block
        # w_ref   : (K*K, C, 4F)          bf16  conv weight, one slice per tap
        # cx_ref  : (M, F)                f32   previous cell state
        # hy_ref  : (M, F)                x.dtype
        # cy_ref  : (M, F)                f32
        gates = None
        tap_idx = 0
        for kh in range(K):
            for kw in range(K):
                # In-kernel im2col: static slice of the padded VMEM block
                # (leading-dim select on kh, sublane window on kw) and a
                # layout-preserving collapse to (M, C).  No HBM duplication.
                tap = comb_ref[:, kh:kh + H, kw:kw + W, :].reshape(M_blk, C)
                part = jnp.dot(tap, w_ref[tap_idx],
                               preferred_element_type=jnp.float32)  # MXU, f32 acc
                gates = part if gates is None else gates + part
                tap_idx += 1

        # One full-width (128-lane) sigmoid; the 32-lane per-gate slices are
        # VPU/EUP filler under the DMA (review item 8: don't micro-opt these).
        sig = jax.nn.sigmoid(gates)
        ingate = sig[:, 0 * F:1 * F]
        forgetgate = sig[:, 1 * F:2 * F]
        cellgate = gates[:, 2 * F:3 * F]   # raw: the torch module applies NO tanh here
        outgate = sig[:, 3 * F:4 * F]

        cy = forgetgate * cx_ref[...] + ingate * cellgate
        hy = outgate * jnp.tanh(cy)

        # Direct stores: no in-kernel concat, no wrapper split/.astype passes.
        hy_ref[...] = hy.astype(hy_ref.dtype)
        cy_ref[...] = cy                                  # keep recurrent state f32

    return kernel


def convlstm_cell(x, hx, cx, weight, *, kernel_size=3, padding=1, batch_block=1):
    """ConvLSTMCell forward.

    x      : (B, H, W, Cin)        NHWC
    hx, cx : (B, H, W, F)          NHWC
    weight : (K, K, Cin + F, 4F)   HWIO (torch Conv2d weight, bias=False)
    returns (hy, cy); hy in x.dtype, cy in float32 (recurrent state kept f32).
    """
    B, H, W, Cin = x.shape
    F = hx.shape[-1]
    K = kernel_size
    P = padding
    C = Cin + F
    HW = H * W
    Hp, Wp = H + 2 * P, W + 2 * P

    if B % batch_block != 0:
        raise ValueError("batch_block must divide batch")
    Bblk = batch_block
    M_blk = Bblk * HW

    est = _vmem_bytes_per_step(Bblk, H, W, C, F, K, P)
    if 2 * est > VMEM_LIMIT_BYTES:                      # 2x headroom (v7x guidance)
        raise ValueError(
            f"batch_block={Bblk}: ~{est / 2**20:.1f} MiB VMEM per step; with 2x "
            f"headroom this exceeds {VMEM_LIMIT_BYTES // 2**20} MiB -- reduce "
            f"batch_block.")

    # ---- wrapper-side prep (cheap, O(raw activation bytes)) -----------------
    # bf16 immediately after the concat so every wrapper slab is half width.
    combined = jnp.concatenate([x, hx], axis=-1).astype(jnp.bfloat16)   # (B,H,W,C)
    comb_pad = jnp.pad(combined, ((0, 0), (P, P), (P, P), (0, 0)))      # (B,Hp,Wp,C)

    # Weight as (K*K, C, 4F): tap t = kh*K + kw is a cheap leading-dim index in
    # the kernel, matching the kernel's (kh, kw) loop order.
    w3 = weight.reshape(K * K, C, 4 * F).astype(jnp.bfloat16)

    cx2 = cx.reshape(B * HW, F).astype(jnp.float32)      # free row-major reshape

    kernel = make_convlstm_kernel(H, W, C, F, K, M_blk)

    # Advisory cost estimate so XLA schedules the wrapper ops around the call.
    flops = 2 * B * HW * (K * K * C) * (4 * F) + 10 * B * HW * F
    transcendentals = B * HW * 5 * F                     # sigmoid(4F) + tanh(F)
    bytes_accessed = int(comb_pad.size * 2 + w3.size * 2 + cx2.size * 4
                         + 2 * B * HW * F * 4)
    cost = pl.CostEstimate(flops=flops, transcendentals=transcendentals,
                           bytes_accessed=bytes_accessed)

    hy_flat, cy_flat = pl.pallas_call(
        kernel,
        out_shape=(jax.ShapeDtypeStruct((B * HW, F), x.dtype),      # hy
                   jax.ShapeDtypeStruct((B * HW, F), jnp.float32)),  # cy
        grid_spec=pltpu.PrefetchScalarGridSpec(
            num_scalar_prefetch=0,
            grid=(B // Bblk,),
            in_specs=[
                # Padded activations: raw bytes only (no 9x im2col duplication).
                pl.BlockSpec((Bblk, Hp, Wp, C), lambda i: (i, 0, 0, 0)),
                # Weight: constant block index -> resident in VMEM across steps.
                # (pipeline_mode=pl.Buffered(1) would drop its redundant second
                #  buffer; left at default since 2 x ~83 KiB is well in budget.)
                pl.BlockSpec((K * K, C, 4 * F), lambda i: (0, 0, 0)),
                pl.BlockSpec((M_blk, F), lambda i: (i, 0)),
            ],
            out_specs=[
                # At F=32 these are 32-lane (masked) stores; they become
                # lane-dense automatically once production F >= 128.
                pl.BlockSpec((M_blk, F), lambda i: (i, 0)),
                pl.BlockSpec((M_blk, F), lambda i: (i, 0)),
            ],
        ),
        compiler_params=pltpu.CompilerParams(
            dimension_semantics=("parallel",),   # megacore / v7x 2-TC sharding
            vmem_limit_bytes=VMEM_LIMIT_BYTES,
        ),
        cost_estimate=cost,
    )(comb_pad, w3, cx2)

    # Row-major (B*HW, F) -> (B, H, W, F) reshapes are free (no extra HBM pass).
    hy = hy_flat.reshape(B, H, W, F)
    cy = cy_flat.reshape(B, H, W, F)
    return hy, cy


def convlstm_cell_ref(x, hx, cx, weight):
    """Pure-JAX reference (lax conv), same bf16 operands / f32 accumulation as
    the kernel so the comparison is apples-to-apples."""
    combined = jnp.concatenate([x, hx], axis=-1).astype(jnp.bfloat16)
    gates = lax.conv_general_dilated(
        combined, weight.astype(jnp.bfloat16),
        window_strides=(1, 1), padding="SAME",
        dimension_numbers=("NHWC", "HWIO", "NHWC"),
        preferred_element_type=jnp.float32)
    F = hx.shape[-1]
    ingate = jax.nn.sigmoid(gates[..., 0 * F:1 * F])
    forgetgate = jax.nn.sigmoid(gates[..., 1 * F:2 * F])
    cellgate = gates[..., 2 * F:3 * F]          # no tanh, as in the torch module
    outgate = jax.nn.sigmoid(gates[..., 3 * F:4 * F])
    cy = forgetgate * cx.astype(jnp.float32) + ingate * cellgate
    hy = outgate * jnp.tanh(cy)
    return hy.astype(x.dtype), cy


if __name__ == "__main__":
    # Small deterministic setup: batch=2, in_channels=4, H=W=16, num_features=32.
    B, H, W = 2, 16, 16
    IN_CHANNELS = 4
    NUM_FEATURES = 32
    K = 3

    key = jax.random.PRNGKey(0)
    k_x, k_h, k_c, k_w = jax.random.split(key, 4)

    x = jax.random.normal(k_x, (B, H, W, IN_CHANNELS), jnp.float32)
    hx = jax.random.normal(k_h, (B, H, W, NUM_FEATURES), jnp.float32)
    cx = jax.random.normal(k_c, (B, H, W, NUM_FEATURES), jnp.float32)

    # Conv2d weight, bias=False: torch shape (4F, Cin+F, K, K) -> HWIO here.
    fan_in = (IN_CHANNELS + NUM_FEATURES) * K * K
    bound = 1.0 / (fan_in ** 0.5)
    weight = jax.random.uniform(
        k_w, (K, K, IN_CHANNELS + NUM_FEATURES, 4 * NUM_FEATURES),
        jnp.float32, minval=-bound, maxval=bound)

    # batch_block=1 keeps an even, "parallel" batch grid (both v7x TensorCores
    # get work); v5e/v6e can raise it to fold more batches per grid step, gated
    # by the VMEM-per-step guard above.
    hy, cy = convlstm_cell(x, hx, cx, weight, kernel_size=K, padding=1,
                           batch_block=1)
    jax.block_until_ready((hy, cy))

    hy_ref, cy_ref = convlstm_cell_ref(x, hx, cx, weight)
    assert jnp.allclose(hy, hy_ref, atol=1e-3, rtol=1e-3), "hy mismatch"
    assert jnp.allclose(cy, cy_ref, atol=1e-3, rtol=1e-3), "cy mismatch"

    print("KERNEL_OK")
</pallas_src>

<mosaic_0001>
module attributes {stable_mosaic.version = 11 : i64} {
  func.func @kernel(%arg0: i32, %arg1: memref<1x18x18x36xbf16, #tpu.memory_space<vmem>>, %arg2: memref<9x36x128xbf16, #tpu.memory_space<vmem>>, %arg3: memref<256x32xf32, #tpu.memory_space<vmem>>, %arg4: memref<256x32xf32, #tpu.memory_space<vmem>>, %arg5: memref<256x32xf32, #tpu.memory_space<vmem>>) attributes {dimension_semantics = [#tpu.dimension_semantics<parallel>], iteration_bounds = array<i64: 2>, scalar_prefetch = 0 : i64, scratch_operands = 0 : i64, tpu.core_type = #tpu.core_type<tc>, window_params = [{transform_indices = @transform_0, window_bounds = array<i64: 1, 18, 18, 36>}, {pipeline_mode = #tpu.pipeline_mode<synchronous>, transform_indices = @transform_1, window_bounds = array<i64: 9, 36, 128>}, {transform_indices = @transform_2, window_bounds = array<i64: 256, 32>}, {transform_indices = @transform_3, window_bounds = array<i64: 256, 32>}, {transform_indices = @transform_4, window_bounds = array<i64: 256, 32>}]} {
    %c0 = arith.constant 0 : index
    %c0_0 = arith.constant 0 : index
    %c0_1 = arith.constant 0 : index
    %c0_2 = arith.constant 0 : index
    %0 = vector.load %arg1[%c0, %c0_0, %c0_1, %c0_2] : memref<1x18x18x36xbf16, #tpu.memory_space<vmem>>, vector<1x16x16x36xbf16>
    %1 = vector.shape_cast %0 : vector<1x16x16x36xbf16> to vector<256x36xbf16>
    %c0_3 = arith.constant 0 : index
    %c0_4 = arith.constant 0 : index
    %c0_5 = arith.constant 0 : index
    %2 = vector.load %arg2[%c0_3, %c0_4, %c0_5] : memref<9x36x128xbf16, #tpu.memory_space<vmem>>, vector<1x36x128xbf16>
    %3 = vector.shape_cast %2 : vector<1x36x128xbf16> to vector<36x128xbf16>
    %cst = arith.constant dense<0.000000e+00> : vector<256x128xf32>
    %4 = tpu.matmul %1, %3, %cst {dimension_numbers = #tpu.dot_dimension_numbers<[1], [0], [0], [1], [0, 0, 1, 1], [], []>} : vector<256x36xbf16>, vector<36x128xbf16>, vector<256x128xf32> -> vector<256x128xf32>
    %c0_6 = arith.constant 0 : index
    %c0_7 = arith.constant 0 : index
    %c1 = arith.constant 1 : index
    %c0_8 = arith.constant 0 : index
    %5 = vector.load %arg1[%c0_6, %c0_7, %c1, %c0_8] : memref<1x18x18x36xbf16, #tpu.memory_space<vmem>>, vector<1x16x16x36xbf16>
    %6 = vector.shape_cast %5 : vector<1x16x16x36xbf16> to vector<256x36xbf16>
    %c1_9 = arith.constant 1 : index
    %c0_10 = arith.constant 0 : index
    %c0_11 = arith.constant 0 : index
    %7 = vector.load %arg2[%c1_9, %c0_10, %c0_11] : memref<9x36x128xbf16, #tpu.memory_space<vmem>>, vector<1x36x128xbf16>
    %8 = vector.shape_cast %7 : vector<1x36x128xbf16> to vector<36x128xbf16>
    %cst_12 = arith.constant dense<0.000000e+00> : vector<256x128xf32>
    %9 = tpu.matmul %6, %8, %cst_12 {dimension_numbers = #tpu.dot_dimension_numbers<[1], [0], [0], [1], [0, 0, 1, 1], [], []>} : vector<256x36xbf16>, vector<36x128xbf16>, vector<256x128xf32> -> vector<256x128xf32>
    %10 = arith.addf %4, %9 : vector<256x128xf32>
    %c0_13 = arith.constant 0 : index
    %c0_14 = arith.constant 0 : index
    %c2 = arith.constant 2 : index
    %c0_15 = arith.constant 0 : index
    %11 = vector.load %arg1[%c0_13, %c0_14, %c2, %c0_15] : memref<1x18x18x36xbf16, #tpu.memory_space<vmem>>, vector<1x16x16x36xbf16>
    %12 = vector.shape_cast %11 : vector<1x16x16x36xbf16> to vector<256x36xbf16>
    %c2_16 = arith.constant 2 : index
    %c0_17 = arith.constant 0 : index
    %c0_18 = arith.constant 0 : index
    %13 = vector.load %arg2[%c2_16, %c0_17, %c0_18] : memref<9x36x128xbf16, #tpu.memory_space<vmem>>, vector<1x36x128xbf16>
    %14 = vector.shape_cast %13 : vector<1x36x128xbf16> to vector<36x128xbf16>
    %cst_19 = arith.constant dense<0.000000e+00> : vector<256x128xf32>
    %15 = tpu.matmul %12, %14, %cst_19 {dimension_numbers = #tpu.dot_dimension_numbers<[1], [0], [0], [1], [0, 0, 1, 1], [], []>} : vector<256x36xbf16>, vector<36x128xbf16>, vector<256x128xf32> -> vector<256x128xf32>
    %16 = arith.addf %10, %15 : vector<256x128xf32>
    %c0_20 = arith.constant 0 : index
    %c1_21 = arith.constant 1 : index
    %c0_22 = arith.constant 0 : index
    %c0_23 = arith.constant 0 : index
    %17 = vector.load %arg1[%c0_20, %c1_21, %c0_22, %c0_23] : memref<1x18x18x36xbf16, #tpu.memory_space<vmem>>, vector<1x16x16x36xbf16>
    %18 = vector.shape_cast %17 : vector<1x16x16x36xbf16> to vector<256x36xbf16>
    %c3 = arith.constant 3 : index
    %c0_24 = arith.constant 0 : index
    %c0_25 = arith.constant 0 : index
    %19 = vector.load %arg2[%c3, %c0_24, %c0_25] : memref<9x36x128xbf16, #tpu.memory_space<vmem>>, vector<1x36x128xbf16>
    %20 = vector.shape_cast %19 : vector<1x36x128xbf16> to vector<36x128xbf16>
    %cst_26 = arith.constant dense<0.000000e+00> : vector<256x128xf32>
    %21 = tpu.matmul %18, %20, %cst_26 {dimension_numbers = #tpu.dot_dimension_numbers<[1], [0], [0], [1], [0, 0, 1, 1], [], []>} : vector<256x36xbf16>, vector<36x128xbf16>, vector<256x128xf32> -> vector<256x128xf32>
    %22 = arith.addf %16, %21 : vector<256x128xf32>
    %c0_27 = arith.constant 0 : index
    %c1_28 = arith.constant 1 : index
    %c1_29 = arith.constant 1 : index
    %c0_30 = arith.constant 0 : index
    %23 = vector.load %arg1[%c0_27, %c1_28, %c1_29, %c0_30] : memref<1x18x18x36xbf16, #tpu.memory_space<vmem>>, vector<1x16x16x36xbf16>
    %24 = vector.shape_cast %23 : vector<1x16x16x36xbf16> to vector<256x36xbf16>
    %c4 = arith.constant 4 : index
    %c0_31 = arith.constant 0 : index
    %c0_32 = arith.constant 0 : index
    %25 = vector.load %arg2[%c4, %c0_31, %c0_32] : memref<9x36x128xbf16, #tpu.memory_space<vmem>>, vector<1x36x128xbf16>
    %26 = vector.shape_cast %25 : vector<1x36x128xbf16> to vector<36x128xbf16>
    %cst_33 = arith.constant dense<0.000000e+00> : vector<256x128xf32>
    %27 = tpu.matmul %24, %26, %cst_33 {dimension_numbers = #tpu.dot_dimension_numbers<[1], [0], [0], [1], [0, 0, 1, 1], [], []>} : vector<256x36xbf16>, vector<36x128xbf16>, vector<256x128xf32> -> vector<256x128xf32>
    %28 = arith.addf %22, %27 : vector<256x128xf32>
    %c0_34 = arith.constant 0 : index
    %c1_35 = arith.constant 1 : index
    %c2_36 = arith.constant 2 : index
    %c0_37 = arith.constant 0 : index
    %29 = vector.load %arg1[%c0_34, %c1_35, %c2_36, %c0_37] : memref<1x18x18x36xbf16, #tpu.memory_space<vmem>>, vector<1x16x16x36xbf16>
    %30 = vector.shape_cast %29 : vector<1x16x16x36xbf16> to vector<256x36xbf16>
    %c5 = arith.constant 5 : index
    %c0_38 = arith.constant 0 : index
    %c0_39 = arith.constant 0 : index
    %31 = vector.load %arg2[%c5, %c0_38, %c0_39] : memref<9x36x128xbf16, #tpu.memory_space<vmem>>, vector<1x36x128xbf16>
    %32 = vector.shape_cast %31 : vector<1x36x128xbf16> to vector<36x128xbf16>
    %cst_40 = arith.constant dense<0.000000e+00> : vector<256x128xf32>
    %33 = tpu.matmul %30, %32, %cst_40 {dimension_numbers = #tpu.dot_dimension_numbers<[1], [0], [0], [1], [0, 0, 1, 1], [], []>} : vector<256x36xbf16>, vector<36x128xbf16>, vector<256x128xf32> -> vector<256x128xf32>
    %34 = arith.addf %28, %33 : vector<256x128xf32>
    %c0_41 = arith.constant 0 : index
    %c2_42 = arith.constant 2 : index
    %c0_43 = arith.constant 0 : index
    %c0_44 = arith.constant 0 : index
    %35 = vector.load %arg1[%c0_41, %c2_42, %c0_43, %c0_44] : memref<1x18x18x36xbf16, #tpu.memory_space<vmem>>, vector<1x16x16x36xbf16>
    %36 = vector.shape_cast %35 : vector<1x16x16x36xbf16> to vector<256x36xbf16>
    %c6 = arith.constant 6 : index
    %c0_45 = arith.constant 0 : index
    %c0_46 = arith.constant 0 : index
    %37 = vector.load %arg2[%c6, %c0_45, %c0_46] : memref<9x36x128xbf16, #tpu.memory_space<vmem>>, vector<1x36x128xbf16>
    %38 = vector.shape_cast %37 : vector<1x36x128xbf16> to vector<36x128xbf16>
    %cst_47 = arith.constant dense<0.000000e+00> : vector<256x128xf32>
    %39 = tpu.matmul %36, %38, %cst_47 {dimension_numbers = #tpu.dot_dimension_numbers<[1], [0], [0], [1], [0, 0, 1, 1], [], []>} : vector<256x36xbf16>, vector<36x128xbf16>, vector<256x128xf32> -> vector<256x128xf32>
    %40 = arith.addf %34, %39 : vector<256x128xf32>
    %c0_48 = arith.constant 0 : index
    %c2_49 = arith.constant 2 : index
    %c1_50 = arith.constant 1 : index
    %c0_51 = arith.constant 0 : index
    %41 = vector.load %arg1[%c0_48, %c2_49, %c1_50, %c0_51] : memref<1x18x18x36xbf16, #tpu.memory_space<vmem>>, vector<1x16x16x36xbf16>
    %42 = vector.shape_cast %41 : vector<1x16x16x36xbf16> to vector<256x36xbf16>
    %c7 = arith.constant 7 : index
    %c0_52 = arith.constant 0 : index
    %c0_53 = arith.constant 0 : index
    %43 = vector.load %arg2[%c7, %c0_52, %c0_53] : memref<9x36x128xbf16, #tpu.memory_space<vmem>>, vector<1x36x128xbf16>
    %44 = vector.shape_cast %43 : vector<1x36x128xbf16> to vector<36x128xbf16>
    %cst_54 = arith.constant dense<0.000000e+00> : vector<256x128xf32>
    %45 = tpu.matmul %42, %44, %cst_54 {dimension_numbers = #tpu.dot_dimension_numbers<[1], [0], [0], [1], [0, 0, 1, 1], [], []>} : vector<256x36xbf16>, vector<36x128xbf16>, vector<256x128xf32> -> vector<256x128xf32>
    %46 = arith.addf %40, %45 : vector<256x128xf32>
    %c0_55 = arith.constant 0 : index
    %c2_56 = arith.constant 2 : index
    %c2_57 = arith.constant 2 : index
    %c0_58 = arith.constant 0 : index
    %47 = vector.load %arg1[%c0_55, %c2_56, %c2_57, %c0_58] : memref<1x18x18x36xbf16, #tpu.memory_space<vmem>>, vector<1x16x16x36xbf16>
    %48 = vector.shape_cast %47 : vector<1x16x16x36xbf16> to vector<256x36xbf16>
    %c8 = arith.constant 8 : index
    %c0_59 = arith.constant 0 : index
    %c0_60 = arith.constant 0 : index
    %49 = vector.load %arg2[%c8, %c0_59, %c0_60] : memref<9x36x128xbf16, #tpu.memory_space<vmem>>, vector<1x36x128xbf16>
    %50 = vector.shape_cast %49 : vector<1x36x128xbf16> to vector<36x128xbf16>
    %cst_61 = arith.constant dense<0.000000e+00> : vector<256x128xf32>
    %51 = tpu.matmul %48, %50, %cst_61 {dimension_numbers = #tpu.dot_dimension_numbers<[1], [0], [0], [1], [0, 0, 1, 1], [], []>} : vector<256x36xbf16>, vector<36x128xbf16>, vector<256x128xf32> -> vector<256x128xf32>
    %52 = arith.addf %46, %51 : vector<256x128xf32>
    %53 = arith.negf %52 : vector<256x128xf32>
    %54 = math.exp %53 : vector<256x128xf32>
    %cst_62 = arith.constant 1.000000e+00 : f32
    %55 = vector.broadcast %cst_62 : f32 to vector<256x128xf32>
    %56 = arith.addf %55, %54 : vector<256x128xf32>
    %57 = arith.divf %55, %56 : vector<256x128xf32>
    %58 = vector.extract_strided_slice %57 {offsets = [0, 0], sizes = [256, 32], strides = [1, 1]} : vector<256x128xf32> to vector<256x32xf32>
    %59 = vector.extract_strided_slice %57 {offsets = [0, 32], sizes = [256, 32], strides = [1, 1]} : vector<256x128xf32> to vector<256x32xf32>
    %60 = vector.extract_strided_slice %52 {offsets = [0, 64], sizes = [256, 32], strides = [1, 1]} : vector<256x128xf32> to vector<256x32xf32>
    %61 = vector.extract_strided_slice %57 {offsets = [0, 96], sizes = [256, 32], strides = [1, 1]} : vector<256x128xf32> to vector<256x32xf32>
    %c0_63 = arith.constant 0 : index
    %c0_64 = arith.constant 0 : index
    %62 = vector.load %arg3[%c0_63, %c0_64] : memref<256x32xf32, #tpu.memory_space<vmem>>, vector<256x32xf32>
    %63 = arith.mulf %59, %62 : vector<256x32xf32>
    %64 = arith.mulf %58, %60 : vector<256x32xf32>
    %65 = arith.addf %63, %64 : vector<256x32xf32>
    %66 = math.tanh %65 : vector<256x32xf32>
    %67 = arith.mulf %61, %66 : vector<256x32xf32>
    %c0_65 = arith.constant 0 : index
    %c0_66 = arith.constant 0 : index
    %68 = vector.load %arg4[%c0_65, %c0_66] : memref<256x32xf32, #tpu.memory_space<vmem>>, vector<256x32xf32>
    tpu.vector_store %arg4[%c0_65, %c0_66], %67 {strides = array<i32>} : memref<256x32xf32, #tpu.memory_space<vmem>>, vector<256x32xf32>,
    %c0_67 = arith.constant 0 : index
    %c0_68 = arith.constant 0 : index
    %69 = vector.load %arg5[%c0_67, %c0_68] : memref<256x32xf32, #tpu.memory_space<vmem>>, vector<256x32xf32>
    tpu.vector_store %arg5[%c0_67, %c0_68], %65 {strides = array<i32>} : memref<256x32xf32, #tpu.memory_space<vmem>>, vector<256x32xf32>,
    return
  }
  func.func @transform_0(%arg0: i32) -> (i32, i32, i32, i32) {
    %c0_i32 = arith.constant 0 : i32
    %c0_i32_0 = arith.constant 0 : i32
    %c0_i32_1 = arith.constant 0 : i32
    %c0_i32_2 = arith.constant 0 : i32
    return %arg0, %c0_i32, %c0_i32_0, %c0_i32_1 : i32, i32, i32, i32
  }
  func.func @transform_1(%arg0: i32) -> (i32, i32, i32) {
    %c0_i32 = arith.constant 0 : i32
    %c0_i32_0 = arith.constant 0 : i32
    %c0_i32_1 = arith.constant 0 : i32
    %c0_i32_2 = arith.constant 0 : i32
    return %c0_i32, %c0_i32_0, %c0_i32_1 : i32, i32, i32
  }
  func.func @transform_2(%arg0: i32) -> (i32, i32) {
    %c0_i32 = arith.constant 0 : i32
    %c0_i32_0 = arith.constant 0 : i32
    return %arg0, %c0_i32 : i32, i32
  }
  func.func @transform_3(%arg0: i32) -> (i32, i32) {
    %c0_i32 = arith.constant 0 : i32
    %c0_i32_0 = arith.constant 0 : i32
    return %arg0, %c0_i32 : i32, i32
  }
  func.func @transform_4(%arg0: i32) -> (i32, i32) {
    %c0_i32 = arith.constant 0 : i32
    %c0_i32_0 = arith.constant 0 : i32
    return %arg0, %c0_i32 : i32, i32
  }
}

</mosaic_0001>

<llo_original>
// kernel: tpu_custom_call.1
$region0: #{tpu_custom_call.1}
  #allocation0 [shape = 'u32[]', space=smem, size = 0x4, offset = 0x4, fixed_abs, tag = 'smem constant byte address 0x4 - core index']
  #allocation1 [shape = 'u32[144,128]{1,0:T(1,128)}', space=vmem, size = 0x12000, scoped, tag = 'internal scratch']
  %s0 = inlined_call_operand.vmem [shape: bf16[2,18,18,36], index: 0, kind: input, shape index: {}]
  %s1 = inlined_call_operand.vmem [shape: bf16[9,36,128], index: 1, kind: input, shape index: {}]
  %s2 = inlined_call_operand.vmem [shape: f32[512,32], index: 2, kind: input, shape index: {}]
  %s3 = inlined_call_operand.vmem [shape: f32[512,32], index: 3, kind: output, shape index: {0}]
  %s4 = inlined_call_operand.vmem [shape: f32[512,32], index: 4, kind: output, shape index: {1}]
  %5 = xla_tuple %s3, %s4
  %s6 = sld [smem:[#allocation0]]
  $region53: #{tpu_custom_call.1} parent=0
    _
  %s8 = ssub.s32 1, %s6
  %s9 = scalar_select 0, %s8, %s6
  loop: start=0, step=1, limit=4
  $region2: #{tpu_custom_call.1} parent=0 // loop_pre_header
    _
  $region3: #{tpu_custom_call.1} parent=0 // loop_header
    %s11 = sphi 0, %s15
    %p12 = scmp.ge.s32.totalorder %s11, 4
    %s21 = sphi 0, %s23
    %s24 = sphi 0, %s21
    %s25 = sphi 0, %s24
    %s41 = sphi 0, %s25
    %s45 = sphi 0, %s45
    %s47 = sphi 0, %s45
    %s48 = sphi 0, %s47
    %s62 = sphi 0, %s48
    %s68 = sphi 0, %s70
    %s71 = sphi 0, %s68
    %s72 = sphi 0, %s71
    %s88 = sphi 0, %s72
    %s94 = sphi 0, %s96
    %s97 = sphi 0, %s94
    %s98 = sphi 0, %s97
    %s114 = sphi 0, %s98
    %s120 = sphi 0, %s122
    %s123 = sphi 0, %s120
    %s124 = sphi 0, %s123
    %s140 = sphi 0, %s124
  $region4: #{tpu_custom_call.1} parent=0 // loop_header_branch
    %14 = sbr.rel (%p12) target = $region8
  $region5: #{tpu_custom_call.1} parent=0 // loop_body
    %s16 = ssub.s32 %s11, 1
    %s17 = ssub.s32 %s11, 2
    %s18 = sadd.s32 %s11, 1
    %s19 = ssub.s32 %s11, %s18
    %p20 = scmp.eq.s32.totalorder %s19, 0
    %s22 = sadd.s32 %s21, 1
    %s23 = scalar_select %p20, %s21, %s22
    %p26 = pneg %p20
    %p27 = scmp.eq.s32.totalorder %s11, 1
    %p28 = por %p26, %p27
    %p29 = scmp.ne.s32.totalorder %s21, %s24
    %p30 = scmp.eq.s32.totalorder %s11, 0
    %p31 = por %p29, %p30
    %p32 = scmp.ne.s32.totalorder %s21, %s24
    %p33 = scmp.eq.s32.totalorder %s16, 1
    %p34 = por %p32, %p33
    %p35 = scmp.ne.s32.totalorder %s24, %s25
    %p36 = scmp.eq.s32.totalorder %s16, 0
    %p37 = por %p35, %p36
    %p38 = scmp.ne.s32.totalorder %s24, %s25
    %p39 = scmp.eq.s32.totalorder %s17, 1
    %p40 = por %p38, %p39
    %p42 = scmp.ne.s32.totalorder %s25, %s41
    %p43 = scmp.eq.s32.totalorder %s17, 0
    %p44 = por %p42, %p43
    %s46 = sadd.s32 %s45, 1
    %p49 = scmp.eq.s32.totalorder %s11, 1
    %p50 = scmp.ne.s32.totalorder %s45, %s47
    %p51 = scmp.eq.s32.totalorder %s11, 0
    %p52 = por %p50, %p51
    %p53 = scmp.ne.s32.totalorder %s45, %s47
    %p54 = scmp.eq.s32.totalorder %s16, 1
    %p55 = por %p53, %p54
    %p56 = scmp.ne.s32.totalorder %s47, %s48
    %p57 = scmp.eq.s32.totalorder %s16, 0
    %p58 = por %p56, %p57
    %p59 = scmp.ne.s32.totalorder %s47, %s48
    %p60 = scmp.eq.s32.totalorder %s17, 1
    %p61 = por %p59, %p60
    %p63 = scmp.ne.s32.totalorder %s48, %s62
    %p64 = scmp.eq.s32.totalorder %s17, 0
    %p65 = por %p63, %p64
    %s66 = ssub.s32 %s11, %s18
    %p67 = scmp.eq.s32.totalorder %s66, 0
    %s69 = sadd.s32 %s68, 1
    %s70 = scalar_select %p67, %s68, %s69
    %p73 = pneg %p67
    %p74 = scmp.eq.s32.totalorder %s11, 1
    %p75 = por %p73, %p74
    %p76 = scmp.ne.s32.totalorder %s68, %s71
    %p77 = scmp.eq.s32.totalorder %s11, 0
    %p78 = por %p76, %p77
    %p79 = scmp.ne.s32.totalorder %s68, %s71
    %p80 = scmp.eq.s32.totalorder %s16, 1
    %p81 = por %p79, %p80
    %p82 = scmp.ne.s32.totalorder %s71, %s72
    %p83 = scmp.eq.s32.totalorder %s16, 0
    %p84 = por %p82, %p83
    %p85 = scmp.ne.s32.totalorder %s71, %s72
    %p86 = scmp.eq.s32.totalorder %s17, 1
    %p87 = por %p85, %p86
    %p89 = scmp.ne.s32.totalorder %s72, %s88
    %p90 = scmp.eq.s32.totalorder %s17, 0
    %p91 = por %p89, %p90
    %s92 = ssub.s32 %s11, %s18
    %p93 = scmp.eq.s32.totalorder %s92, 0
    %s95 = sadd.s32 %s94, 1
    %s96 = scalar_select %p93, %s94, %s95
    %p99 = pneg %p93
    %p100 = scmp.eq.s32.totalorder %s11, 1
    %p101 = por %p99, %p100
    %p102 = scmp.ne.s32.totalorder %s94, %s97
    %p103 = scmp.eq.s32.totalorder %s11, 0
    %p104 = por %p102, %p103
    %p105 = scmp.ne.s32.totalorder %s94, %s97
    %p106 = scmp.eq.s32.totalorder %s16, 1
    %p107 = por %p105, %p106
    %p108 = scmp.ne.s32.totalorder %s97, %s98
    %p109 = scmp.eq.s32.totalorder %s16, 0
    %p110 = por %p108, %p109
    %p111 = scmp.ne.s32.totalorder %s97, %s98
    %p112 = scmp.eq.s32.totalorder %s17, 1
    %p113 = por %p111, %p112
    %p115 = scmp.ne.s32.totalorder %s98, %s114
    %p116 = scmp.eq.s32.totalorder %s17, 0
    %p117 = por %p115, %p116
    %s118 = ssub.s32 %s11, %s18
    %p119 = scmp.eq.s32.totalorder %s118, 0
    %s121 = sadd.s32 %s120, 1
    %s122 = scalar_select %p119, %s120, %s121
    %p125 = pneg %p119
    %p126 = scmp.eq.s32.totalorder %s11, 1
    %p127 = por %p125, %p126
    %p128 = scmp.ne.s32.totalorder %s120, %s123
    %p129 = scmp.eq.s32.totalorder %s11, 0
    %p130 = por %p128, %p129
    %p131 = scmp.ne.s32.totalorder %s120, %s123
    %p132 = scmp.eq.s32.totalorder %s16, 1
    %p133 = por %p131, %p132
    %p134 = scmp.ne.s32.totalorder %s123, %s124
    %p135 = scmp.eq.s32.totalorder %s16, 0
    %p136 = por %p134, %p135
    %p137 = scmp.ne.s32.totalorder %s123, %s124
    %p138 = scmp.eq.s32.totalorder %s17, 1
    %p139 = por %p137, %p138
    %p141 = scmp.ne.s32.totalorder %s124, %s140
    %p142 = scmp.eq.s32.totalorder %s17, 0
    %p143 = por %p141, %p142
    %p144 = scmp.le.s32.totalorder 1, %s11
    %p145 = scmp.lt.s32.totalorder %s11, 3
    %p146 = pnand %p144, %p145
    %p147 = pneg %p146
    // Predicated region
    $region9: #{tpu_custom_call.1} parent=5 // pred_check
      _
    $region10: #{tpu_custom_call.1} parent=5 // pred_check_branch
      %149 = sbr.rel (%p146) target = $region12
    $region11: #{tpu_custom_call.1} parent=5 // pred_region
      %s150 = ssub.s32 %s11, 1
      // Predicated region
      $region13: #{tpu_custom_call.1} parent=11 // pred_check
        %p151 = pneg %p58
      $region14: #{tpu_custom_call.1} parent=11 // pred_check_branch
        %153 = sbr.rel (%p151) target = $region16
      $region15: #{tpu_custom_call.1} parent=11 // pred_region
        _
      $region16: #{tpu_custom_call.1} parent=11 // pred_fallthru
        _
    $region12: #{tpu_custom_call.1} parent=5 // pred_fallthru
      _
    %p154 = scmp.lt.s32.totalorder %s11, 2
    // Predicated region
    $region17: #{tpu_custom_call.1} parent=5 // pred_check
      %p155 = pneg %p154
    $region18: #{tpu_custom_call.1} parent=5 // pred_check_branch
      %157 = sbr.rel (%p155) target = $region20
    $region19: #{tpu_custom_call.1} parent=5 // pred_region
      // Predicated region
      $region21: #{tpu_custom_call.1} parent=19 // pred_check
        %p158 = pneg %p31
      $region22: #{tpu_custom_call.1} parent=19 // pred_check_branch
        %160 = sbr.rel (%p158) target = $region24
      $region23: #{tpu_custom_call.1} parent=19 // pred_region
        %p161 = scmp.lt.s32.totalorder %s11, 1
        %s162 = scalar_select %p161, %s11, 1
        %s163 = smul.addr %s162, 54
        %s164 = smul.addr %s163, 4
        %s165 = scalar_lea.vmem %s0, %s164
      $region24: #{tpu_custom_call.1} parent=19 // pred_fallthru
        _
      // Predicated region
      $region25: #{tpu_custom_call.1} parent=19 // pred_check
        %p166 = pneg %p78
      $region26: #{tpu_custom_call.1} parent=19 // pred_check_branch
        %168 = sbr.rel (%p166) target = $region28
      $region27: #{tpu_custom_call.1} parent=19 // pred_region
        %s169 = smul.u32 32, %s11
        %p170 = scmp.lt.s32.totalorder %s169, 63
        %s171 = scalar_select %p170, %s169, 63
        %s172 = smul.addr %s171, 8
        %s173 = scalar_lea.vmem %s2, %s172
        %s174 = smul.u32 32, %s11
      $region28: #{tpu_custom_call.1} parent=19 // pred_fallthru
        _
    $region20: #{tpu_custom_call.1} parent=5 // pred_fallthru
      _
    %p175 = scmp.le.s32.totalorder 1, %s11
    %p176 = scmp.lt.s32.totalorder %s11, 3
    %p177 = pnand %p175, %p176
    %p178 = pneg %p177
    // Predicated region
    $region29: #{tpu_custom_call.1} parent=5 // pred_check
      _
    $region30: #{tpu_custom_call.1} parent=5 // pred_check_branch
      %180 = sbr.rel (%p177) target = $region32
    $region31: #{tpu_custom_call.1} parent=5 // pred_region
      %s181 = ssub.s32 %s11, 1
      %p182 = scmp.lt.s32.totalorder %s16, 1
      %s183 = scalar_select %p182, %s16, 1
      %s184 = smul.addr %s183, 54
      %s185 = smul.addr %s184, 4
      %s186 = scalar_lea.vmem %s0, %s185
      %p187 = pneg %p37
      %p188 = pneg %p34
      %p189 = pneg %p58
      %p190 = pneg %p55
      %s191 = smul.u32 32, %s16
      %p192 = scmp.lt.s32.totalorder %s191, 63
      %s193 = scalar_select %p192, %s191, 63
      %s194 = smul.addr %s193, 8
      %s195 = scalar_lea.vmem %s2, %s194
      %p196 = pneg %p84
      %p197 = pneg %p81
      %p198 = pneg %p110
      %p199 = pneg %p107
      %s200 = smul.u32 32, %s16
      %p201 = scmp.lt.s32.totalorder %s200, 63
      %s202 = scalar_select %p201, %s200, 63
      %s203 = smul.addr %s202, 8
      %s204 = scalar_lea.vmem %s3, %s203
      %p205 = pneg %p136
      %p206 = pneg %p133
      %s207 = smul.u32 32, %s16
      %p208 = scmp.lt.s32.totalorder %s207, 63
      %s209 = scalar_select %p208, %s207, 63
      %s210 = smul.addr %s209, 8
      %s211 = scalar_lea.vmem %s4, %s210
      %p212 = scmp.lt.s32.totalorder %s16, 1
      %s213 = scalar_select %p212, %s16, 1
      %s214 = smul.addr %s213, 54
      %s215 = smul.addr %s214, 4
      %s216 = scalar_lea.vmem %s0, %s215
      %s217 = smul.u32 32, %s16
      %p218 = scmp.lt.s32.totalorder %s217, 63
      %s219 = scalar_select %p218, %s217, 63
      %s220 = smul.addr %s219, 8
      %s221 = scalar_lea.vmem %s2, %s220
      %s222 = smul.u32 32, %s16
      %s223 = smul.u32 32, %s16
      %p224 = scmp.lt.s32.totalorder %s223, 63
      %s225 = scalar_select %p224, %s223, 63
      %s226 = smul.addr %s225, 8
      %s227 = scalar_lea.vmem %s3, %s226
      %s228 = smul.u32 32, %s16
      %s229 = smul.u32 32, %s16
      %p230 = scmp.lt.s32.totalorder %s229, 63
      %s231 = scalar_select %p230, %s229, 63
      %s232 = smul.addr %s231, 8
      %s233 = scalar_lea.vmem %s4, %s232
      %s234 = smul.u32 32, %s16
      %v236 = vld [vmem:[%s216] sm:$0xf]
      %v237 = vld [vmem:[%s216 + $0x4] sm:$0xf]
      %v238 = vld [vmem:[%s216 + $0xc] sm:$0xf]
      %v239 = vld [vmem:[%s216 + $0x10] sm:$0xf]
      %v240 = vld [vmem:[%s216 + $0x18] sm:$0xf]
      %v241 = vld [vmem:[%s216 + $0x1c] sm:$0xf]
      %v242 = vld [vmem:[%s216 + $0x24] sm:$0xf]
      %v243 = vld [vmem:[%s216 + $0x28] sm:$0xf]
      %v244 = vld [vmem:[%s216 + $0x30] sm:$0xf]
      %v245 = vld [vmem:[%s216 + $0x34] sm:$0xf]
      %v246 = vld [vmem:[%s216 + $0x3c] sm:$0xf]
      %v247 = vld [vmem:[%s216 + $0x40] sm:$0xf]
      %v248 = vld [vmem:[%s216 + $0x48] sm:$0xf]
      %v249 = vld [vmem:[%s216 + $0x4c] sm:$0xf]
      %v250 = vld [vmem:[%s216 + $0x54] sm:$0xf]
      %v251 = vld [vmem:[%s216 + $0x58] sm:$0xf]
      %v252 = vld [vmem:[%s216 + $0x60] sm:$0xf]
      %v253 = vld [vmem:[%s216 + $0x64] sm:$0xf]
      %v254 = vld [vmem:[%s216 + $0x6c] sm:$0xf]
      %v255 = vld [vmem:[%s216 + $0x70] sm:$0xf]
      %v256 = vld [vmem:[%s216 + $0x78] sm:$0xf]
      %v257 = vld [vmem:[%s216 + $0x7c] sm:$0xf]
      %v258 = vld [vmem:[%s216 + $0x84] sm:$0xf]
      %v259 = vld [vmem:[%s216 + $0x88] sm:$0xf]
      %v260 = vld [vmem:[%s216 + $0x90] sm:$0xf]
      %v261 = vld [vmem:[%s216 + $0x94] sm:$0xf]
      %v262 = vld [vmem:[%s216 + $0x9c] sm:$0xf]
      %v263 = vld [vmem:[%s216 + $0xa0] sm:$0xf]
      %v264 = vld [vmem:[%s216 + $0xa8] sm:$0xf]
      %v265 = vld [vmem:[%s216 + $0xac] sm:$0xf]
      %v266 = vld [vmem:[%s216 + $0xb4] sm:$0xf]
      %v267 = vld [vmem:[%s216 + $0xb8] sm:$0xf]
      %v268 = vld [vmem:[%s1] sm:$0xf]
      %v269 = vld [vmem:[%s1 + $0x4] sm:$0xf]
      %v270 = vld [vmem:[%s1 + $0x8] sm:$0xf]
      %v271 = vld [vmem:[%s1 + $0xc] sm:$0xf]
      %v272 = vld [vmem:[%s1 + $0x10] sm:$0x3]
      %v273 = vld [vmem:[%s216 + $0x8] sm:$0x1]
      %v274 = vld [vmem:[%s216 + $0x14] sm:$0x1]
      %v275 = vld [vmem:[%s216 + $0x20] sm:$0x1]
      %v276 = vld [vmem:[%s216 + $0x2c] sm:$0x1]
      %v277 = vld [vmem:[%s216 + $0x38] sm:$0x1]
      %v278 = vld [vmem:[%s216 + $0x44] sm:$0x1]
      %v279 = vld [vmem:[%s216 + $0x50] sm:$0x1]
      %v280 = vld [vmem:[%s216 + $0x5c] sm:$0x1]
      %v281 = vld [vmem:[%s216 + $0x68] sm:$0x1]
      %v282 = vld [vmem:[%s216 + $0x74] sm:$0x1]
      %v283 = vld [vmem:[%s216 + $0x80] sm:$0x1]
      %v284 = vld [vmem:[%s216 + $0x8c] sm:$0x1]
      %v285 = vld [vmem:[%s216 + $0x98] sm:$0x1]
      %v286 = vld [vmem:[%s216 + $0xa4] sm:$0x1]
      %v287 = vld [vmem:[%s216 + $0xb0] sm:$0x1]
      %v288 = vld [vmem:[%s216 + $0xbc] sm:$0x1]
      %vm289 = vsmask.f32 3328
      %vm290 = vsmask.f32 7440
      %vm291 = vmor %vm289, %vm290
      %v293 = vshrl.u32 %v236, 16
      %v295 = vrot.slane %v293, 4
      %v296 = vshll.u32 %v236, 16
      %v298 = vrot.slane %v296, 5
      %v299 = vor.u32 %v295, %v298
      %v300 = vrot.slane %v299, 4
      %v302 = vshll.u32 %v237, 16
      %v304 = vrot.slane %v302, 5
      %v305 = vsel %vm291, %v300, %v304
      %v306 = vshrl.u32 %v237, 16
      %v308 = vrot.slane %v306, 4
      %v309 = vor.u32 %v308, %v304
      %v310 = vrot.slane %v309, 4
      %v312 = vshll.u32 %v273, 16
      %v314 = vrot.slane %v312, 5
      %v315 = vsel %vm291, %v310, %v314
      %v317 = vshrl.u32 %v238, 16
      %v319 = vrot.slane %v317, 4
      %v320 = vshll.u32 %v238, 16
      %v322 = vrot.slane %v320, 5
      %v323 = vor.u32 %v319, %v322
      %v324 = vrot.slane %v323, 4
      %v326 = vshll.u32 %v239, 16
      %v328 = vrot.slane %v326, 5
      %v329 = vsel %vm291, %v324, %v328
      %v330 = vshrl.u32 %v239, 16
      %v332 = vrot.slane %v330, 4
      %v333 = vor.u32 %v332, %v328
      %v334 = vrot.slane %v333, 4
      %v336 = vshll.u32 %v274, 16
      %v338 = vrot.slane %v336, 5
      %v339 = vsel %vm291, %v334, %v338
      %v341 = vshrl.u32 %v240, 16
      %v343 = vrot.slane %v341, 4
      %v344 = vshll.u32 %v240, 16
      %v346 = vrot.slane %v344, 5
      %v347 = vor.u32 %v343, %v346
      %v348 = vrot.slane %v347, 4
      %v350 = vshll.u32 %v241, 16
      %v352 = vrot.slane %v350, 5
      %v353 = vsel %vm291, %v348, %v352
      %v354 = vshrl.u32 %v241, 16
      %v356 = vrot.slane %v354, 4
      %v357 = vor.u32 %v356, %v352
      %v358 = vrot.slane %v357, 4
      %v360 = vshll.u32 %v275, 16
      %v362 = vrot.slane %v360, 5
      %v363 = vsel %vm291, %v358, %v362
      %v365 = vshrl.u32 %v242, 16
      %v367 = vrot.slane %v365, 4
      %v368 = vshll.u32 %v242, 16
      %v370 = vrot.slane %v368, 5
      %v371 = vor.u32 %v367, %v370
      %v372 = vrot.slane %v371, 4
      %v374 = vshll.u32 %v243, 16
      %v376 = vrot.slane %v374, 5
      %v377 = vsel %vm291, %v372, %v376
      %v378 = vshrl.u32 %v243, 16
      %v380 = vrot.slane %v378, 4
      %v381 = vor.u32 %v380, %v376
      %v382 = vrot.slane %v381, 4
      %v384 = vshll.u32 %v276, 16
      %v386 = vrot.slane %v384, 5
      %v387 = vsel %vm291, %v382, %v386
      %v389 = vshrl.u32 %v244, 16
      %v391 = vrot.slane %v389, 4
      %v392 = vshll.u32 %v244, 16
      %v394 = vrot.slane %v392, 5
      %v395 = vor.u32 %v391, %v394
      %v396 = vrot.slane %v395, 4
      %v398 = vshll.u32 %v245, 16
      %v400 = vrot.slane %v398, 5
      %v401 = vsel %vm291, %v396, %v400
      %v402 = vshrl.u32 %v245, 16
      %v404 = vrot.slane %v402, 4
      %v405 = vor.u32 %v404, %v400
      %v406 = vrot.slane %v405, 4
      %v408 = vshll.u32 %v277, 16
      %v410 = vrot.slane %v408, 5
      %v411 = vsel %vm291, %v406, %v410
      %v413 = vshrl.u32 %v246, 16
      %v415 = vrot.slane %v413, 4
      %v416 = vshll.u32 %v246, 16
      %v418 = vrot.slane %v416, 5
      %v419 = vor.u32 %v415, %v418
      %v420 = vrot.slane %v419, 4
      %v422 = vshll.u32 %v247, 16
      %v424 = vrot.slane %v422, 5
      %v425 = vsel %vm291, %v420, %v424
      %v426 = vshrl.u32 %v247, 16
      %v428 = vrot.slane %v426, 4
      %v429 = vor.u32 %v428, %v424
      %v430 = vrot.slane %v429, 4
      %v432 = vshll.u32 %v278, 16
      %v434 = vrot.slane %v432, 5
      %v435 = vsel %vm291, %v430, %v434
      %v437 = vshrl.u32 %v248, 16
      %v439 = vrot.slane %v437, 4
      %v440 = vshll.u32 %v248, 16
      %v442 = vrot.slane %v440, 5
      %v443 = vor.u32 %v439, %v442
      %v444 = vrot.slane %v443, 4
      %v446 = vshll.u32 %v249, 16
      %v448 = vrot.slane %v446, 5
      %v449 = vsel %vm291, %v444, %v448
      %v450 = vshrl.u32 %v249, 16
      %v452 = vrot.slane %v450, 4
      %v453 = vor.u32 %v452, %v448
      %v454 = vrot.slane %v453, 4
      %v456 = vshll.u32 %v279, 16
      %v458 = vrot.slane %v456, 5
      %v459 = vsel %vm291, %v454, %v458
      %v461 = vshrl.u32 %v250, 16
      %v463 = vrot.slane %v461, 4
      %v464 = vshll.u32 %v250, 16
      %v466 = vrot.slane %v464, 5
      %v467 = vor.u32 %v463, %v466
      %v468 = vrot.slane %v467, 4
      %v470 = vshll.u32 %v251, 16
      %v472 = vrot.slane %v470, 5
      %v473 = vsel %vm291, %v468, %v472
      %v474 = vshrl.u32 %v251, 16
      %v476 = vrot.slane %v474, 4
      %v477 = vor.u32 %v476, %v472
      %v478 = vrot.slane %v477, 4
      %v480 = vshll.u32 %v280, 16
      %v482 = vrot.slane %v480, 5
      %v483 = vsel %vm291, %v478, %v482
      %v485 = vshrl.u32 %v252, 16
      %v487 = vrot.slane %v485, 4
      %v488 = vshll.u32 %v252, 16
      %v490 = vrot.slane %v488, 5
      %v491 = vor.u32 %v487, %v490
      %v492 = vrot.slane %v491, 4
      %v494 = vshll.u32 %v253, 16
      %v496 = vrot.slane %v494, 5
      %v497 = vsel %vm291, %v492, %v496
      %v498 = vshrl.u32 %v253, 16
      %v500 = vrot.slane %v498, 4
      %v501 = vor.u32 %v500, %v496
      %v502 = vrot.slane %v501, 4
      %v504 = vshll.u32 %v281, 16
      %v506 = vrot.slane %v504, 5
      %v507 = vsel %vm291, %v502, %v506
      %v509 = vshrl.u32 %v254, 16
      %v511 = vrot.slane %v509, 4
      %v512 = vshll.u32 %v254, 16
      %v514 = vrot.slane %v512, 5
      %v515 = vor.u32 %v511, %v514
      %v516 = vrot.slane %v515, 4
      %v518 = vshll.u32 %v255, 16
      %v520 = vrot.slane %v518, 5
      %v521 = vsel %vm291, %v516, %v520
      %v522 = vshrl.u32 %v255, 16
      %v524 = vrot.slane %v522, 4
      %v525 = vor.u32 %v524, %v520
      %v526 = vrot.slane %v525, 4
      %v528 = vshll.u32 %v282, 16
      %v530 = vrot.slane %v528, 5
      %v531 = vsel %vm291, %v526, %v530
      %v533 = vshrl.u32 %v256, 16
      %v535 = vrot.slane %v533, 4
      %v536 = vshll.u32 %v256, 16
      %v538 = vrot.slane %v536, 5
      %v539 = vor.u32 %v535, %v538
      %v540 = vrot.slane %v539, 4
      %v542 = vshll.u32 %v257, 16
      %v544 = vrot.slane %v542, 5
      %v545 = vsel %vm291, %v540, %v544
      %v546 = vshrl.u32 %v257, 16
      %v548 = vrot.slane %v546, 4
      %v549 = vor.u32 %v548, %v544
      %v550 = vrot.slane %v549, 4
      %v552 = vshll.u32 %v283, 16
      %v554 = vrot.slane %v552, 5
      %v555 = vsel %vm291, %v550, %v554
      %v557 = vshrl.u32 %v258, 16
      %v559 = vrot.slane %v557, 4
      %v560 = vshll.u32 %v258, 16
      %v562 = vrot.slane %v560, 5
      %v563 = vor.u32 %v559, %v562
      %v564 = vrot.slane %v563, 4
      %v566 = vshll.u32 %v259, 16
      %v568 = vrot.slane %v566, 5
      %v569 = vsel %vm291, %v564, %v568
      %v570 = vshrl.u32 %v259, 16
      %v572 = vrot.slane %v570, 4
      %v573 = vor.u32 %v572, %v568
      %v574 = vrot.slane %v573, 4
      %v576 = vshll.u32 %v284, 16
      %v578 = vrot.slane %v576, 5
      %v579 = vsel %vm291, %v574, %v578
      %v581 = vshrl.u32 %v260, 16
      %v583 = vrot.slane %v581, 4
      %v584 = vshll.u32 %v260, 16
      %v586 = vrot.slane %v584, 5
      %v587 = vor.u32 %v583, %v586
      %v588 = vrot.slane %v587, 4
      %v590 = vshll.u32 %v261, 16
      %v592 = vrot.slane %v590, 5
      %v593 = vsel %vm291, %v588, %v592
      %v594 = vshrl.u32 %v261, 16
      %v596 = vrot.slane %v594, 4
      %v597 = vor.u32 %v596, %v592
      %v598 = vrot.slane %v597, 4
      %v600 = vshll.u32 %v285, 16
      %v602 = vrot.slane %v600, 5
      %v603 = vsel %vm291, %v598, %v602
      %v605 = vshrl.u32 %v262, 16
      %v607 = vrot.slane %v605, 4
      %v608 = vshll.u32 %v262, 16
      %v610 = vrot.slane %v608, 5
      %v611 = vor.u32 %v607, %v610
      %v612 = vrot.slane %v611, 4
      %v614 = vshll.u32 %v263, 16
      %v616 = vrot.slane %v614, 5
      %v617 = vsel %vm291, %v612, %v616
      %v618 = vshrl.u32 %v263, 16
      %v620 = vrot.slane %v618, 4
      %v621 = vor.u32 %v620, %v616
      %v622 = vrot.slane %v621, 4
      %v624 = vshll.u32 %v286, 16
      %v626 = vrot.slane %v624, 5
      %v627 = vsel %vm291, %v622, %v626
      %v629 = vshrl.u32 %v264, 16
      %v631 = vrot.slane %v629, 4
      %v632 = vshll.u32 %v264, 16
      %v634 = vrot.slane %v632, 5
      %v635 = vor.u32 %v631, %v634
      %v636 = vrot.slane %v635, 4
      %v638 = vshll.u32 %v265, 16
      %v640 = vrot.slane %v638, 5
      %v641 = vsel %vm291, %v636, %v640
      %v642 = vshrl.u32 %v265, 16
      %v644 = vrot.slane %v642, 4
      %v645 = vor.u32 %v644, %v640
      %v646 = vrot.slane %v645, 4
      %v648 = vshll.u32 %v287, 16
      %v650 = vrot.slane %v648, 5
      %v651 = vsel %vm291, %v646, %v650
      %v653 = vshrl.u32 %v266, 16
      %v655 = vrot.slane %v653, 4
      %v656 = vshll.u32 %v266, 16
      %v658 = vrot.slane %v656, 5
      %v659 = vor.u32 %v655, %v658
      %v660 = vrot.slane %v659, 4
      %v662 = vshll.u32 %v267, 16
      %v664 = vrot.slane %v662, 5
      %v665 = vsel %vm291, %v660, %v664
      %v666 = vshrl.u32 %v267, 16
      %v668 = vrot.slane %v666, 4
      %v669 = vor.u32 %v668, %v664
      %v670 = vrot.slane %v669, 4
      %v672 = vshll.u32 %v288, 16
      %v674 = vrot.slane %v672, 5
      %v675 = vsel %vm291, %v670, %v674
      %s676 = scalar_lea.vmem %s1, 20
      %v677 = vld [vmem:[%s676] sm:$0xf]
      %v678 = vld [vmem:[%s676 + $0x4] sm:$0xf]
      %v679 = vld [vmem:[%s676 + $0x8] sm:$0xf]
      %v680 = vld [vmem:[%s676 + $0xc] sm:$0xf]
      %v681 = vld [vmem:[%s676 + $0x10] sm:$0x3]
      %v682 = vunpack.c.l.b16 %v305
      %v683 = vunpack.c.l.b16 %v315
      %v684 = vunpack.c.l.b16 %v329
      %v685 = vunpack.c.l.b16 %v339
      %v686 = vunpack.c.l.b16 %v353
      %v687 = vunpack.c.l.b16 %v363
      %v688 = vunpack.c.l.b16 %v377
      %v689 = vunpack.c.l.b16 %v387
      %v690 = vunpack.c.l.b16 %v401
      %v691 = vunpack.c.l.b16 %v411
      %v692 = vunpack.c.l.b16 %v425
      %v693 = vunpack.c.l.b16 %v435
      %v694 = vunpack.c.l.b16 %v449
      %v695 = vunpack.c.l.b16 %v459
      %v696 = vunpack.c.l.b16 %v473
      %v697 = vunpack.c.l.b16 %v483
      %v698 = vunpack.c.l.b16 %v497
      %v699 = vunpack.c.l.b16 %v507
      %v700 = vunpack.c.l.b16 %v521
      %v701 = vunpack.c.l.b16 %v531
      %v702 = vunpack.c.l.b16 %v545
      %v703 = vunpack.c.l.b16 %v555
      %v704 = vunpack.c.l.b16 %v569
      %v705 = vunpack.c.l.b16 %v579
      %v706 = vunpack.c.l.b16 %v593
      %v707 = vunpack.c.l.b16 %v603
      %v708 = vunpack.c.l.b16 %v617
      %v709 = vunpack.c.l.b16 %v627
      %v710 = vunpack.c.l.b16 %v641
      %v711 = vunpack.c.l.b16 %v651
      %v712 = vunpack.c.l.b16 %v665
      %v713 = vunpack.c.l.b16 %v675
      %v714 = vpack.c.b16 %v683, %v682
      %v715 = vpack.c.b16 %v685, %v684
      %v716 = vpack.c.b16 %v687, %v686
      %v717 = vpack.c.b16 %v689, %v688
      %v718 = vpack.c.b16 %v691, %v690
      %v719 = vpack.c.b16 %v693, %v692
      %v720 = vpack.c.b16 %v695, %v694
      %v721 = vpack.c.b16 %v697, %v696
      %v722 = vpack.c.b16 %v699, %v698
      %v723 = vpack.c.b16 %v701, %v700
      %v724 = vpack.c.b16 %v703, %v702
      %v725 = vpack.c.b16 %v705, %v704
      %v726 = vpack.c.b16 %v707, %v706
      %v727 = vpack.c.b16 %v709, %v708
      %v728 = vpack.c.b16 %v711, %v710
      %v729 = vpack.c.b16 %v713, %v712
      %v735 = vunpack.c.l.b16 %v677
      %v736 = vunpack.c.l.b16 %v678
      %v737 = vunpack.c.l.b16 %v679
      %v738 = vunpack.c.l.b16 %v680
      %v739 = vunpack.c.l.b16 %v681
      %v740 = vpack.c.b16 %v736, %v735
      %v741 = vpack.c.b16 %v738, %v737
      %v742 = vpack.c.b16 %v739, %v739
      %vm745 = vcmask 293888
      %v747 = vsel %vm745, %v714, 0
      %v750 = vsel %vm745, %v715, 0
      %v753 = vsel %vm745, %v716, 0
      %v756 = vsel %vm745, %v717, 0
      %v759 = vsel %vm745, %v718, 0
      %v762 = vsel %vm745, %v719, 0
      %v765 = vsel %vm745, %v720, 0
      %v768 = vsel %vm745, %v721, 0
      %v771 = vsel %vm745, %v722, 0
      %v774 = vsel %vm745, %v723, 0
      %v777 = vsel %vm745, %v724, 0
      %v780 = vsel %vm745, %v725, 0
      %v783 = vsel %vm745, %v726, 0
      %v786 = vsel %vm745, %v727, 0
      %v789 = vsel %vm745, %v728, 0
      %v792 = vsel %vm745, %v729, 0
      %vm794 = vcmask 1041408
      %v796 = vsel %vm794, %v742, 0
      %798 = vmatprep.subr.bf16.mxu0 0
      %799 = vmatpush1.bf16.msra.mxu0 %v740
      %800 = vmatprep.subr.bf16.mxu0 0
      %801 = vmatpush1.bf16.msra.mxu0 %v741
      %802 = vmatprep.subr.bf16.mxu0 0
      %803 = vmatpush1.bf16.msra.mxu0 %v796
      %804 = vmatprep.subr.bf16.mxu0 0
      %805 = vmatpush1.bf16.msra.mxu0 0
      %806 = vmatprep.subr.bf16.mxu0 0
      %807 = vmatpush1.bf16.msra.mxu0 0
      %808 = vmatprep.subr.bf16.mxu0 0
      %809 = vmatpush1.bf16.msra.mxu0 0
      %810 = vmatprep.subr.bf16.mxu0 0
      %811 = vmatpush1.bf16.msra.mxu0 0
      %812 = vmatprep.subr.bf16.mxu0 0
      %813 = vmatpush1.bf16.msra.mxu0 0
      %814 = vmatprep.subr.bf16.mxu0 0
      %815 = vmatpush1.bf16.msra.mxu0 0
      %816 = vmatprep.subr.bf16.mxu0 0
      %817 = vmatpush1.bf16.msra.mxu0 0
      %818 = vmatprep.subr.bf16.mxu0 0
      %819 = vmatpush1.bf16.msra.mxu0 0
      %820 = vmatprep.subr.bf16.mxu0 0
      %821 = vmatpush1.bf16.msra.mxu0 0
      %822 = vmatprep.subr.bf16.mxu0 0
      %823 = vmatpush1.bf16.msra.mxu0 0
      %824 = vmatprep.subr.bf16.mxu0 0
      %825 = vmatpush1.bf16.msra.mxu0 0
      %826 = vmatprep.subr.bf16.mxu0 0
      %827 = vmatpush1.bf16.msra.mxu0 0
      %828 = vmatprep.subr.bf16.mxu0 0
      %829 = vmatpush1.bf16.msra.mxu0 0
      %830 = vmatprep.mubr.bf16.mxu0 0
      %831 = vmatmul.mubr.bf16.gmra.mrb[0].mxu0 %v747
      %v832 = vpop.f32.mrb[0].mxu0
      %v833 = vadd.f32 0.0, %v832
      %v834 = vpop.f32.mrb[0].mxu0
      %v835 = vpop.f32.mrb[0].mxu0
      %v836 = vadd.f32 0.0, %v835
      %v837 = vpop.f32.mrb[0].mxu0
      %838 = vmatprep.mubr.bf16.mxu0 0
      %839 = vmatmul.mubr.bf16.gmra.mrb[0].mxu0 %v750
      %v840 = vpop.f32.mrb[0].mxu0
      %v841 = vadd.f32 0.0, %v840
      %v842 = vpop.f32.mrb[0].mxu0
      %v843 = vpop.f32.mrb[0].mxu0
      %v844 = vadd.f32 0.0, %v843
      %v845 = vpop.f32.mrb[0].mxu0
      %846 = vmatprep.mubr.bf16.mxu0 0
      %847 = vmatmul.mubr.bf16.gmra.mrb[0].mxu0 %v753
      %v848 = vpop.f32.mrb[0].mxu0
      %v849 = vadd.f32 0.0, %v848
      %v850 = vpop.f32.mrb[0].mxu0
      %v851 = vpop.f32.mrb[0].mxu0
      %v852 = vadd.f32 0.0, %v851
      %v853 = vpop.f32.mrb[0].mxu0
      %854 = vmatprep.mubr.bf16.mxu0 0
      %855 = vmatmul.mubr.bf16.gmra.mrb[0].mxu0 %v756
      %v856 = vpop.f32.mrb[0].mxu0
      %v857 = vadd.f32 0.0, %v856
      %v858 = vpop.f32.mrb[0].mxu0
      %v859 = vpop.f32.mrb[0].mxu0
      %v860 = vadd.f32 0.0, %v859
      %v861 = vpop.f32.mrb[0].mxu0
      %862 = vmatprep.mubr.bf16.mxu0 0
      %863 = vmatmul.mubr.bf16.gmra.mrb[0].mxu0 %v759
      %v864 = vpop.f32.mrb[0].mxu0
      %v865 = vadd.f32 0.0, %v864
      %v866 = vpop.f32.mrb[0].mxu0
      %v867 = vpop.f32.mrb[0].mxu0
      %v868 = vadd.f32 0.0, %v867
      %v869 = vpop.f32.mrb[0].mxu0
      %870 = vmatprep.mubr.bf16.mxu0 0
      %871 = vmatmul.mubr.bf16.gmra.mrb[0].mxu0 %v762
      %v872 = vpop.f32.mrb[0].mxu0
      %v873 = vadd.f32 0.0, %v872
      %v874 = vpop.f32.mrb[0].mxu0
      %v875 = vpop.f32.mrb[0].mxu0
      %v876 = vadd.f32 0.0, %v875
      %v877 = vpop.f32.mrb[0].mxu0
      %878 = vmatprep.mubr.bf16.mxu0 0
      %879 = vmatmul.mubr.bf16.gmra.mrb[0].mxu0 %v765
      %v880 = vpop.f32.mrb[0].mxu0
      %v881 = vadd.f32 0.0, %v880
      %v882 = vpop.f32.mrb[0].mxu0
      %v883 = vpop.f32.mrb[0].mxu0
      %v884 = vadd.f32 0.0, %v883
      %v885 = vpop.f32.mrb[0].mxu0
      %886 = vmatprep.mubr.bf16.mxu0 0
      %887 = vmatmul.mubr.bf16.gmra.mrb[0].mxu0 %v768
      %v888 = vpop.f32.mrb[0].mxu0
      %v889 = vadd.f32 0.0, %v888
      %v890 = vpop.f32.mrb[0].mxu0
      %v891 = vpop.f32.mrb[0].mxu0
      %v892 = vadd.f32 0.0, %v891
      %v893 = vpop.f32.mrb[0].mxu0
      %894 = vmatprep.mubr.bf16.mxu0 0
      %895 = vmatmul.mubr.bf16.gmra.mrb[0].mxu0 %v771
      %v896 = vpop.f32.mrb[0].mxu0
      %v897 = vadd.f32 0.0, %v896
      %v898 = vpop.f32.mrb[0].mxu0
      %v899 = vpop.f32.mrb[0].mxu0
      %v900 = vadd.f32 0.0, %v899
      %v901 = vpop.f32.mrb[0].mxu0
      %902 = vmatprep.mubr.bf16.mxu0 0
      %903 = vmatmul.mubr.bf16.gmra.mrb[0].mxu0 %v774
      %v904 = vpop.f32.mrb[0].mxu0
      %v905 = vadd.f32 0.0, %v904
      %v906 = vpop.f32.mrb[0].mxu0
      %v907 = vpop.f32.mrb[0].mxu0
      %v908 = vadd.f32 0.0, %v907
      %v909 = vpop.f32.mrb[0].mxu0
      %910 = vmatprep.mubr.bf16.mxu0 0
      %911 = vmatmul.mubr.bf16.gmra.mrb[0].mxu0 %v777
      %v912 = vpop.f32.mrb[0].mxu0
      %v913 = vadd.f32 0.0, %v912
      %v914 = vpop.f32.mrb[0].mxu0
      %v915 = vpop.f32.mrb[0].mxu0
      %v916 = vadd.f32 0.0, %v915
      %v917 = vpop.f32.mrb[0].mxu0
      %918 = vmatprep.mubr.bf16.mxu0 0
      %919 = vmatmul.mubr.bf16.gmra.mrb[0].mxu0 %v780
      %v920 = vpop.f32.mrb[0].mxu0
      %v921 = vadd.f32 0.0, %v920
      %v922 = vpop.f32.mrb[0].mxu0
      %v923 = vpop.f32.mrb[0].mxu0
      %v924 = vadd.f32 0.0, %v923
      %v925 = vpop.f32.mrb[0].mxu0
      %926 = vmatprep.mubr.bf16.mxu0 0
      %927 = vmatmul.mubr.bf16.gmra.mrb[0].mxu0 %v783
      %v928 = vpop.f32.mrb[0].mxu0
      %v929 = vadd.f32 0.0, %v928
      %v930 = vpop.f32.mrb[0].mxu0
      %v931 = vpop.f32.mrb[0].mxu0
      %v932 = vadd.f32 0.0, %v931
      %v933 = vpop.f32.mrb[0].mxu0
      %934 = vmatprep.mubr.bf16.mxu0 0
      %935 = vmatmul.mubr.bf16.gmra.mrb[0].mxu0 %v786
      %v936 = vpop.f32.mrb[0].mxu0
      %v937 = vadd.f32 0.0, %v936
      %v938 = vpop.f32.mrb[0].mxu0
      %v939 = vpop.f32.mrb[0].mxu0
      %v940 = vadd.f32 0.0, %v939
      %v941 = vpop.f32.mrb[0].mxu0
      %942 = vmatprep.mubr.bf16.mxu0 0
      %943 = vmatmul.mubr.bf16.gmra.mrb[0].mxu0 %v789
      %v944 = vpop.f32.mrb[0].mxu0
      %v945 = vadd.f32 0.0, %v944
      %v946 = vpop.f32.mrb[0].mxu0
      %v947 = vpop.f32.mrb[0].mxu0
      %v948 = vadd.f32 0.0, %v947
      %v949 = vpop.f32.mrb[0].mxu0
      %950 = vmatprep.mubr.bf16.mxu0 0
      %951 = vmatmul.mubr.bf16.gmra.mrb[0].mxu0 %v792
      %v952 = vpop.f32.mrb[0].mxu0
      %v953 = vadd.f32 0.0, %v952
      %v954 = vpop.f32.mrb[0].mxu0
      %v955 = vpop.f32.mrb[0].mxu0
      %v956 = vadd.f32 0.0, %v955
      %v957 = vpop.f32.mrb[0].mxu0
      %958 = vdwg.mxu0
      %v991 = vunpack.c.l.b16 %v236
      %v992 = vunpack.c.l.b16 %v237
      %v993 = vunpack.c.l.b16 %v238
      %v994 = vunpack.c.l.b16 %v239
      %v995 = vunpack.c.l.b16 %v240
      %v996 = vunpack.c.l.b16 %v241
      %v997 = vunpack.c.l.b16 %v242
      %v998 = vunpack.c.l.b16 %v243
      %v999 = vunpack.c.l.b16 %v244
      %v1000 = vunpack.c.l.b16 %v245
      %v1001 = vunpack.c.l.b16 %v246
      %v1002 = vunpack.c.l.b16 %v247
      %v1003 = vunpack.c.l.b16 %v248
      %v1004 = vunpack.c.l.b16 %v249
      %v1005 = vunpack.c.l.b16 %v250
      %v1006 = vunpack.c.l.b16 %v251
      %v1007 = vunpack.c.l.b16 %v252
      %v1008 = vunpack.c.l.b16 %v253
      %v1009 = vunpack.c.l.b16 %v254
      %v1010 = vunpack.c.l.b16 %v255
      %v1011 = vunpack.c.l.b16 %v256
      %v1012 = vunpack.c.l.b16 %v257
      %v1013 = vunpack.c.l.b16 %v258
      %v1014 = vunpack.c.l.b16 %v259
      %v1015 = vunpack.c.l.b16 %v260
      %v1016 = vunpack.c.l.b16 %v261
      %v1017 = vunpack.c.l.b16 %v262
      %v1018 = vunpack.c.l.b16 %v263
      %v1019 = vunpack.c.l.b16 %v264
      %v1020 = vunpack.c.l.b16 %v265
      %v1021 = vunpack.c.l.b16 %v266
      %v1022 = vunpack.c.l.b16 %v267
      %v1023 = vpack.c.b16 %v992, %v991
      %v1024 = vpack.c.b16 %v994, %v993
      %v1025 = vpack.c.b16 %v996, %v995
      %v1026 = vpack.c.b16 %v998, %v997
      %v1027 = vpack.c.b16 %v1000, %v999
      %v1028 = vpack.c.b16 %v1002, %v1001
      %v1029 = vpack.c.b16 %v1004, %v1003
      %v1030 = vpack.c.b16 %v1006, %v1005
      %v1031 = vpack.c.b16 %v1008, %v1007
      %v1032 = vpack.c.b16 %v1010, %v1009
      %v1033 = vpack.c.b16 %v1012, %v1011
      %v1034 = vpack.c.b16 %v1014, %v1013
      %v1035 = vpack.c.b16 %v1016, %v1015
      %v1036 = vpack.c.b16 %v1018, %v1017
      %v1037 = vpack.c.b16 %v1020, %v1019
      %v1038 = vpack.c.b16 %v1022, %v1021
      %v1044 = vunpack.c.l.b16 %v268
      %v1045 = vunpack.c.l.b16 %v269
      %v1046 = vunpack.c.l.b16 %v270
      %v1047 = vunpack.c.l.b16 %v271
      %v1048 = vunpack.c.l.b16 %v272
      %v1049 = vpack.c.b16 %v1045, %v1044
      %v1050 = vpack.c.b16 %v1047, %v1046
      %v1051 = vpack.c.b16 %v1048, %v1048
      %v1055 = vsel %vm745, %v1023, 0
      %v1058 = vsel %vm745, %v1024, 0
      %v1061 = vsel %vm745, %v1025, 0
      %v1064 = vsel %vm745, %v1026, 0
      %v1067 = vsel %vm745, %v1027, 0
      %v1070 = vsel %vm745, %v1028, 0
      %v1073 = vsel %vm745, %v1029, 0
      %v1076 = vsel %vm745, %v1030, 0
      %v1079 = vsel %vm745, %v1031, 0
      %v1082 = vsel %vm745, %v1032, 0
      %v1085 = vsel %vm745, %v1033, 0
      %v1088 = vsel %vm745, %v1034, 0
      %v1091 = vsel %vm745, %v1035, 0
      %v1094 = vsel %vm745, %v1036, 0
      %v1097 = vsel %vm745, %v1037, 0
      %v1100 = vsel %vm745, %v1038, 0
      %v1103 = vsel %vm794, %v1051, 0
      %1105 = vmatprep.subr.bf16.mxu0 0
      %1106 = vmatpush1.bf16.msra.mxu0 %v1049
      %1107 = vmatprep.subr.bf16.mxu0 0
      %1108 = vmatpush1.bf16.msra.mxu0 %v1050
      %1109 = vmatprep.subr.bf16.mxu0 0
      %1110 = vmatpush1.bf16.msra.mxu0 %v1103
      %1111 = vmatprep.subr.bf16.mxu0 0
      %1112 = vmatpush1.bf16.msra.mxu0 0
      %1113 = vmatprep.subr.bf16.mxu0 0
      %1114 = vmatpush1.bf16.msra.mxu0 0
      %1115 = vmatprep.subr.bf16.mxu0 0
      %1116 = vmatpush1.bf16.msra.mxu0 0
      %1117 = vmatprep.subr.bf16.mxu0 0
      %1118 = vmatpush1.bf16.msra.mxu0 0
      %1119 = vmatprep.subr.bf16.mxu0 0
      %1120 = vmatpush1.bf16.msra.mxu0 0
      %1121 = vmatprep.subr.bf16.mxu0 0
      %1122 = vmatpush1.bf16.msra.mxu0 0
      %1123 = vmatprep.subr.bf16.mxu0 0
      %1124 = vmatpush1.bf16.msra.mxu0 0
      %1125 = vmatprep.subr.bf16.mxu0 0
      %1126 = vmatpush1.bf16.msra.mxu0 0
      %1127 = vmatprep.subr.bf16.mxu0 0
      %1128 = vmatpush1.bf16.msra.mxu0 0
      %1129 = vmatprep.subr.bf16.mxu0 0
      %1130 = vmatpush1.bf16.msra.mxu0 0
      %1131 = vmatprep.subr.bf16.mxu0 0
      %1132 = vmatpush1.bf16.msra.mxu0 0
      %1133 = vmatprep.subr.bf16.mxu0 0
      %1134 = vmatpush1.bf16.msra.mxu0 0
      %1135 = vmatprep.subr.bf16.mxu0 0
      %1136 = vmatpush1.bf16.msra.mxu0 0
      %1137 = vmatprep.mubr.bf16.mxu0 0
      %1138 = vmatmul.mubr.bf16.gmra.mrb[0].mxu0 %v1055
      %v1139 = vpop.f32.mrb[0].mxu0
      %v1140 = vadd.f32 %v833, %v1139
      %v1141 = vpop.f32.mrb[0].mxu0
      %v1142 = vpop.f32.mrb[0].mxu0
      %v1143 = vadd.f32 %v836, %v1142
      %v1144 = vpop.f32.mrb[0].mxu0
      %1145 = vmatprep.mubr.bf16.mxu0 0
      %1146 = vmatmul.mubr.bf16.gmra.mrb[0].mxu0 %v1058
      %v1147 = vpop.f32.mrb[0].mxu0
      %v1148 = vadd.f32 %v841, %v1147
      %v1149 = vpop.f32.mrb[0].mxu0
      %v1150 = vpop.f32.mrb[0].mxu0
      %v1151 = vadd.f32 %v844, %v1150
      %v1152 = vpop.f32.mrb[0].mxu0
      %1153 = vmatprep.mubr.bf16.mxu0 0
      %1154 = vmatmul.mubr.bf16.gmra.mrb[0].mxu0 %v1061
      %v1155 = vpop.f32.mrb[0].mxu0
      %v1156 = vadd.f32 %v849, %v1155
      %v1157 = vpop.f32.mrb[0].mxu0
      %v1158 = vpop.f32.mrb[0].mxu0
      %v1159 = vadd.f32 %v852, %v1158
      %v1160 = vpop.f32.mrb[0].mxu0
      %1161 = vmatprep.mubr.bf16.mxu0 0
      %1162 = vmatmul.mubr.bf16.gmra.mrb[0].mxu0 %v1064
      %v1163 = vpop.f32.mrb[0].mxu0
      %v1164 = vadd.f32 %v857, %v1163
      %v1165 = vpop.f32.mrb[0].mxu0
      %v1166 = vpop.f32.mrb[0].mxu0
      %v1167 = vadd.f32 %v860, %v1166
      %v1168 = vpop.f32.mrb[0].mxu0
      %1169 = vmatprep.mubr.bf16.mxu0 0
      %1170 = vmatmul.mubr.bf16.gmra.mrb[0].mxu0 %v1067
      %v1171 = vpop.f32.mrb[0].mxu0
      %v1172 = vadd.f32 %v865, %v1171
      %v1173 = vpop.f32.mrb[0].mxu0
      %v1174 = vpop.f32.mrb[0].mxu0
      %v1175 = vadd.f32 %v868, %v1174
      %v1176 = vpop.f32.mrb[0].mxu0
      %1177 = vmatprep.mubr.bf16.mxu0 0
      %1178 = vmatmul.mubr.bf16.gmra.mrb[0].mxu0 %v1070
      %v1179 = vpop.f32.mrb[0].mxu0
      %v1180 = vadd.f32 %v873, %v1179
      %v1181 = vpop.f32.mrb[0].mxu0
      %v1182 = vpop.f32.mrb[0].mxu0
      %v1183 = vadd.f32 %v876, %v1182
      %v1184 = vpop.f32.mrb[0].mxu0
      %1185 = vmatprep.mubr.bf16.mxu0 0
      %1186 = vmatmul.mubr.bf16.gmra.mrb[0].mxu0 %v1073
      %v1187 = vpop.f32.mrb[0].mxu0
      %v1188 = vadd.f32 %v881, %v1187
      %v1189 = vpop.f32.mrb[0].mxu0
      %v1190 = vpop.f32.mrb[0].mxu0
      %v1191 = vadd.f32 %v884, %v1190
      %v1192 = vpop.f32.mrb[0].mxu0
      %1193 = vmatprep.mubr.bf16.mxu0 0
      %1194 = vmatmul.mubr.bf16.gmra.mrb[0].mxu0 %v1076
      %v1195 = vpop.f32.mrb[0].mxu0
      %v1196 = vadd.f32 %v889, %v1195
      %v1197 = vpop.f32.mrb[0].mxu0
      %v1198 = vpop.f32.mrb[0].mxu0
      %v1199 = vadd.f32 %v892, %v1198
      %v1200 = vpop.f32.mrb[0].mxu0
      %1201 = vmatprep.mubr.bf16.mxu0 0
      %1202 = vmatmul.mubr.bf16.gmra.mrb[0].mxu0 %v1079
      %v1203 = vpop.f32.mrb[0].mxu0
      %v1204 = vadd.f32 %v897, %v1203
      %v1205 = vpop.f32.mrb[0].mxu0
      %v1206 = vpop.f32.mrb[0].mxu0
      %v1207 = vadd.f32 %v900, %v1206
      %v1208 = vpop.f32.mrb[0].mxu0
      %1209 = vmatprep.mubr.bf16.mxu0 0
      %1210 = vmatmul.mubr.bf16.gmra.mrb[0].mxu0 %v1082
      %v1211 = vpop.f32.mrb[0].mxu0
      %v1212 = vadd.f32 %v905, %v1211
      %v1213 = vpop.f32.mrb[0].mxu0
      %v1214 = vpop.f32.mrb[0].mxu0
      %v1215 = vadd.f32 %v908, %v1214
      %v1216 = vpop.f32.mrb[0].mxu0
      %1217 = vmatprep.mubr.bf16.mxu0 0
      %1218 = vmatmul.mubr.bf16.gmra.mrb[0].mxu0 %v1085
      %v1219 = vpop.f32.mrb[0].mxu0
      %v1220 = vadd.f32 %v913, %v1219
      %v1221 = vpop.f32.mrb[0].mxu0
      %v1222 = vpop.f32.mrb[0].mxu0
      %v1223 = vadd.f32 %v916, %v1222
      %v1224 = vpop.f32.mrb[0].mxu0
      %1225 = vmatprep.mubr.bf16.mxu0 0
      %1226 = vmatmul.mubr.bf16.gmra.mrb[0].mxu0 %v1088
      %v1227 = vpop.f32.mrb[0].mxu0
      %v1228 = vadd.f32 %v921, %v1227
      %v1229 = vpop.f32.mrb[0].mxu0
      %v1230 = vpop.f32.mrb[0].mxu0
      %v1231 = vadd.f32 %v924, %v1230
      %v1232 = vpop.f32.mrb[0].mxu0
      %1233 = vmatprep.mubr.bf16.mxu0 0
      %1234 = vmatmul.mubr.bf16.gmra.mrb[0].mxu0 %v1091
      %v1235 = vpop.f32.mrb[0].mxu0
      %v1236 = vadd.f32 %v929, %v1235
      %v1237 = vpop.f32.mrb[0].mxu0
      %v1238 = vpop.f32.mrb[0].mxu0
      %v1239 = vadd.f32 %v932, %v1238
      %v1240 = vpop.f32.mrb[0].mxu0
      %1241 = vmatprep.mubr.bf16.mxu0 0
      %1242 = vmatmul.mubr.bf16.gmra.mrb[0].mxu0 %v1094
      %v1243 = vpop.f32.mrb[0].mxu0
      %v1244 = vadd.f32 %v937, %v1243
      %v1245 = vpop.f32.mrb[0].mxu0
      %v1246 = vpop.f32.mrb[0].mxu0
      %v1247 = vadd.f32 %v940, %v1246
      %v1248 = vpop.f32.mrb[0].mxu0
      %1249 = vmatprep.mubr.bf16.mxu0 0
      %1250 = vmatmul.mubr.bf16.gmra.mrb[0].mxu0 %v1097
      %v1251 = vpop.f32.mrb[0].mxu0
      %v1252 = vadd.f32 %v945, %v1251
      %v1253 = vpop.f32.mrb[0].mxu0
      %v1254 = vpop.f32.mrb[0].mxu0
      %v1255 = vadd.f32 %v948, %v1254
      %v1256 = vpop.f32.mrb[0].mxu0
      %1257 = vmatprep.mubr.bf16.mxu0 0
      %1258 = vmatmul.mubr.bf16.gmra.mrb[0].mxu0 %v1100
      %v1259 = vpop.f32.mrb[0].mxu0
      %v1260 = vadd.f32 %v953, %v1259
      %v1261 = vpop.f32.mrb[0].mxu0
      %v1262 = vpop.f32.mrb[0].mxu0
      %v1263 = vadd.f32 %v956, %v1262
      %v1264 = vpop.f32.mrb[0].mxu0
      %1265 = vdwg.mxu0
      %v1266 = vld [vmem:[%s216] sm:$0xe]
      %v1267 = vld [vmem:[%s216 + $0xc] sm:$0xe]
      %v1268 = vld [vmem:[%s216 + $0x18] sm:$0xe]
      %v1269 = vld [vmem:[%s216 + $0x24] sm:$0xe]
      %v1270 = vld [vmem:[%s216 + $0x30] sm:$0xe]
      %v1271 = vld [vmem:[%s216 + $0x3c] sm:$0xe]
      %v1272 = vld [vmem:[%s216 + $0x48] sm:$0xe]
      %v1273 = vld [vmem:[%s216 + $0x54] sm:$0xe]
      %v1274 = vld [vmem:[%s216 + $0x60] sm:$0xe]
      %v1275 = vld [vmem:[%s216 + $0x6c] sm:$0xe]
      %v1276 = vld [vmem:[%s216 + $0x78] sm:$0xe]
      %v1277 = vld [vmem:[%s216 + $0x84] sm:$0xe]
      %v1278 = vld [vmem:[%s216 + $0x90] sm:$0xe]
      %v1279 = vld [vmem:[%s216 + $0x9c] sm:$0xe]
      %v1280 = vld [vmem:[%s216 + $0xa8] sm:$0xe]
      %v1281 = vld [vmem:[%s216 + $0xb4] sm:$0xe]
      %vm1314 = vcmask 1042432
      %vm1315 = vcmask 1046532
      %vm1316 = vmor %vm1314, %vm1315
      %v1317 = vrot.slane %v1266, 5
      %v1318 = vrot.slane %v1317, 4
      %v1319 = vrot.slane %v237, 5
      %v1320 = vsel %vm1316, %v1318, %v1319
      %v1321 = vrot.slane %v1319, 4
      %v1322 = vrot.slane %v273, 5
      %v1323 = vsel %vm1316, %v1321, %v1322
      %v1324 = vrot.slane %v1267, 5
      %v1325 = vrot.slane %v1324, 4
      %v1326 = vrot.slane %v239, 5
      %v1327 = vsel %vm1316, %v1325, %v1326
      %v1328 = vrot.slane %v1326, 4
      %v1329 = vrot.slane %v274, 5
      %v1330 = vsel %vm1316, %v1328, %v1329
      %v1331 = vrot.slane %v1268, 5
      %v1332 = vrot.slane %v1331, 4
      %v1333 = vrot.slane %v241, 5
      %v1334 = vsel %vm1316, %v1332, %v1333
      %v1335 = vrot.slane %v1333, 4
      %v1336 = vrot.slane %v275, 5
      %v1337 = vsel %vm1316, %v1335, %v1336
      %v1338 = vrot.slane %v1269, 5
      %v1339 = vrot.slane %v1338, 4
      %v1340 = vrot.slane %v243, 5
      %v1341 = vsel %vm1316, %v1339, %v1340
      %v1342 = vrot.slane %v1340, 4
      %v1343 = vrot.slane %v276, 5
      %v1344 = vsel %vm1316, %v1342, %v1343
      %v1345 = vrot.slane %v1270, 5
      %v1346 = vrot.slane %v1345, 4
      %v1347 = vrot.slane %v245, 5
      %v1348 = vsel %vm1316, %v1346, %v1347
      %v1349 = vrot.slane %v1347, 4
      %v1350 = vrot.slane %v277, 5
      %v1351 = vsel %vm1316, %v1349, %v1350
      %v1352 = vrot.slane %v1271, 5
      %v1353 = vrot.slane %v1352, 4
      %v1354 = vrot.slane %v247, 5
      %v1355 = vsel %vm1316, %v1353, %v1354
      %v1356 = vrot.slane %v1354, 4
      %v1357 = vrot.slane %v278, 5
      %v1358 = vsel %vm1316, %v1356, %v1357
      %v1359 = vrot.slane %v1272, 5
      %v1360 = vrot.slane %v1359, 4
      %v1361 = vrot.slane %v249, 5
      %v1362 = vsel %vm1316, %v1360, %v1361
      %v1363 = vrot.slane %v1361, 4
      %v1364 = vrot.slane %v279, 5
      %v1365 = vsel %vm1316, %v1363, %v1364
      %v1366 = vrot.slane %v1273, 5
      %v1367 = vrot.slane %v1366, 4
      %v1368 = vrot.slane %v251, 5
      %v1369 = vsel %vm1316, %v1367, %v1368
      %v1370 = vrot.slane %v1368, 4
      %v1371 = vrot.slane %v280, 5
      %v1372 = vsel %vm1316, %v1370, %v1371
      %v1373 = vrot.slane %v1274, 5
      %v1374 = vrot.slane %v1373, 4
      %v1375 = vrot.slane %v253, 5
      %v1376 = vsel %vm1316, %v1374, %v1375
      %v1377 = vrot.slane %v1375, 4
      %v1378 = vrot.slane %v281, 5
      %v1379 = vsel %vm1316, %v1377, %v1378
      %v1380 = vrot.slane %v1275, 5
      %v1381 = vrot.slane %v1380, 4
      %v1382 = vrot.slane %v255, 5
      %v1383 = vsel %vm1316, %v1381, %v1382
      %v1384 = vrot.slane %v1382, 4
      %v1385 = vrot.slane %v282, 5
      %v1386 = vsel %vm1316, %v1384, %v1385
      %v1387 = vrot.slane %v1276, 5
      %v1388 = vrot.slane %v1387, 4
      %v1389 = vrot.slane %v257, 5
      %v1390 = vsel %vm1316, %v1388, %v1389
      %v1391 = vrot.slane %v1389, 4
      %v1392 = vrot.slane %v283, 5
      %v1393 = vsel %vm1316, %v1391, %v1392
      %v1394 = vrot.slane %v1277, 5
      %v1395 = vrot.slane %v1394, 4
      %v1396 = vrot.slane %v259, 5
      %v1397 = vsel %vm1316, %v1395, %v1396
      %v1398 = vrot.slane %v1396, 4
      %v1399 = vrot.slane %v284, 5
      %v1400 = vsel %vm1316, %v1398, %v1399
      %v1401 = vrot.slane %v1278, 5
      %v1402 = vrot.slane %v1401, 4
      %v1403 = vrot.slane %v261, 5
      %v1404 = vsel %vm1316, %v1402, %v1403
      %v1405 = vrot.slane %v1403, 4
      %v1406 = vrot.slane %v285, 5
      %v1407 = vsel %vm1316, %v1405, %v1406
      %v1408 = vrot.slane %v1279, 5
      %v1409 = vrot.slane %v1408, 4
      %v1410 = vrot.slane %v263, 5
      %v1411 = vsel %vm1316, %v1409, %v1410
      %v1412 = vrot.slane %v1410, 4
      %v1413 = vrot.slane %v286, 5
      %v1414 = vsel %vm1316, %v1412, %v1413
      %v1415 = vrot.slane %v1280, 5
      %v1416 = vrot.slane %v1415, 4
      %v1417 = vrot.slane %v265, 5
      %v1418 = vsel %vm1316, %v1416, %v1417
      %v1419 = vrot.slane %v1417, 4
      %v1420 = vrot.slane %v287, 5
      %v1421 = vsel %vm1316, %v1419, %v1420
      %v1422 = vrot.slane %v1281, 5
      %v1423 = vrot.slane %v1422, 4
      %v1424 = vrot.slane %v267, 5
      %v1425 = vsel %vm1316, %v1423, %v1424
      %v1426 = vrot.slane %v1424, 4
      %v1427 = vrot.slane %v288, 5
      %v1428 = vsel %vm1316, %v1426, %v1427
      %s1429 = scalar_lea.vmem %s1, 40
      %v1430 = vld [vmem:[%s1429] sm:$0xf]
      %v1431 = vld [vmem:[%s1429 + $0x4] sm:$0xf]
      %v1432 = vld [vmem:[%s1429 + $0x8] sm:$0xf]
      %v1433 = vld [vmem:[%s1429 + $0xc] sm:$0xf]
      %v1434 = vld [vmem:[%s1429 + $0x10] sm:$0x3]
      %v1435 = vunpack.c.l.b16 %v1320
      %v1436 = vunpack.c.l.b16 %v1323
      %v1437 = vunpack.c.l.b16 %v1327
      %v1438 = vunpack.c.l.b16 %v1330
      %v1439 = vunpack.c.l.b16 %v1334
      %v1440 = vunpack.c.l.b16 %v1337
      %v1441 = vunpack.c.l.b16 %v1341
      %v1442 = vunpack.c.l.b16 %v1344
      %v1443 = vunpack.c.l.b16 %v1348
      %v1444 = vunpack.c.l.b16 %v1351
      %v1445 = vunpack.c.l.b16 %v1355
      %v1446 = vunpack.c.l.b16 %v1358
      %v1447 = vunpack.c.l.b16 %v1362
      %v1448 = vunpack.c.l.b16 %v1365
      %v1449 = vunpack.c.l.b16 %v1369
      %v1450 = vunpack.c.l.b16 %v1372
      %v1451 = vunpack.c.l.b16 %v1376
      %v1452 = vunpack.c.l.b16 %v1379
      %v1453 = vunpack.c.l.b16 %v1383
      %v1454 = vunpack.c.l.b16 %v1386
      %v1455 = vunpack.c.l.b16 %v1390
      %v1456 = vunpack.c.l.b16 %v1393
      %v1457 = vunpack.c.l.b16 %v1397
      %v1458 = vunpack.c.l.b16 %v1400
      %v1459 = vunpack.c.l.b16 %v1404
      %v1460 = vunpack.c.l.b16 %v1407
      %v1461 = vunpack.c.l.b16 %v1411
      %v1462 = vunpack.c.l.b16 %v1414
      %v1463 = vunpack.c.l.b16 %v1418
      %v1464 = vunpack.c.l.b16 %v1421
      %v1465 = vunpack.c.l.b16 %v1425
      %v1466 = vunpack.c.l.b16 %v1428
      %v1467 = vpack.c.b16 %v1436, %v1435
      %v1468 = vpack.c.b16 %v1438, %v1437
      %v1469 = vpack.c.b16 %v1440, %v1439
      %v1470 = vpack.c.b16 %v1442, %v1441
      %v1471 = vpack.c.b16 %v1444, %v1443
      %v1472 = vpack.c.b16 %v1446, %v1445
      %v1473 = vpack.c.b16 %v1448, %v1447
      %v1474 = vpack.c.b16 %v1450, %v1449
      %v1475 = vpack.c.b16 %v1452, %v1451
      %v1476 = vpack.c.b16 %v1454, %v1453
      %v1477 = vpack.c.b16 %v1456, %v1455
      %v1478 = vpack.c.b16 %v1458, %v1457
      %v1479 = vpack.c.b16 %v1460, %v1459
      %v1480 = vpack.c.b16 %v1462, %v1461
      %v1481 = vpack.c.b16 %v1464, %v1463
      %v1482 = vpack.c.b16 %v1466, %v1465
      %v1488 = vunpack.c.l.b16 %v1430
      %v1489 = vunpack.c.l.b16 %v1431
      %v1490 = vunpack.c.l.b16 %v1432
      %v1491 = vunpack.c.l.b16 %v1433
      %v1492 = vunpack.c.l.b16 %v1434
      %v1493 = vpack.c.b16 %v1489, %v1488
      %v1494 = vpack.c.b16 %v1491, %v1490
      %v1495 = vpack.c.b16 %v1492, %v1492
      %v1499 = vsel %vm745, %v1467, 0
      %v1502 = vsel %vm745, %v1468, 0
      %v1505 = vsel %vm745, %v1469, 0
      %v1508 = vsel %vm745, %v1470, 0
      %v1511 = vsel %vm745, %v1471, 0
      %v1514 = vsel %vm745, %v1472, 0
      %v1517 = vsel %vm745, %v1473, 0
      %v1520 = vsel %vm745, %v1474, 0
      %v1523 = vsel %vm745, %v1475, 0
      %v1526 = vsel %vm745, %v1476, 0
      %v1529 = vsel %vm745, %v1477, 0
      %v1532 = vsel %vm745, %v1478, 0
      %v1535 = vsel %vm745, %v1479, 0
      %v1538 = vsel %vm745, %v1480, 0
      %v1541 = vsel %vm745, %v1481, 0
      %v1544 = vsel %vm745, %v1482, 0
      %v1547 = vsel %vm794, %v1495, 0
      %1549 = vmatprep.subr.bf16.mxu0 0
      %1550 = vmatpush1.bf16.msra.mxu0 %v1493
      %1551 = vmatprep.subr.bf16.mxu0 0
      %1552 = vmatpush1.bf16.msra.mxu0 %v1494
      %1553 = vmatprep.subr.bf16.mxu0 0
      %1554 = vmatpush1.bf16.msra.mxu0 %v1547
      %1555 = vmatprep.subr.bf16.mxu0 0
      %1556 = vmatpush1.bf16.msra.mxu0 0
      %1557 = vmatprep.subr.bf16.mxu0 0
      %1558 = vmatpush1.bf16.msra.mxu0 0
      %1559 = vmatprep.subr.bf16.mxu0 0
      %1560 = vmatpush1.bf16.msra.mxu0 0
      %1561 = vmatprep.subr.bf16.mxu0 0
      %1562 = vmatpush1.bf16.msra.mxu0 0
      %1563 = vmatprep.subr.bf16.mxu0 0
      %1564 = vmatpush1.bf16.msra.mxu0 0
      %1565 = vmatprep.subr.bf16.mxu0 0
      %1566 = vmatpush1.bf16.msra.mxu0 0
      %1567 = vmatprep.subr.bf16.mxu0 0
      %1568 = vmatpush1.bf16.msra.mxu0 0
      %1569 = vmatprep.subr.bf16.mxu0 0
      %1570 = vmatpush1.bf16.msra.mxu0 0
      %1571 = vmatprep.subr.bf16.mxu0 0
      %1572 = vmatpush1.bf16.msra.mxu0 0
      %1573 = vmatprep.subr.bf16.mxu0 0
      %1574 = vmatpush1.bf16.msra.mxu0 0
      %1575 = vmatprep.subr.bf16.mxu0 0
      %1576 = vmatpush1.bf16.msra.mxu0 0
      %1577 = vmatprep.subr.bf16.mxu0 0
      %1578 = vmatpush1.bf16.msra.mxu0 0
      %1579 = vmatprep.subr.bf16.mxu0 0
      %1580 = vmatpush1.bf16.msra.mxu0 0
      %1581 = vmatprep.mubr.bf16.mxu0 0
      %1582 = vmatmul.mubr.bf16.gmra.mrb[0].mxu0 %v1499
      %v1583 = vpop.f32.mrb[0].mxu0
      %v1584 = vadd.f32 0.0, %v1583
      %v1585 = vpop.f32.mrb[0].mxu0
      %v1586 = vpop.f32.mrb[0].mxu0
      %v1587 = vadd.f32 0.0, %v1586
      %v1588 = vpop.f32.mrb[0].mxu0
      %1589 = vmatprep.mubr.bf16.mxu0 0
      %1590 = vmatmul.mubr.bf16.gmra.mrb[0].mxu0 %v1502
      %v1591 = vpop.f32.mrb[0].mxu0
      %v1592 = vadd.f32 0.0, %v1591
      %v1593 = vpop.f32.mrb[0].mxu0
      %v1594 = vpop.f32.mrb[0].mxu0
      %v1595 = vadd.f32 0.0, %v1594
      %v1596 = vpop.f32.mrb[0].mxu0
      %1597 = vmatprep.mubr.bf16.mxu0 0
      %1598 = vmatmul.mubr.bf16.gmra.mrb[0].mxu0 %v1505
      %v1599 = vpop.f32.mrb[0].mxu0
      %v1600 = vadd.f32 0.0, %v1599
      %v1601 = vpop.f32.mrb[0].mxu0
      %v1602 = vpop.f32.mrb[0].mxu0
      %v1603 = vadd.f32 0.0, %v1602
      %v1604 = vpop.f32.mrb[0].mxu0
      %1605 = vmatprep.mubr.bf16.mxu0 0
      %1606 = vmatmul.mubr.bf16.gmra.mrb[0].mxu0 %v1508
      %v1607 = vpop.f32.mrb[0].mxu0
      %v1608 = vadd.f32 0.0, %v1607
      %v1609 = vpop.f32.mrb[0].mxu0
      %v1610 = vpop.f32.mrb[0].mxu0
      %v1611 = vadd.f32 0.0, %v1610
      %v1612 = vpop.f32.mrb[0].mxu0
      %1613 = vmatprep.mubr.bf16.mxu0 0
      %1614 = vmatmul.mubr.bf16.gmra.mrb[0].mxu0 %v1511
      %v1615 = vpop.f32.mrb[0].mxu0
      %v1616 = vadd.f32 0.0, %v1615
      %v1617 = vpop.f32.mrb[0].mxu0
      %v1618 = vpop.f32.mrb[0].mxu0
      %v1619 = vadd.f32 0.0, %v1618
      %v1620 = vpop.f32.mrb[0].mxu0
      %1621 = vmatprep.mubr.bf16.mxu0 0
      %1622 = vmatmul.mubr.bf16.gmra.mrb[0].mxu0 %v1514
      %v1623 = vpop.f32.mrb[0].mxu0
      %v1624 = vadd.f32 0.0, %v1623
      %v1625 = vpop.f32.mrb[0].mxu0
      %v1626 = vpop.f32.mrb[0].mxu0
      %v1627 = vadd.f32 0.0, %v1626
      %v1628 = vpop.f32.mrb[0].mxu0
      %1629 = vmatprep.mubr.bf16.mxu0 0
      %1630 = vmatmul.mubr.bf16.gmra.mrb[0].mxu0 %v1517
      %v1631 = vpop.f32.mrb[0].mxu0
      %v1632 = vadd.f32 0.0, %v1631
      %v1633 = vpop.f32.mrb[0].mxu0
      %v1634 = vpop.f32.mrb[0].mxu0
      %v1635 = vadd.f32 0.0, %v1634
      %v1636 = vpop.f32.mrb[0].mxu0
      %1637 = vmatprep.mubr.bf16.mxu0 0
      %1638 = vmatmul.mubr.bf16.gmra.mrb[0].mxu0 %v1520
      %v1639 = vpop.f32.mrb[0].mxu0
      %v1640 = vadd.f32 0.0, %v1639
      %v1641 = vpop.f32.mrb[0].mxu0
      %v1642 = vpop.f32.mrb[0].mxu0
      %v1643 = vadd.f32 0.0, %v1642
      %v1644 = vpop.f32.mrb[0].mxu0
      %1645 = vmatprep.mubr.bf16.mxu0 0
      %1646 = vmatmul.mubr.bf16.gmra.mrb[0].mxu0 %v1523
      %v1647 = vpop.f32.mrb[0].mxu0
      %v1648 = vadd.f32 0.0, %v1647
      %v1649 = vpop.f32.mrb[0].mxu0
      %v1650 = vpop.f32.mrb[0].mxu0
      %v1651 = vadd.f32 0.0, %v1650
      %v1652 = vpop.f32.mrb[0].mxu0
      %1653 = vmatprep.mubr.bf16.mxu0 0
      %1654 = vmatmul.mubr.bf16.gmra.mrb[0].mxu0 %v1526
      %v1655 = vpop.f32.mrb[0].mxu0
      %v1656 = vadd.f32 0.0, %v1655
      %v1657 = vpop.f32.mrb[0].mxu0
      %v1658 = vpop.f32.mrb[0].mxu0
      %v1659 = vadd.f32 0.0, %v1658
      %v1660 = vpop.f32.mrb[0].mxu0
      %1661 = vmatprep.mubr.bf16.mxu0 0
      %1662 = vmatmul.mubr.bf16.gmra.mrb[0].mxu0 %v1529
      %v1663 = vpop.f32.mrb[0].mxu0
      %v1664 = vadd.f32 0.0, %v1663
      %v1665 = vpop.f32.mrb[0].mxu0
      %v1666 = vpop.f32.mrb[0].mxu0
      %v1667 = vadd.f32 0.0, %v1666
      %v1668 = vpop.f32.mrb[0].mxu0
      %1669 = vmatprep.mubr.bf16.mxu0 0
      %1670 = vmatmul.mubr.bf16.gmra.mrb[0].mxu0 %v1532
      %v1671 = vpop.f32.mrb[0].mxu0
      %v1672 = vadd.f32 0.0, %v1671
      %v1673 = vpop.f32.mrb[0].mxu0
      %v1674 = vpop.f32.mrb[0].mxu0
      %v1675 = vadd.f32 0.0, %v1674
      %v1676 = vpop.f32.mrb[0].mxu0
      %1677 = vmatprep.mubr.bf16.mxu0 0
      %1678 = vmatmul.mubr.bf16.gmra.mrb[0].mxu0 %v1535
      %v1679 = vpop.f32.mrb[0].mxu0
      %v1680 = vadd.f32 0.0, %v1679
      %v1681 = vpop.f32.mrb[0].mxu0
      %v1682 = vpop.f32.mrb[0].mxu0
      %v1683 = vadd.f32 0.0, %v1682
      %v1684 = vpop.f32.mrb[0].mxu0
      %1685 = vmatprep.mubr.bf16.mxu0 0
      %1686 = vmatmul.mubr.bf16.gmra.mrb[0].mxu0 %v1538
      %v1687 = vpop.f32.mrb[0].mxu0
      %v1688 = vadd.f32 0.0, %v1687
      %v1689 = vpop.f32.mrb[0].mxu0
      %v1690 = vpop.f32.mrb[0].mxu0
      %v1691 = vadd.f32 0.0, %v1690
      %v1692 = vpop.f32.mrb[0].mxu0
      %1693 = vmatprep.mubr.bf16.mxu0 0
      %1694 = vmatmul.mubr.bf16.gmra.mrb[0].mxu0 %v1541
      %v1695 = vpop.f32.mrb[0].mxu0
      %v1696 = vadd.f32 0.0, %v1695
      %v1697 = vpop.f32.mrb[0].mxu0
      %v1698 = vpop.f32.mrb[0].mxu0
      %v1699 = vadd.f32 0.0, %v1698
      %v1700 = vpop.f32.mrb[0].mxu0
      %1701 = vmatprep.mubr.bf16.mxu0 0
      %1702 = vmatmul.mubr.bf16.gmra.mrb[0].mxu0 %v1544
      %v1703 = vpop.f32.mrb[0].mxu0
      %v1704 = vadd.f32 0.0, %v1703
      %v1705 = vpop.f32.mrb[0].mxu0
      %v1706 = vpop.f32.mrb[0].mxu0
      %v1707 = vadd.f32 0.0, %v1706
      %v1708 = vpop.f32.mrb[0].mxu0
      %1709 = vdwg.mxu0
      %v1710 = vadd.f32 %v1140, %v1584
      %v1711 = vadd.f32 %v1143, %v1587
      %v1712 = vadd.f32 %v1148, %v1592
      %v1713 = vadd.f32 %v1151, %v1595
      %v1714 = vadd.f32 %v1156, %v1600
      %v1715 = vadd.f32 %v1159, %v1603
      %v1716 = vadd.f32 %v1164, %v1608
      %v1717 = vadd.f32 %v1167, %v1611
      %v1718 = vadd.f32 %v1172, %v1616
      %v1719 = vadd.f32 %v1175, %v1619
      %v1720 = vadd.f32 %v1180, %v1624
      %v1721 = vadd.f32 %v1183, %v1627
      %v1722 = vadd.f32 %v1188, %v1632
      %v1723 = vadd.f32 %v1191, %v1635
      %v1724 = vadd.f32 %v1196, %v1640
      %v1725 = vadd.f32 %v1199, %v1643
      %v1726 = vadd.f32 %v1204, %v1648
      %v1727 = vadd.f32 %v1207, %v1651
      %v1728 = vadd.f32 %v1212, %v1656
      %v1729 = vadd.f32 %v1215, %v1659
      %v1730 = vadd.f32 %v1220, %v1664
      %v1731 = vadd.f32 %v1223, %v1667
      %v1732 = vadd.f32 %v1228, %v1672
      %v1733 = vadd.f32 %v1231, %v1675
      %v1734 = vadd.f32 %v1236, %v1680
      %v1735 = vadd.f32 %v1239, %v1683
      %v1736 = vadd.f32 %v1244, %v1688
      %v1737 = vadd.f32 %v1247, %v1691
      %v1738 = vadd.f32 %v1252, %v1696
      %v1739 = vadd.f32 %v1255, %v1699
      %v1740 = vadd.f32 %v1260, %v1704
      %v1741 = vadd.f32 %v1263, %v1707
      %s1742 = scalar_lea.vmem %s216, 12
      %v1743 = vld [vmem:[%s1742] sm:$0xf]
      %v1744 = vld [vmem:[%s1742 + $0x4] sm:$0xf]
      %v1745 = vld [vmem:[%s1742 + $0xc] sm:$0xf]
      %v1746 = vld [vmem:[%s1742 + $0x10] sm:$0xf]
      %v1747 = vld [vmem:[%s1742 + $0x18] sm:$0xf]
      %v1748 = vld [vmem:[%s1742 + $0x1c] sm:$0xf]
      %v1749 = vld [vmem:[%s1742 + $0x24] sm:$0xf]
      %v1750 = vld [vmem:[%s1742 + $0x28] sm:$0xf]
      %v1751 = vld [vmem:[%s1742 + $0x30] sm:$0xf]
      %v1752 = vld [vmem:[%s1742 + $0x34] sm:$0xf]
      %v1753 = vld [vmem:[%s1742 + $0x3c] sm:$0xf]
      %v1754 = vld [vmem:[%s1742 + $0x40] sm:$0xf]
      %v1755 = vld [vmem:[%s1742 + $0x48] sm:$0xf]
      %v1756 = vld [vmem:[%s1742 + $0x4c] sm:$0xf]
      %v1757 = vld [vmem:[%s1742 + $0x54] sm:$0xf]
      %v1758 = vld [vmem:[%s1742 + $0x58] sm:$0xf]
      %v1759 = vld [vmem:[%s1742 + $0x60] sm:$0xf]
      %v1760 = vld [vmem:[%s1742 + $0x64] sm:$0xf]
      %v1761 = vld [vmem:[%s1742 + $0x6c] sm:$0xf]
      %v1762 = vld [vmem:[%s1742 + $0x70] sm:$0xf]
      %v1763 = vld [vmem:[%s1742 + $0x78] sm:$0xf]
      %v1764 = vld [vmem:[%s1742 + $0x7c] sm:$0xf]
      %v1765 = vld [vmem:[%s1742 + $0x84] sm:$0xf]
      %v1766 = vld [vmem:[%s1742 + $0x88] sm:$0xf]
      %v1767 = vld [vmem:[%s1742 + $0x90] sm:$0xf]
      %v1768 = vld [vmem:[%s1742 + $0x94] sm:$0xf]
      %v1769 = vld [vmem:[%s1742 + $0x9c] sm:$0xf]
      %v1770 = vld [vmem:[%s1742 + $0xa0] sm:$0xf]
      %v1771 = vld [vmem:[%s1742 + $0xa8] sm:$0xf]
      %v1772 = vld [vmem:[%s1742 + $0xac] sm:$0xf]
      %v1773 = vld [vmem:[%s1742 + $0xb4] sm:$0xf]
      %v1774 = vld [vmem:[%s1742 + $0xb8] sm:$0xf]
      %s1775 = scalar_lea.vmem %s1, 60
      %v1776 = vld [vmem:[%s1775] sm:$0xf]
      %v1777 = vld [vmem:[%s1775 + $0x4] sm:$0xf]
      %v1778 = vld [vmem:[%s1775 + $0x8] sm:$0xf]
      %v1779 = vld [vmem:[%s1775 + $0xc] sm:$0xf]
      %v1780 = vld [vmem:[%s1775 + $0x10] sm:$0x3]
      %v1813 = vunpack.c.l.b16 %v1743
      %v1814 = vunpack.c.l.b16 %v1744
      %v1815 = vunpack.c.l.b16 %v1745
      %v1816 = vunpack.c.l.b16 %v1746
      %v1817 = vunpack.c.l.b16 %v1747
      %v1818 = vunpack.c.l.b16 %v1748
      %v1819 = vunpack.c.l.b16 %v1749
      %v1820 = vunpack.c.l.b16 %v1750
      %v1821 = vunpack.c.l.b16 %v1751
      %v1822 = vunpack.c.l.b16 %v1752
      %v1823 = vunpack.c.l.b16 %v1753
      %v1824 = vunpack.c.l.b16 %v1754
      %v1825 = vunpack.c.l.b16 %v1755
      %v1826 = vunpack.c.l.b16 %v1756
      %v1827 = vunpack.c.l.b16 %v1757
      %v1828 = vunpack.c.l.b16 %v1758
      %v1829 = vunpack.c.l.b16 %v1759
      %v1830 = vunpack.c.l.b16 %v1760
      %v1831 = vunpack.c.l.b16 %v1761
      %v1832 = vunpack.c.l.b16 %v1762
      %v1833 = vunpack.c.l.b16 %v1763
      %v1834 = vunpack.c.l.b16 %v1764
      %v1835 = vunpack.c.l.b16 %v1765
      %v1836 = vunpack.c.l.b16 %v1766
      %v1837 = vunpack.c.l.b16 %v1767
      %v1838 = vunpack.c.l.b16 %v1768
      %v1839 = vunpack.c.l.b16 %v1769
      %v1840 = vunpack.c.l.b16 %v1770
      %v1841 = vunpack.c.l.b16 %v1771
      %v1842 = vunpack.c.l.b16 %v1772
      %v1843 = vunpack.c.l.b16 %v1773
      %v1844 = vunpack.c.l.b16 %v1774
      %v1845 = vpack.c.b16 %v1814, %v1813
      %v1846 = vpack.c.b16 %v1816, %v1815
      %v1847 = vpack.c.b16 %v1818, %v1817
      %v1848 = vpack.c.b16 %v1820, %v1819
      %v1849 = vpack.c.b16 %v1822, %v1821
      %v1850 = vpack.c.b16 %v1824, %v1823
      %v1851 = vpack.c.b16 %v1826, %v1825
      %v1852 = vpack.c.b16 %v1828, %v1827
      %v1853 = vpack.c.b16 %v1830, %v1829
      %v1854 = vpack.c.b16 %v1832, %v1831
      %v1855 = vpack.c.b16 %v1834, %v1833
      %v1856 = vpack.c.b16 %v1836, %v1835
      %v1857 = vpack.c.b16 %v1838, %v1837
      %v1858 = vpack.c.b16 %v1840, %v1839
      %v1859 = vpack.c.b16 %v1842, %v1841
      %v1860 = vpack.c.b16 %v1844, %v1843
      %v1866 = vunpack.c.l.b16 %v1776
      %v1867 = vunpack.c.l.b16 %v1777
      %v1868 = vunpack.c.l.b16 %v1778
      %v1869 = vunpack.c.l.b16 %v1779
      %v1870 = vunpack.c.l.b16 %v1780
      %v1871 = vpack.c.b16 %v1867, %v1866
      %v1872 = vpack.c.b16 %v1869, %v1868
      %v1873 = vpack.c.b16 %v1870, %v1870
      %v1877 = vsel %vm745, %v1845, 0
      %v1880 = vsel %vm745, %v1846, 0
      %v1883 = vsel %vm745, %v1847, 0
      %v1886 = vsel %vm745, %v1848, 0
      %v1889 = vsel %vm745, %v1849, 0
      %v1892 = vsel %vm745, %v1850, 0
      %v1895 = vsel %vm745, %v1851, 0
      %v1898 = vsel %vm745, %v1852, 0
      %v1901 = vsel %vm745, %v1853, 0
      %v1904 = vsel %vm745, %v1854, 0
      %v1907 = vsel %vm745, %v1855, 0
      %v1910 = vsel %vm745, %v1856, 0
      %v1913 = vsel %vm745, %v1857, 0
      %v1916 = vsel %vm745, %v1858, 0
      %v1919 = vsel %vm745, %v1859, 0
      %v1922 = vsel %vm745, %v1860, 0
      %v1925 = vsel %vm794, %v1873, 0
      %1927 = vmatprep.subr.bf16.mxu0 0
      %1928 = vmatpush1.bf16.msra.mxu0 %v1871
      %1929 = vmatprep.subr.bf16.mxu0 0
      %1930 = vmatpush1.bf16.msra.mxu0 %v1872
      %1931 = vmatprep.subr.bf16.mxu0 0
      %1932 = vmatpush1.bf16.msra.mxu0 %v1925
      %1933 = vmatprep.subr.bf16.mxu0 0
      %1934 = vmatpush1.bf16.msra.mxu0 0
      %1935 = vmatprep.subr.bf16.mxu0 0
      %1936 = vmatpush1.bf16.msra.mxu0 0
      %1937 = vmatprep.subr.bf16.mxu0 0
      %1938 = vmatpush1.bf16.msra.mxu0 0
      %1939 = vmatprep.subr.bf16.mxu0 0
      %1940 = vmatpush1.bf16.msra.mxu0 0
      %1941 = vmatprep.subr.bf16.mxu0 0
      %1942 = vmatpush1.bf16.msra.mxu0 0
      %1943 = vmatprep.subr.bf16.mxu0 0
      %1944 = vmatpush1.bf16.msra.mxu0 0
      %1945 = vmatprep.subr.bf16.mxu0 0
      %1946 = vmatpush1.bf16.msra.mxu0 0
      %1947 = vmatprep.subr.bf16.mxu0 0
      %1948 = vmatpush1.bf16.msra.mxu0 0
      %1949 = vmatprep.subr.bf16.mxu0 0
      %1950 = vmatpush1.bf16.msra.mxu0 0
      %1951 = vmatprep.subr.bf16.mxu0 0
      %1952 = vmatpush1.bf16.msra.mxu0 0
      %1953 = vmatprep.subr.bf16.mxu0 0
      %1954 = vmatpush1.bf16.msra.mxu0 0
      %1955 = vmatprep.subr.bf16.mxu0 0
      %1956 = vmatpush1.bf16.msra.mxu0 0
      %1957 = vmatprep.subr.bf16.mxu0 0
      %1958 = vmatpush1.bf16.msra.mxu0 0
      %1959 = vmatprep.mubr.bf16.mxu0 0
      %1960 = vmatmul.mubr.bf16.gmra.mrb[0].mxu0 %v1877
      %v1961 = vpop.f32.mrb[0].mxu0
      %v1962 = vadd.f32 0.0, %v1961
      %v1963 = vpop.f32.mrb[0].mxu0
      %v1964 = vpop.f32.mrb[0].mxu0
      %v1965 = vadd.f32 0.0, %v1964
      %v1966 = vpop.f32.mrb[0].mxu0
      %1967 = vmatprep.mubr.bf16.mxu0 0
      %1968 = vmatmul.mubr.bf16.gmra.mrb[0].mxu0 %v1880
      %v1969 = vpop.f32.mrb[0].mxu0
      %v1970 = vadd.f32 0.0, %v1969
      %v1971 = vpop.f32.mrb[0].mxu0
      %v1972 = vpop.f32.mrb[0].mxu0
      %v1973 = vadd.f32 0.0, %v1972
      %v1974 = vpop.f32.mrb[0].mxu0
      %1975 = vmatprep.mubr.bf16.mxu0 0
      %1976 = vmatmul.mubr.bf16.gmra.mrb[0].mxu0 %v1883
      %v1977 = vpop.f32.mrb[0].mxu0
      %v1978 = vadd.f32 0.0, %v1977
      %v1979 = vpop.f32.mrb[0].mxu0
      %v1980 = vpop.f32.mrb[0].mxu0
      %v1981 = vadd.f32 0.0, %v1980
      %v1982 = vpop.f32.mrb[0].mxu0
      %1983 = vmatprep.mubr.bf16.mxu0 0
      %1984 = vmatmul.mubr.bf16.gmra.mrb[0].mxu0 %v1886
      %v1985 = vpop.f32.mrb[0].mxu0
      %v1986 = vadd.f32 0.0, %v1985
      %v1987 = vpop.f32.mrb[0].mxu0
      %v1988 = vpop.f32.mrb[0].mxu0
      %v1989 = vadd.f32 0.0, %v1988
      %v1990 = vpop.f32.mrb[0].mxu0
      %1991 = vmatprep.mubr.bf16.mxu0 0
      %1992 = vmatmul.mubr.bf16.gmra.mrb[0].mxu0 %v1889
      %v1993 = vpop.f32.mrb[0].mxu0
      %v1994 = vadd.f32 0.0, %v1993
      %v1995 = vpop.f32.mrb[0].mxu0
      %v1996 = vpop.f32.mrb[0].mxu0
      %v1997 = vadd.f32 0.0, %v1996
      %v1998 = vpop.f32.mrb[0].mxu0
      %1999 = vmatprep.mubr.bf16.mxu0 0
      %2000 = vmatmul.mubr.bf16.gmra.mrb[0].mxu0 %v1892
      %v2001 = vpop.f32.mrb[0].mxu0
      %v2002 = vadd.f32 0.0, %v2001
      %v2003 = vpop.f32.mrb[0].mxu0
      %v2004 = vpop.f32.mrb[0].mxu0
      %v2005 = vadd.f32 0.0, %v2004
      %v2006 = vpop.f32.mrb[0].mxu0
      %2007 = vmatprep.mubr.bf16.mxu0 0
      %2008 = vmatmul.mubr.bf16.gmra.mrb[0].mxu0 %v1895
      %v2009 = vpop.f32.mrb[0].mxu0
      %v2010 = vadd.f32 0.0, %v2009
      %v2011 = vpop.f32.mrb[0].mxu0
      %v2012 = vpop.f32.mrb[0].mxu0
      %v2013 = vadd.f32 0.0, %v2012
      %v2014 = vpop.f32.mrb[0].mxu0
      %2015 = vmatprep.mubr.bf16.mxu0 0
      %2016 = vmatmul.mubr.bf16.gmra.mrb[0].mxu0 %v1898
      %v2017 = vpop.f32.mrb[0].mxu0
      %v2018 = vadd.f32 0.0, %v2017
      %v2019 = vpop.f32.mrb[0].mxu0
      %v2020 = vpop.f32.mrb[0].mxu0
      %v2021 = vadd.f32 0.0, %v2020
      %v2022 = vpop.f32.mrb[0].mxu0
      %2023 = vmatprep.mubr.bf16.mxu0 0
      %2024 = vmatmul.mubr.bf16.gmra.mrb[0].mxu0 %v1901
      %v2025 = vpop.f32.mrb[0].mxu0
      %v2026 = vadd.f32 0.0, %v2025
      %v2027 = vpop.f32.mrb[0].mxu0
      %v2028 = vpop.f32.mrb[0].mxu0
      %v2029 = vadd.f32 0.0, %v2028
      %v2030 = vpop.f32.mrb[0].mxu0
      %2031 = vmatprep.mubr.bf16.mxu0 0
      %2032 = vmatmul.mubr.bf16.gmra.mrb[0].mxu0 %v1904
      %v2033 = vpop.f32.mrb[0].mxu0
      %v2034 = vadd.f32 0.0, %v2033
      %v2035 = vpop.f32.mrb[0].mxu0
      %v2036 = vpop.f32.mrb[0].mxu0
      %v2037 = vadd.f32 0.0, %v2036
      %v2038 = vpop.f32.mrb[0].mxu0
      %2039 = vmatprep.mubr.bf16.mxu0 0
      %2040 = vmatmul.mubr.bf16.gmra.mrb[0].mxu0 %v1907
      %v2041 = vpop.f32.mrb[0].mxu0
      %v2042 = vadd.f32 0.0, %v2041
      %v2043 = vpop.f32.mrb[0].mxu0
      %v2044 = vpop.f32.mrb[0].mxu0
      %v2045 = vadd.f32 0.0, %v2044
      %v2046 = vpop.f32.mrb[0].mxu0
      %2047 = vmatprep.mubr.bf16.mxu0 0
      %2048 = vmatmul.mubr.bf16.gmra.mrb[0].mxu0 %v1910
      %v2049 = vpop.f32.mrb[0].mxu0
      %v2050 = vadd.f32 0.0, %v2049
      %v2051 = vpop.f32.mrb[0].mxu0
      %v2052 = vpop.f32.mrb[0].mxu0
      %v2053 = vadd.f32 0.0, %v2052
      %v2054 = vpop.f32.mrb[0].mxu0
      %2055 = vmatprep.mubr.bf16.mxu0 0
      %2056 = vmatmul.mubr.bf16.gmra.mrb[0].mxu0 %v1913
      %v2057 = vpop.f32.mrb[0].mxu0
      %v2058 = vadd.f32 0.0, %v2057
      %v2059 = vpop.f32.mrb[0].mxu0
      %v2060 = vpop.f32.mrb[0].mxu0
      %v2061 = vadd.f32 0.0, %v2060
      %v2062 = vpop.f32.mrb[0].mxu0
      %2063 = vmatprep.mubr.bf16.mxu0 0
      %2064 = vmatmul.mubr.bf16.gmra.mrb[0].mxu0 %v1916
      %v2065 = vpop.f32.mrb[0].mxu0
      %v2066 = vadd.f32 0.0, %v2065
      %v2067 = vpop.f32.mrb[0].mxu0
      %v2068 = vpop.f32.mrb[0].mxu0
      %v2069 = vadd.f32 0.0, %v2068
      %v2070 = vpop.f32.mrb[0].mxu0
      %2071 = vmatprep.mubr.bf16.mxu0 0
      %2072 = vmatmul.mubr.bf16.gmra.mrb[0].mxu0 %v1919
      %v2073 = vpop.f32.mrb[0].mxu0
      %v2074 = vadd.f32 0.0, %v2073
      %v2075 = vpop.f32.mrb[0].mxu0
      %v2076 = vpop.f32.mrb[0].mxu0
      %v2077 = vadd.f32 0.0, %v2076
      %v2078 = vpop.f32.mrb[0].mxu0
      %2079 = vmatprep.mubr.bf16.mxu0 0
      %2080 = vmatmul.mubr.bf16.gmra.mrb[0].mxu0 %v1922
      %v2081 = vpop.f32.mrb[0].mxu0
      %v2082 = vadd.f32 0.0, %v2081
      %v2083 = vpop.f32.mrb[0].mxu0
      %v2084 = vpop.f32.mrb[0].mxu0
      %v2085 = vadd.f32 0.0, %v2084
      %v2086 = vpop.f32.mrb[0].mxu0
      %2087 = vdwg.mxu0
      %v2088 = vadd.f32 %v1710, %v1962
      %v2089 = vadd.f32 %v1711, %v1965
      %v2090 = vadd.f32 %v1712, %v1970
      %v2091 = vadd.f32 %v1713, %v1973
      %v2092 = vadd.f32 %v1714, %v1978
      %v2093 = vadd.f32 %v1715, %v1981
      %v2094 = vadd.f32 %v1716, %v1986
      %v2095 = vadd.f32 %v1717, %v1989
      %v2096 = vadd.f32 %v1718, %v1994
      %v2097 = vadd.f32 %v1719, %v1997
      %v2098 = vadd.f32 %v1720, %v2002
      %v2099 = vadd.f32 %v1721, %v2005
      %v2100 = vadd.f32 %v1722, %v2010
      %v2101 = vadd.f32 %v1723, %v2013
      %v2102 = vadd.f32 %v1724, %v2018
      %v2103 = vadd.f32 %v1725, %v2021
      %v2104 = vadd.f32 %v1726, %v2026
      %v2105 = vadd.f32 %v1727, %v2029
      %v2106 = vadd.f32 %v1728, %v2034
      %v2107 = vadd.f32 %v1729, %v2037
      %v2108 = vadd.f32 %v1730, %v2042
      %v2109 = vadd.f32 %v1731, %v2045
      %v2110 = vadd.f32 %v1732, %v2050
      %v2111 = vadd.f32 %v1733, %v2053
      %v2112 = vadd.f32 %v1734, %v2058
      %v2113 = vadd.f32 %v1735, %v2061
      %v2114 = vadd.f32 %v1736, %v2066
      %v2115 = vadd.f32 %v1737, %v2069
      %v2116 = vadd.f32 %v1738, %v2074
      %v2117 = vadd.f32 %v1739, %v2077
      %v2118 = vadd.f32 %v1740, %v2082
      %v2119 = vadd.f32 %v1741, %v2085
      %v2120 = vld [vmem:[%s1742] sm:$0xf]
      %v2121 = vld [vmem:[%s1742 + $0x4] sm:$0xf]
      %v2122 = vld [vmem:[%s1742 + $0x8] sm:$0x1]
      %v2123 = vld [vmem:[%s1742 + $0xc] sm:$0xf]
      %v2124 = vld [vmem:[%s1742 + $0x10] sm:$0xf]
      %v2125 = vld [vmem:[%s1742 + $0x14] sm:$0x1]
      %v2126 = vld [vmem:[%s1742 + $0x18] sm:$0xf]
      %v2127 = vld [vmem:[%s1742 + $0x1c] sm:$0xf]
      %v2128 = vld [vmem:[%s1742 + $0x20] sm:$0x1]
      %v2129 = vld [vmem:[%s1742 + $0x24] sm:$0xf]
      %v2130 = vld [vmem:[%s1742 + $0x28] sm:$0xf]
      %v2131 = vld [vmem:[%s1742 + $0x2c] sm:$0x1]
      %v2132 = vld [vmem:[%s1742 + $0x30] sm:$0xf]
      %v2133 = vld [vmem:[%s1742 + $0x34] sm:$0xf]
      %v2134 = vld [vmem:[%s1742 + $0x38] sm:$0x1]
      %v2135 = vld [vmem:[%s1742 + $0x3c] sm:$0xf]
      %v2136 = vld [vmem:[%s1742 + $0x40] sm:$0xf]
      %v2137 = vld [vmem:[%s1742 + $0x44] sm:$0x1]
      %v2138 = vld [vmem:[%s1742 + $0x48] sm:$0xf]
      %v2139 = vld [vmem:[%s1742 + $0x4c] sm:$0xf]
      %v2140 = vld [vmem:[%s1742 + $0x50] sm:$0x1]
      %v2141 = vld [vmem:[%s1742 + $0x54] sm:$0xf]
      %v2142 = vld [vmem:[%s1742 + $0x58] sm:$0xf]
      %v2143 = vld [vmem:[%s1742 + $0x5c] sm:$0x1]
      %v2144 = vld [vmem:[%s1742 + $0x60] sm:$0xf]
      %v2145 = vld [vmem:[%s1742 + $0x64] sm:$0xf]
      %v2146 = vld [vmem:[%s1742 + $0x68] sm:$0x1]
      %v2147 = vld [vmem:[%s1742 + $0x6c] sm:$0xf]
      %v2148 = vld [vmem:[%s1742 + $0x70] sm:$0xf]
      %v2149 = vld [vmem:[%s1742 + $0x74] sm:$0x1]
      %v2150 = vld [vmem:[%s1742 + $0x78] sm:$0xf]
      %v2151 = vld [vmem:[%s1742 + $0x7c] sm:$0xf]
      %v2152 = vld [vmem:[%s1742 + $0x80] sm:$0x1]
      %v2153 = vld [vmem:[%s1742 + $0x84] sm:$0xf]
      %v2154 = vld [vmem:[%s1742 + $0x88] sm:$0xf]
      %v2155 = vld [vmem:[%s1742 + $0x8c] sm:$0x1]
      %v2156 = vld [vmem:[%s1742 + $0x90] sm:$0xf]
      %v2157 = vld [vmem:[%s1742 + $0x94] sm:$0xf]
      %v2158 = vld [vmem:[%s1742 + $0x98] sm:$0x1]
      %v2159 = vld [vmem:[%s1742 + $0x9c] sm:$0xf]
      %v2160 = vld [vmem:[%s1742 + $0xa0] sm:$0xf]
      %v2161 = vld [vmem:[%s1742 + $0xa4] sm:$0x1]
      %v2162 = vld [vmem:[%s1742 + $0xa8] sm:$0xf]
      %v2163 = vld [vmem:[%s1742 + $0xac] sm:$0xf]
      %v2164 = vld [vmem:[%s1742 + $0xb0] sm:$0x1]
      %v2165 = vld [vmem:[%s1742 + $0xb4] sm:$0xf]
      %v2166 = vld [vmem:[%s1742 + $0xb8] sm:$0xf]
      %v2167 = vld [vmem:[%s1742 + $0xbc] sm:$0x1]
      %v2169 = vshrl.u32 %v2120, 16
      %v2171 = vrot.slane %v2169, 4
      %v2172 = vshll.u32 %v2120, 16
      %v2174 = vrot.slane %v2172, 5
      %v2175 = vor.u32 %v2171, %v2174
      %v2176 = vrot.slane %v2175, 4
      %v2178 = vshll.u32 %v2121, 16
      %v2180 = vrot.slane %v2178, 5
      %v2181 = vsel %vm291, %v2176, %v2180
      %v2182 = vshrl.u32 %v2121, 16
      %v2184 = vrot.slane %v2182, 4
      %v2185 = vor.u32 %v2184, %v2180
      %v2186 = vrot.slane %v2185, 4
      %v2188 = vshll.u32 %v2122, 16
      %v2190 = vrot.slane %v2188, 5
      %v2191 = vsel %vm291, %v2186, %v2190
      %v2193 = vshrl.u32 %v2123, 16
      %v2195 = vrot.slane %v2193, 4
      %v2196 = vshll.u32 %v2123, 16
      %v2198 = vrot.slane %v2196, 5
      %v2199 = vor.u32 %v2195, %v2198
      %v2200 = vrot.slane %v2199, 4
      %v2202 = vshll.u32 %v2124, 16
      %v2204 = vrot.slane %v2202, 5
      %v2205 = vsel %vm291, %v2200, %v2204
      %v2206 = vshrl.u32 %v2124, 16
      %v2208 = vrot.slane %v2206, 4
      %v2209 = vor.u32 %v2208, %v2204
      %v2210 = vrot.slane %v2209, 4
      %v2212 = vshll.u32 %v2125, 16
      %v2214 = vrot.slane %v2212, 5
      %v2215 = vsel %vm291, %v2210, %v2214
      %v2217 = vshrl.u32 %v2126, 16
      %v2219 = vrot.slane %v2217, 4
      %v2220 = vshll.u32 %v2126, 16
      %v2222 = vrot.slane %v2220, 5
      %v2223 = vor.u32 %v2219, %v2222
      %v2224 = vrot.slane %v2223, 4
      %v2226 = vshll.u32 %v2127, 16
      %v2228 = vrot.slane %v2226, 5
      %v2229 = vsel %vm291, %v2224, %v2228
      %v2230 = vshrl.u32 %v2127, 16
      %v2232 = vrot.slane %v2230, 4
      %v2233 = vor.u32 %v2232, %v2228
      %v2234 = vrot.slane %v2233, 4
      %v2236 = vshll.u32 %v2128, 16
      %v2238 = vrot.slane %v2236, 5
      %v2239 = vsel %vm291, %v2234, %v2238
      %v2241 = vshrl.u32 %v2129, 16
      %v2243 = vrot.slane %v2241, 4
      %v2244 = vshll.u32 %v2129, 16
      %v2246 = vrot.slane %v2244, 5
      %v2247 = vor.u32 %v2243, %v2246
      %v2248 = vrot.slane %v2247, 4
      %v2250 = vshll.u32 %v2130, 16
      %v2252 = vrot.slane %v2250, 5
      %v2253 = vsel %vm291, %v2248, %v2252
      %v2254 = vshrl.u32 %v2130, 16
      %v2256 = vrot.slane %v2254, 4
      %v2257 = vor.u32 %v2256, %v2252
      %v2258 = vrot.slane %v2257, 4
      %v2260 = vshll.u32 %v2131, 16
      %v2262 = vrot.slane %v2260, 5
      %v2263 = vsel %vm291, %v2258, %v2262
      %v2265 = vshrl.u32 %v2132, 16
      %v2267 = vrot.slane %v2265, 4
      %v2268 = vshll.u32 %v2132, 16
      %v2270 = vrot.slane %v2268, 5
      %v2271 = vor.u32 %v2267, %v2270
      %v2272 = vrot.slane %v2271, 4
      %v2274 = vshll.u32 %v2133, 16
      %v2276 = vrot.slane %v2274, 5
      %v2277 = vsel %vm291, %v2272, %v2276
      %v2278 = vshrl.u32 %v2133, 16
      %v2280 = vrot.slane %v2278, 4
      %v2281 = vor.u32 %v2280, %v2276
      %v2282 = vrot.slane %v2281, 4
      %v2284 = vshll.u32 %v2134, 16
      %v2286 = vrot.slane %v2284, 5
      %v2287 = vsel %vm291, %v2282, %v2286
      %v2289 = vshrl.u32 %v2135, 16
      %v2291 = vrot.slane %v2289, 4
      %v2292 = vshll.u32 %v2135, 16
      %v2294 = vrot.slane %v2292, 5
      %v2295 = vor.u32 %v2291, %v2294
      %v2296 = vrot.slane %v2295, 4
      %v2298 = vshll.u32 %v2136, 16
      %v2300 = vrot.slane %v2298, 5
      %v2301 = vsel %vm291, %v2296, %v2300
      %v2302 = vshrl.u32 %v2136, 16
      %v2304 = vrot.slane %v2302, 4
      %v2305 = vor.u32 %v2304, %v2300
      %v2306 = vrot.slane %v2305, 4
      %v2308 = vshll.u32 %v2137, 16
      %v2310 = vrot.slane %v2308, 5
      %v2311 = vsel %vm291, %v2306, %v2310
      %v2313 = vshrl.u32 %v2138, 16
      %v2315 = vrot.slane %v2313, 4
      %v2316 = vshll.u32 %v2138, 16
      %v2318 = vrot.slane %v2316, 5
      %v2319 = vor.u32 %v2315, %v2318
      %v2320 = vrot.slane %v2319, 4
      %v2322 = vshll.u32 %v2139, 16
      %v2324 = vrot.slane %v2322, 5
      %v2325 = vsel %vm291, %v2320, %v2324
      %v2326 = vshrl.u32 %v2139, 16
      %v2328 = vrot.slane %v2326, 4
      %v2329 = vor.u32 %v2328, %v2324
      %v2330 = vrot.slane %v2329, 4
      %v2332 = vshll.u32 %v2140, 16
      %v2334 = vrot.slane %v2332, 5
      %v2335 = vsel %vm291, %v2330, %v2334
      %v2337 = vshrl.u32 %v2141, 16
      %v2339 = vrot.slane %v2337, 4
      %v2340 = vshll.u32 %v2141, 16
      %v2342 = vrot.slane %v2340, 5
      %v2343 = vor.u32 %v2339, %v2342
      %v2344 = vrot.slane %v2343, 4
      %v2346 = vshll.u32 %v2142, 16
      %v2348 = vrot.slane %v2346, 5
      %v2349 = vsel %vm291, %v2344, %v2348
      %v2350 = vshrl.u32 %v2142, 16
      %v2352 = vrot.slane %v2350, 4
      %v2353 = vor.u32 %v2352, %v2348
      %v2354 = vrot.slane %v2353, 4
      %v2356 = vshll.u32 %v2143, 16
      %v2358 = vrot.slane %v2356, 5
      %v2359 = vsel %vm291, %v2354, %v2358
      %v2361 = vshrl.u32 %v2144, 16
      %v2363 = vrot.slane %v2361, 4
      %v2364 = vshll.u32 %v2144, 16
      %v2366 = vrot.slane %v2364, 5
      %v2367 = vor.u32 %v2363, %v2366
      %v2368 = vrot.slane %v2367, 4
      %v2370 = vshll.u32 %v2145, 16
      %v2372 = vrot.slane %v2370, 5
      %v2373 = vsel %vm291, %v2368, %v2372
      %v2374 = vshrl.u32 %v2145, 16
      %v2376 = vrot.slane %v2374, 4
      %v2377 = vor.u32 %v2376, %v2372
      %v2378 = vrot.slane %v2377, 4
      %v2380 = vshll.u32 %v2146, 16
      %v2382 = vrot.slane %v2380, 5
      %v2383 = vsel %vm291, %v2378, %v2382
      %v2385 = vshrl.u32 %v2147, 16
      %v2387 = vrot.slane %v2385, 4
      %v2388 = vshll.u32 %v2147, 16
      %v2390 = vrot.slane %v2388, 5
      %v2391 = vor.u32 %v2387, %v2390
      %v2392 = vrot.slane %v2391, 4
      %v2394 = vshll.u32 %v2148, 16
      %v2396 = vrot.slane %v2394, 5
      %v2397 = vsel %vm291, %v2392, %v2396
      %v2398 = vshrl.u32 %v2148, 16
      %v2400 = vrot.slane %v2398, 4
      %v2401 = vor.u32 %v2400, %v2396
      %v2402 = vrot.slane %v2401, 4
      %v2404 = vshll.u32 %v2149, 16
      %v2406 = vrot.slane %v2404, 5
      %v2407 = vsel %vm291, %v2402, %v2406
      %v2409 = vshrl.u32 %v2150, 16
      %v2411 = vrot.slane %v2409, 4
      %v2412 = vshll.u32 %v2150, 16
      %v2414 = vrot.slane %v2412, 5
      %v2415 = vor.u32 %v2411, %v2414
      %v2416 = vrot.slane %v2415, 4
      %v2418 = vshll.u32 %v2151, 16
      %v2420 = vrot.slane %v2418, 5
      %v2421 = vsel %vm291, %v2416, %v2420
      %v2422 = vshrl.u32 %v2151, 16
      %v2424 = vrot.slane %v2422, 4
      %v2425 = vor.u32 %v2424, %v2420
      %v2426 = vrot.slane %v2425, 4
      %v2428 = vshll.u32 %v2152, 16
      %v2430 = vrot.slane %v2428, 5
      %v2431 = vsel %vm291, %v2426, %v2430
      %v2433 = vshrl.u32 %v2153, 16
      %v2435 = vrot.slane %v2433, 4
      %v2436 = vshll.u32 %v2153, 16
      %v2438 = vrot.slane %v2436, 5
      %v2439 = vor.u32 %v2435, %v2438
      %v2440 = vrot.slane %v2439, 4
      %v2442 = vshll.u32 %v2154, 16
      %v2444 = vrot.slane %v2442, 5
      %v2445 = vsel %vm291, %v2440, %v2444
      %v2446 = vshrl.u32 %v2154, 16
      %v2448 = vrot.slane %v2446, 4
      %v2449 = vor.u32 %v2448, %v2444
      %v2450 = vrot.slane %v2449, 4
      %v2452 = vshll.u32 %v2155, 16
      %v2454 = vrot.slane %v2452, 5
      %v2455 = vsel %vm291, %v2450, %v2454
      %v2457 = vshrl.u32 %v2156, 16
      %v2459 = vrot.slane %v2457, 4
      %v2460 = vshll.u32 %v2156, 16
      %v2462 = vrot.slane %v2460, 5
      %v2463 = vor.u32 %v2459, %v2462
      %v2464 = vrot.slane %v2463, 4
      %v2466 = vshll.u32 %v2157, 16
      %v2468 = vrot.slane %v2466, 5
      %v2469 = vsel %vm291, %v2464, %v2468
      %v2470 = vshrl.u32 %v2157, 16
      %v2472 = vrot.slane %v2470, 4
      %v2473 = vor.u32 %v2472, %v2468
      %v2474 = vrot.slane %v2473, 4
      %v2476 = vshll.u32 %v2158, 16
      %v2478 = vrot.slane %v2476, 5
      %v2479 = vsel %vm291, %v2474, %v2478
      %v2481 = vshrl.u32 %v2159, 16
      %v2483 = vrot.slane %v2481, 4
      %v2484 = vshll.u32 %v2159, 16
      %v2486 = vrot.slane %v2484, 5
      %v2487 = vor.u32 %v2483, %v2486
      %v2488 = vrot.slane %v2487, 4
      %v2490 = vshll.u32 %v2160, 16
      %v2492 = vrot.slane %v2490, 5
      %v2493 = vsel %vm291, %v2488, %v2492
      %v2494 = vshrl.u32 %v2160, 16
      %v2496 = vrot.slane %v2494, 4
      %v2497 = vor.u32 %v2496, %v2492
      %v2498 = vrot.slane %v2497, 4
      %v2500 = vshll.u32 %v2161, 16
      %v2502 = vrot.slane %v2500, 5
      %v2503 = vsel %vm291, %v2498, %v2502
      %v2505 = vshrl.u32 %v2162, 16
      %v2507 = vrot.slane %v2505, 4
      %v2508 = vshll.u32 %v2162, 16
      %v2510 = vrot.slane %v2508, 5
      %v2511 = vor.u32 %v2507, %v2510
      %v2512 = vrot.slane %v2511, 4
      %v2514 = vshll.u32 %v2163, 16
      %v2516 = vrot.slane %v2514, 5
      %v2517 = vsel %vm291, %v2512, %v2516
      %v2518 = vshrl.u32 %v2163, 16
      %v2520 = vrot.slane %v2518, 4
      %v2521 = vor.u32 %v2520, %v2516
      %v2522 = vrot.slane %v2521, 4
      %v2524 = vshll.u32 %v2164, 16
      %v2526 = vrot.slane %v2524, 5
      %v2527 = vsel %vm291, %v2522, %v2526
      %v2529 = vshrl.u32 %v2165, 16
      %v2531 = vrot.slane %v2529, 4
      %v2532 = vshll.u32 %v2165, 16
      %v2534 = vrot.slane %v2532, 5
      %v2535 = vor.u32 %v2531, %v2534
      %v2536 = vrot.slane %v2535, 4
      %v2538 = vshll.u32 %v2166, 16
      %v2540 = vrot.slane %v2538, 5
      %v2541 = vsel %vm291, %v2536, %v2540
      %v2542 = vshrl.u32 %v2166, 16
      %v2544 = vrot.slane %v2542, 4
      %v2545 = vor.u32 %v2544, %v2540
      %v2546 = vrot.slane %v2545, 4
      %v2548 = vshll.u32 %v2167, 16
      %v2550 = vrot.slane %v2548, 5
      %v2551 = vsel %vm291, %v2546, %v2550
      %s2552 = scalar_lea.vmem %s1, 80
      %v2553 = vld [vmem:[%s2552] sm:$0xf]
      %v2554 = vld [vmem:[%s2552 + $0x4] sm:$0xf]
      %v2555 = vld [vmem:[%s2552 + $0x8] sm:$0xf]
      %v2556 = vld [vmem:[%s2552 + $0xc] sm:$0xf]
      %v2557 = vld [vmem:[%s2552 + $0x10] sm:$0x3]
      %v2558 = vunpack.c.l.b16 %v2181
      %v2559 = vunpack.c.l.b16 %v2191
      %v2560 = vunpack.c.l.b16 %v2205
      %v2561 = vunpack.c.l.b16 %v2215
      %v2562 = vunpack.c.l.b16 %v2229
      %v2563 = vunpack.c.l.b16 %v2239
      %v2564 = vunpack.c.l.b16 %v2253
      %v2565 = vunpack.c.l.b16 %v2263
      %v2566 = vunpack.c.l.b16 %v2277
      %v2567 = vunpack.c.l.b16 %v2287
      %v2568 = vunpack.c.l.b16 %v2301
      %v2569 = vunpack.c.l.b16 %v2311
      %v2570 = vunpack.c.l.b16 %v2325
      %v2571 = vunpack.c.l.b16 %v2335
      %v2572 = vunpack.c.l.b16 %v2349
      %v2573 = vunpack.c.l.b16 %v2359
      %v2574 = vunpack.c.l.b16 %v2373
      %v2575 = vunpack.c.l.b16 %v2383
      %v2576 = vunpack.c.l.b16 %v2397
      %v2577 = vunpack.c.l.b16 %v2407
      %v2578 = vunpack.c.l.b16 %v2421
      %v2579 = vunpack.c.l.b16 %v2431
      %v2580 = vunpack.c.l.b16 %v2445
      %v2581 = vunpack.c.l.b16 %v2455
      %v2582 = vunpack.c.l.b16 %v2469
      %v2583 = vunpack.c.l.b16 %v2479
      %v2584 = vunpack.c.l.b16 %v2493
      %v2585 = vunpack.c.l.b16 %v2503
      %v2586 = vunpack.c.l.b16 %v2517
      %v2587 = vunpack.c.l.b16 %v2527
      %v2588 = vunpack.c.l.b16 %v2541
      %v2589 = vunpack.c.l.b16 %v2551
      %v2590 = vpack.c.b16 %v2559, %v2558
      %v2591 = vpack.c.b16 %v2561, %v2560
      %v2592 = vpack.c.b16 %v2563, %v2562
      %v2593 = vpack.c.b16 %v2565, %v2564
      %v2594 = vpack.c.b16 %v2567, %v2566
      %v2595 = vpack.c.b16 %v2569, %v2568
      %v2596 = vpack.c.b16 %v2571, %v2570
      %v2597 = vpack.c.b16 %v2573, %v2572
      %v2598 = vpack.c.b16 %v2575, %v2574
      %v2599 = vpack.c.b16 %v2577, %v2576
      %v2600 = vpack.c.b16 %v2579, %v2578
      %v2601 = vpack.c.b16 %v2581, %v2580
      %v2602 = vpack.c.b16 %v2583, %v2582
      %v2603 = vpack.c.b16 %v2585, %v2584
      %v2604 = vpack.c.b16 %v2587, %v2586
      %v2605 = vpack.c.b16 %v2589, %v2588
      %v2611 = vunpack.c.l.b16 %v2553
      %v2612 = vunpack.c.l.b16 %v2554
      %v2613 = vunpack.c.l.b16 %v2555
      %v2614 = vunpack.c.l.b16 %v2556
      %v2615 = vunpack.c.l.b16 %v2557
      %v2616 = vpack.c.b16 %v2612, %v2611
      %v2617 = vpack.c.b16 %v2614, %v2613
      %v2618 = vpack.c.b16 %v2615, %v2615
      %v2622 = vsel %vm745, %v2590, 0
      %v2625 = vsel %vm745, %v2591, 0
      %v2628 = vsel %vm745, %v2592, 0
      %v2631 = vsel %vm745, %v2593, 0
      %v2634 = vsel %vm745, %v2594, 0
      %v2637 = vsel %vm745, %v2595, 0
      %v2640 = vsel %vm745, %v2596, 0
      %v2643 = vsel %vm745, %v2597, 0
      %v2646 = vsel %vm745, %v2598, 0
      %v2649 = vsel %vm745, %v2599, 0
      %v2652 = vsel %vm745, %v2600, 0
      %v2655 = vsel %vm745, %v2601, 0
      %v2658 = vsel %vm745, %v2602, 0
      %v2661 = vsel %vm745, %v2603, 0
      %v2664 = vsel %vm745, %v2604, 0
      %v2667 = vsel %vm745, %v2605, 0
      %v2670 = vsel %vm794, %v2618, 0
      %2672 = vmatprep.subr.bf16.mxu0 0
      %2673 = vmatpush1.bf16.msra.mxu0 %v2616
      %2674 = vmatprep.subr.bf16.mxu0 0
      %2675 = vmatpush1.bf16.msra.mxu0 %v2617
      %2676 = vmatprep.subr.bf16.mxu0 0
      %2677 = vmatpush1.bf16.msra.mxu0 %v2670
      %2678 = vmatprep.subr.bf16.mxu0 0
      %2679 = vmatpush1.bf16.msra.mxu0 0
      %2680 = vmatprep.subr.bf16.mxu0 0
      %2681 = vmatpush1.bf16.msra.mxu0 0
      %2682 = vmatprep.subr.bf16.mxu0 0
      %2683 = vmatpush1.bf16.msra.mxu0 0
      %2684 = vmatprep.subr.bf16.mxu0 0
      %2685 = vmatpush1.bf16.msra.mxu0 0
      %2686 = vmatprep.subr.bf16.mxu0 0
      %2687 = vmatpush1.bf16.msra.mxu0 0
      %2688 = vmatprep.subr.bf16.mxu0 0
      %2689 = vmatpush1.bf16.msra.mxu0 0
      %2690 = vmatprep.subr.bf16.mxu0 0
      %2691 = vmatpush1.bf16.msra.mxu0 0
      %2692 = vmatprep.subr.bf16.mxu0 0
      %2693 = vmatpush1.bf16.msra.mxu0 0
      %2694 = vmatprep.subr.bf16.mxu0 0
      %2695 = vmatpush1.bf16.msra.mxu0 0
      %2696 = vmatprep.subr.bf16.mxu0 0
      %2697 = vmatpush1.bf16.msra.mxu0 0
      %2698 = vmatprep.subr.bf16.mxu0 0
      %2699 = vmatpush1.bf16.msra.mxu0 0
      %2700 = vmatprep.subr.bf16.mxu0 0
      %2701 = vmatpush1.bf16.msra.mxu0 0
      %2702 = vmatprep.subr.bf16.mxu0 0
      %2703 = vmatpush1.bf16.msra.mxu0 0
      %2704 = vmatprep.mubr.bf16.mxu0 0
      %2705 = vmatmul.mubr.bf16.gmra.mrb[0].mxu0 %v2622
      %v2706 = vpop.f32.mrb[0].mxu0
      %v2707 = vadd.f32 0.0, %v2706
      %v2708 = vpop.f32.mrb[0].mxu0
      %v2709 = vpop.f32.mrb[0].mxu0
      %v2710 = vadd.f32 0.0, %v2709
      %v2711 = vpop.f32.mrb[0].mxu0
      %2712 = vmatprep.mubr.bf16.mxu0 0
      %2713 = vmatmul.mubr.bf16.gmra.mrb[0].mxu0 %v2625
      %v2714 = vpop.f32.mrb[0].mxu0
      %v2715 = vadd.f32 0.0, %v2714
      %v2716 = vpop.f32.mrb[0].mxu0
      %v2717 = vpop.f32.mrb[0].mxu0
      %v2718 = vadd.f32 0.0, %v2717
      %v2719 = vpop.f32.mrb[0].mxu0
      %2720 = vmatprep.mubr.bf16.mxu0 0
      %2721 = vmatmul.mubr.bf16.gmra.mrb[0].mxu0 %v2628
      %v2722 = vpop.f32.mrb[0].mxu0
      %v2723 = vadd.f32 0.0, %v2722
      %v2724 = vpop.f32.mrb[0].mxu0
      %v2725 = vpop.f32.mrb[0].mxu0
      %v2726 = vadd.f32 0.0, %v2725
      %v2727 = vpop.f32.mrb[0].mxu0
      %2728 = vmatprep.mubr.bf16.mxu0 0
      %2729 = vmatmul.mubr.bf16.gmra.mrb[0].mxu0 %v2631
      %v2730 = vpop.f32.mrb[0].mxu0
      %v2731 = vadd.f32 0.0, %v2730
      %v2732 = vpop.f32.mrb[0].mxu0
      %v2733 = vpop.f32.mrb[0].mxu0
      %v2734 = vadd.f32 0.0, %v2733
      %v2735 = vpop.f32.mrb[0].mxu0
      %2736 = vmatprep.mubr.bf16.mxu0 0
      %2737 = vmatmul.mubr.bf16.gmra.mrb[0].mxu0 %v2634
      %v2738 = vpop.f32.mrb[0].mxu0
      %v2739 = vadd.f32 0.0, %v2738
      %v2740 = vpop.f32.mrb[0].mxu0
      %v2741 = vpop.f32.mrb[0].mxu0
      %v2742 = vadd.f32 0.0, %v2741
      %v2743 = vpop.f32.mrb[0].mxu0
      %2744 = vmatprep.mubr.bf16.mxu0 0
      %2745 = vmatmul.mubr.bf16.gmra.mrb[0].mxu0 %v2637
      %v2746 = vpop.f32.mrb[0].mxu0
      %v2747 = vadd.f32 0.0, %v2746
      %v2748 = vpop.f32.mrb[0].mxu0
      %v2749 = vpop.f32.mrb[0].mxu0
      %v2750 = vadd.f32 0.0, %v2749
      %v2751 = vpop.f32.mrb[0].mxu0
      %2752 = vmatprep.mubr.bf16.mxu0 0
      %2753 = vmatmul.mubr.bf16.gmra.mrb[0].mxu0 %v2640
      %v2754 = vpop.f32.mrb[0].mxu0
      %v2755 = vadd.f32 0.0, %v2754
      %v2756 = vpop.f32.mrb[0].mxu0
      %v2757 = vpop.f32.mrb[0].mxu0
      %v2758 = vadd.f32 0.0, %v2757
      %v2759 = vpop.f32.mrb[0].mxu0
      %2760 = vmatprep.mubr.bf16.mxu0 0
      %2761 = vmatmul.mubr.bf16.gmra.mrb[0].mxu0 %v2643
      %v2762 = vpop.f32.mrb[0].mxu0
      %v2763 = vadd.f32 0.0, %v2762
      %v2764 = vpop.f32.mrb[0].mxu0
      %v2765 = vpop.f32.mrb[0].mxu0
      %v2766 = vadd.f32 0.0, %v2765
      %v2767 = vpop.f32.mrb[0].mxu0
      %2768 = vmatprep.mubr.bf16.mxu0 0
      %2769 = vmatmul.mubr.bf16.gmra.mrb[0].mxu0 %v2646
      %v2770 = vpop.f32.mrb[0].mxu0
      %v2771 = vadd.f32 0.0, %v2770
      %v2772 = vpop.f32.mrb[0].mxu0
      %v2773 = vpop.f32.mrb[0].mxu0
      %v2774 = vadd.f32 0.0, %v2773
      %v2775 = vpop.f32.mrb[0].mxu0
      %2776 = vmatprep.mubr.bf16.mxu0 0
      %2777 = vmatmul.mubr.bf16.gmra.mrb[0].mxu0 %v2649
      %v2778 = vpop.f32.mrb[0].mxu0
      %v2779 = vadd.f32 0.0, %v2778
      %v2780 = vpop.f32.mrb[0].mxu0
      %v2781 = vpop.f32.mrb[0].mxu0
      %v2782 = vadd.f32 0.0, %v2781
      %v2783 = vpop.f32.mrb[0].mxu0
      %2784 = vmatprep.mubr.bf16.mxu0 0
      %2785 = vmatmul.mubr.bf16.gmra.mrb[0].mxu0 %v2652
      %v2786 = vpop.f32.mrb[0].mxu0
      %v2787 = vadd.f32 0.0, %v2786
      %v2788 = vpop.f32.mrb[0].mxu0
      %v2789 = vpop.f32.mrb[0].mxu0
      %v2790 = vadd.f32 0.0, %v2789
      %v2791 = vpop.f32.mrb[0].mxu0
      %2792 = vmatprep.mubr.bf16.mxu0 0
      %2793 = vmatmul.mubr.bf16.gmra.mrb[0].mxu0 %v2655
      %v2794 = vpop.f32.mrb[0].mxu0
      %v2795 = vadd.f32 0.0, %v2794
      %v2796 = vpop.f32.mrb[0].mxu0
      %v2797 = vpop.f32.mrb[0].mxu0
      %v2798 = vadd.f32 0.0, %v2797
      %v2799 = vpop.f32.mrb[0].mxu0
      %2800 = vmatprep.mubr.bf16.mxu0 0
      %2801 = vmatmul.mubr.bf16.gmra.mrb[0].mxu0 %v2658
      %v2802 = vpop.f32.mrb[0].mxu0
      %v2803 = vadd.f32 0.0, %v2802
      %v2804 = vpop.f32.mrb[0].mxu0
      %v2805 = vpop.f32.mrb[0].mxu0
      %v2806 = vadd.f32 0.0, %v2805
      %v2807 = vpop.f32.mrb[0].mxu0
      %2808 = vmatprep.mubr.bf16.mxu0 0
      %2809 = vmatmul.mubr.bf16.gmra.mrb[0].mxu0 %v2661
      %v2810 = vpop.f32.mrb[0].mxu0
      %v2811 = vadd.f32 0.0, %v2810
      %v2812 = vpop.f32.mrb[0].mxu0
      %v2813 = vpop.f32.mrb[0].mxu0
      %v2814 = vadd.f32 0.0, %v2813
      %v2815 = vpop.f32.mrb[0].mxu0
      %2816 = vmatprep.mubr.bf16.mxu0 0
      %2817 = vmatmul.mubr.bf16.gmra.mrb[0].mxu0 %v2664
      %v2818 = vpop.f32.mrb[0].mxu0
      %v2819 = vadd.f32 0.0, %v2818
      %v2820 = vpop.f32.mrb[0].mxu0
      %v2821 = vpop.f32.mrb[0].mxu0
      %v2822 = vadd.f32 0.0, %v2821
      %v2823 = vpop.f32.mrb[0].mxu0
      %2824 = vmatprep.mubr.bf16.mxu0 0
      %2825 = vmatmul.mubr.bf16.gmra.mrb[0].mxu0 %v2667
      %v2826 = vpop.f32.mrb[0].mxu0
      %v2827 = vadd.f32 0.0, %v2826
      %v2828 = vpop.f32.mrb[0].mxu0
      %v2829 = vpop.f32.mrb[0].mxu0
      %v2830 = vadd.f32 0.0, %v2829
      %v2831 = vpop.f32.mrb[0].mxu0
      %2832 = vdwg.mxu0
      %v2833 = vadd.f32 %v2088, %v2707
      %v2834 = vadd.f32 %v2089, %v2710
      %v2835 = vadd.f32 %v2090, %v2715
      %v2836 = vadd.f32 %v2091, %v2718
      %v2837 = vadd.f32 %v2092, %v2723
      %v2838 = vadd.f32 %v2093, %v2726
      %v2839 = vadd.f32 %v2094, %v2731
      %v2840 = vadd.f32 %v2095, %v2734
      %v2841 = vadd.f32 %v2096, %v2739
      %v2842 = vadd.f32 %v2097, %v2742
      %v2843 = vadd.f32 %v2098, %v2747
      %v2844 = vadd.f32 %v2099, %v2750
      %v2845 = vadd.f32 %v2100, %v2755
      %v2846 = vadd.f32 %v2101, %v2758
      %v2847 = vadd.f32 %v2102, %v2763
      %v2848 = vadd.f32 %v2103, %v2766
      %v2849 = vadd.f32 %v2104, %v2771
      %v2850 = vadd.f32 %v2105, %v2774
      %v2851 = vadd.f32 %v2106, %v2779
      %v2852 = vadd.f32 %v2107, %v2782
      %v2853 = vadd.f32 %v2108, %v2787
      %v2854 = vadd.f32 %v2109, %v2790
      %v2855 = vadd.f32 %v2110, %v2795
      %v2856 = vadd.f32 %v2111, %v2798
      %v2857 = vadd.f32 %v2112, %v2803
      %v2858 = vadd.f32 %v2113, %v2806
      %v2859 = vadd.f32 %v2114, %v2811
      %v2860 = vadd.f32 %v2115, %v2814
      %v2861 = vadd.f32 %v2116, %v2819
      %v2862 = vadd.f32 %v2117, %v2822
      %v2863 = vadd.f32 %v2118, %v2827
      %v2864 = vadd.f32 %v2119, %v2830
      %v2865 = vld [vmem:[%s1742] sm:$0xe]
      %v2866 = vld [vmem:[%s1742 + $0xc] sm:$0xe]
      %v2867 = vld [vmem:[%s1742 + $0x18] sm:$0xe]
      %v2868 = vld [vmem:[%s1742 + $0x24] sm:$0xe]
      %v2869 = vld [vmem:[%s1742 + $0x30] sm:$0xe]
      %v2870 = vld [vmem:[%s1742 + $0x3c] sm:$0xe]
      %v2871 = vld [vmem:[%s1742 + $0x48] sm:$0xe]
      %v2872 = vld [vmem:[%s1742 + $0x54] sm:$0xe]
      %v2873 = vld [vmem:[%s1742 + $0x60] sm:$0xe]
      %v2874 = vld [vmem:[%s1742 + $0x6c] sm:$0xe]
      %v2875 = vld [vmem:[%s1742 + $0x78] sm:$0xe]
      %v2876 = vld [vmem:[%s1742 + $0x84] sm:$0xe]
      %v2877 = vld [vmem:[%s1742 + $0x90] sm:$0xe]
      %v2878 = vld [vmem:[%s1742 + $0x9c] sm:$0xe]
      %v2879 = vld [vmem:[%s1742 + $0xa8] sm:$0xe]
      %v2880 = vld [vmem:[%s1742 + $0xb4] sm:$0xe]
      %v2929 = vrot.slane %v2865, 5
      %v2930 = vrot.slane %v2929, 4
      %v2931 = vrot.slane %v2121, 5
      %v2932 = vsel %vm1316, %v2930, %v2931
      %v2933 = vrot.slane %v2931, 4
      %v2934 = vrot.slane %v2122, 5
      %v2935 = vsel %vm1316, %v2933, %v2934
      %v2936 = vrot.slane %v2866, 5
      %v2937 = vrot.slane %v2936, 4
      %v2938 = vrot.slane %v2124, 5
      %v2939 = vsel %vm1316, %v2937, %v2938
      %v2940 = vrot.slane %v2938, 4
      %v2941 = vrot.slane %v2125, 5
      %v2942 = vsel %vm1316, %v2940, %v2941
      %v2943 = vrot.slane %v2867, 5
      %v2944 = vrot.slane %v2943, 4
      %v2945 = vrot.slane %v2127, 5
      %v2946 = vsel %vm1316, %v2944, %v2945
      %v2947 = vrot.slane %v2945, 4
      %v2948 = vrot.slane %v2128, 5
      %v2949 = vsel %vm1316, %v2947, %v2948
      %v2950 = vrot.slane %v2868, 5
      %v2951 = vrot.slane %v2950, 4
      %v2952 = vrot.slane %v2130, 5
      %v2953 = vsel %vm1316, %v2951, %v2952
      %v2954 = vrot.slane %v2952, 4
      %v2955 = vrot.slane %v2131, 5
      %v2956 = vsel %vm1316, %v2954, %v2955
      %v2957 = vrot.slane %v2869, 5
      %v2958 = vrot.slane %v2957, 4
      %v2959 = vrot.slane %v2133, 5
      %v2960 = vsel %vm1316, %v2958, %v2959
      %v2961 = vrot.slane %v2959, 4
      %v2962 = vrot.slane %v2134, 5
      %v2963 = vsel %vm1316, %v2961, %v2962
      %v2964 = vrot.slane %v2870, 5
      %v2965 = vrot.slane %v2964, 4
      %v2966 = vrot.slane %v2136, 5
      %v2967 = vsel %vm1316, %v2965, %v2966
      %v2968 = vrot.slane %v2966, 4
      %v2969 = vrot.slane %v2137, 5
      %v2970 = vsel %vm1316, %v2968, %v2969
      %v2971 = vrot.slane %v2871, 5
      %v2972 = vrot.slane %v2971, 4
      %v2973 = vrot.slane %v2139, 5
      %v2974 = vsel %vm1316, %v2972, %v2973
      %v2975 = vrot.slane %v2973, 4
      %v2976 = vrot.slane %v2140, 5
      %v2977 = vsel %vm1316, %v2975, %v2976
      %v2978 = vrot.slane %v2872, 5
      %v2979 = vrot.slane %v2978, 4
      %v2980 = vrot.slane %v2142, 5
      %v2981 = vsel %vm1316, %v2979, %v2980
      %v2982 = vrot.slane %v2980, 4
      %v2983 = vrot.slane %v2143, 5
      %v2984 = vsel %vm1316, %v2982, %v2983
      %v2985 = vrot.slane %v2873, 5
      %v2986 = vrot.slane %v2985, 4
      %v2987 = vrot.slane %v2145, 5
      %v2988 = vsel %vm1316, %v2986, %v2987
      %v2989 = vrot.slane %v2987, 4
      %v2990 = vrot.slane %v2146, 5
      %v2991 = vsel %vm1316, %v2989, %v2990
      %v2992 = vrot.slane %v2874, 5
      %v2993 = vrot.slane %v2992, 4
      %v2994 = vrot.slane %v2148, 5
      %v2995 = vsel %vm1316, %v2993, %v2994
      %v2996 = vrot.slane %v2994, 4
      %v2997 = vrot.slane %v2149, 5
      %v2998 = vsel %vm1316, %v2996, %v2997
      %v2999 = vrot.slane %v2875, 5
      %v3000 = vrot.slane %v2999, 4
      %v3001 = vrot.slane %v2151, 5
      %v3002 = vsel %vm1316, %v3000, %v3001
      %v3003 = vrot.slane %v3001, 4
      %v3004 = vrot.slane %v2152, 5
      %v3005 = vsel %vm1316, %v3003, %v3004
      %v3006 = vrot.slane %v2876, 5
      %v3007 = vrot.slane %v3006, 4
      %v3008 = vrot.slane %v2154, 5
      %v3009 = vsel %vm1316, %v3007, %v3008
      %v3010 = vrot.slane %v3008, 4
      %v3011 = vrot.slane %v2155, 5
      %v3012 = vsel %vm1316, %v3010, %v3011
      %v3013 = vrot.slane %v2877, 5
      %v3014 = vrot.slane %v3013, 4
      %v3015 = vrot.slane %v2157, 5
      %v3016 = vsel %vm1316, %v3014, %v3015
      %v3017 = vrot.slane %v3015, 4
      %v3018 = vrot.slane %v2158, 5
      %v3019 = vsel %vm1316, %v3017, %v3018
      %v3020 = vrot.slane %v2878, 5
      %v3021 = vrot.slane %v3020, 4
      %v3022 = vrot.slane %v2160, 5
      %v3023 = vsel %vm1316, %v3021, %v3022
      %v3024 = vrot.slane %v3022, 4
      %v3025 = vrot.slane %v2161, 5
      %v3026 = vsel %vm1316, %v3024, %v3025
      %v3027 = vrot.slane %v2879, 5
      %v3028 = vrot.slane %v3027, 4
      %v3029 = vrot.slane %v2163, 5
      %v3030 = vsel %vm1316, %v3028, %v3029
      %v3031 = vrot.slane %v3029, 4
      %v3032 = vrot.slane %v2164, 5
      %v3033 = vsel %vm1316, %v3031, %v3032
      %v3034 = vrot.slane %v2880, 5
      %v3035 = vrot.slane %v3034, 4
      %v3036 = vrot.slane %v2166, 5
      %v3037 = vsel %vm1316, %v3035, %v3036
      %v3038 = vrot.slane %v3036, 4
      %v3039 = vrot.slane %v2167, 5
      %v3040 = vsel %vm1316, %v3038, %v3039
      %s3041 = scalar_lea.vmem %s1, 100
      %v3042 = vld [vmem:[%s3041] sm:$0xf]
      %v3043 = vld [vmem:[%s3041 + $0x4] sm:$0xf]
      %v3044 = vld [vmem:[%s3041 + $0x8] sm:$0xf]
      %v3045 = vld [vmem:[%s3041 + $0xc] sm:$0xf]
      %v3046 = vld [vmem:[%s3041 + $0x10] sm:$0x3]
      %v3047 = vunpack.c.l.b16 %v2932
      %v3048 = vunpack.c.l.b16 %v2935
      %v3049 = vunpack.c.l.b16 %v2939
      %v3050 = vunpack.c.l.b16 %v2942
      %v3051 = vunpack.c.l.b16 %v2946
      %v3052 = vunpack.c.l.b16 %v2949
      %v3053 = vunpack.c.l.b16 %v2953
      %v3054 = vunpack.c.l.b16 %v2956
      %v3055 = vunpack.c.l.b16 %v2960
      %v3056 = vunpack.c.l.b16 %v2963
      %v3057 = vunpack.c.l.b16 %v2967
      %v3058 = vunpack.c.l.b16 %v2970
      %v3059 = vunpack.c.l.b16 %v2974
      %v3060 = vunpack.c.l.b16 %v2977
      %v3061 = vunpack.c.l.b16 %v2981
      %v3062 = vunpack.c.l.b16 %v2984
      %v3063 = vunpack.c.l.b16 %v2988
      %v3064 = vunpack.c.l.b16 %v2991
      %v3065 = vunpack.c.l.b16 %v2995
      %v3066 = vunpack.c.l.b16 %v2998
      %v3067 = vunpack.c.l.b16 %v3002
      %v3068 = vunpack.c.l.b16 %v3005
      %v3069 = vunpack.c.l.b16 %v3009
      %v3070 = vunpack.c.l.b16 %v3012
      %v3071 = vunpack.c.l.b16 %v3016
      %v3072 = vunpack.c.l.b16 %v3019
      %v3073 = vunpack.c.l.b16 %v3023
      %v3074 = vunpack.c.l.b16 %v3026
      %v3075 = vunpack.c.l.b16 %v3030
      %v3076 = vunpack.c.l.b16 %v3033
      %v3077 = vunpack.c.l.b16 %v3037
      %v3078 = vunpack.c.l.b16 %v3040
      %v3079 = vpack.c.b16 %v3048, %v3047
      %v3080 = vpack.c.b16 %v3050, %v3049
      %v3081 = vpack.c.b16 %v3052, %v3051
      %v3082 = vpack.c.b16 %v3054, %v3053
      %v3083 = vpack.c.b16 %v3056, %v3055
      %v3084 = vpack.c.b16 %v3058, %v3057
      %v3085 = vpack.c.b16 %v3060, %v3059
      %v3086 = vpack.c.b16 %v3062, %v3061
      %v3087 = vpack.c.b16 %v3064, %v3063
      %v3088 = vpack.c.b16 %v3066, %v3065
      %v3089 = vpack.c.b16 %v3068, %v3067
      %v3090 = vpack.c.b16 %v3070, %v3069
      %v3091 = vpack.c.b16 %v3072, %v3071
      %v3092 = vpack.c.b16 %v3074, %v3073
      %v3093 = vpack.c.b16 %v3076, %v3075
      %v3094 = vpack.c.b16 %v3078, %v3077
      %v3100 = vunpack.c.l.b16 %v3042
      %v3101 = vunpack.c.l.b16 %v3043
      %v3102 = vunpack.c.l.b16 %v3044
      %v3103 = vunpack.c.l.b16 %v3045
      %v3104 = vunpack.c.l.b16 %v3046
      %v3105 = vpack.c.b16 %v3101, %v3100
      %v3106 = vpack.c.b16 %v3103, %v3102
      %v3107 = vpack.c.b16 %v3104, %v3104
      %v3111 = vsel %vm745, %v3079, 0
      %v3114 = vsel %vm745, %v3080, 0
      %v3117 = vsel %vm745, %v3081, 0
      %v3120 = vsel %vm745, %v3082, 0
      %v3123 = vsel %vm745, %v3083, 0
      %v3126 = vsel %vm745, %v3084, 0
      %v3129 = vsel %vm745, %v3085, 0
      %v3132 = vsel %vm745, %v3086, 0
      %v3135 = vsel %vm745, %v3087, 0
      %v3138 = vsel %vm745, %v3088, 0
      %v3141 = vsel %vm745, %v3089, 0
      %v3144 = vsel %vm745, %v3090, 0
      %v3147 = vsel %vm745, %v3091, 0
      %v3150 = vsel %vm745, %v3092, 0
      %v3153 = vsel %vm745, %v3093, 0
      %v3156 = vsel %vm745, %v3094, 0
      %v3159 = vsel %vm794, %v3107, 0
      %3161 = vmatprep.subr.bf16.mxu0 0
      %3162 = vmatpush1.bf16.msra.mxu0 %v3105
      %3163 = vmatprep.subr.bf16.mxu0 0
      %3164 = vmatpush1.bf16.msra.mxu0 %v3106
      %3165 = vmatprep.subr.bf16.mxu0 0
      %3166 = vmatpush1.bf16.msra.mxu0 %v3159
      %3167 = vmatprep.subr.bf16.mxu0 0
      %3168 = vmatpush1.bf16.msra.mxu0 0
      %3169 = vmatprep.subr.bf16.mxu0 0
      %3170 = vmatpush1.bf16.msra.mxu0 0
      %3171 = vmatprep.subr.bf16.mxu0 0
      %3172 = vmatpush1.bf16.msra.mxu0 0
      %3173 = vmatprep.subr.bf16.mxu0 0
      %3174 = vmatpush1.bf16.msra.mxu0 0
      %3175 = vmatprep.subr.bf16.mxu0 0
      %3176 = vmatpush1.bf16.msra.mxu0 0
      %3177 = vmatprep.subr.bf16.mxu0 0
      %3178 = vmatpush1.bf16.msra.mxu0 0
      %3179 = vmatprep.subr.bf16.mxu0 0
      %3180 = vmatpush1.bf16.msra.mxu0 0
      %3181 = vmatprep.subr.bf16.mxu0 0
      %3182 = vmatpush1.bf16.msra.mxu0 0
      %3183 = vmatprep.subr.bf16.mxu0 0
      %3184 = vmatpush1.bf16.msra.mxu0 0
      %3185 = vmatprep.subr.bf16.mxu0 0
      %3186 = vmatpush1.bf16.msra.mxu0 0
      %3187 = vmatprep.subr.bf16.mxu0 0
      %3188 = vmatpush1.bf16.msra.mxu0 0
      %3189 = vmatprep.subr.bf16.mxu0 0
      %3190 = vmatpush1.bf16.msra.mxu0 0
      %3191 = vmatprep.subr.bf16.mxu0 0
      %3192 = vmatpush1.bf16.msra.mxu0 0
      %3193 = vmatprep.mubr.bf16.mxu0 0
      %3194 = vmatmul.mubr.bf16.gmra.mrb[0].mxu0 %v3111
      %v3195 = vpop.f32.mrb[0].mxu0
      %v3196 = vadd.f32 0.0, %v3195
      %v3197 = vpop.f32.mrb[0].mxu0
      %v3198 = vpop.f32.mrb[0].mxu0
      %v3199 = vadd.f32 0.0, %v3198
      %v3200 = vpop.f32.mrb[0].mxu0
      %3201 = vmatprep.mubr.bf16.mxu0 0
      %3202 = vmatmul.mubr.bf16.gmra.mrb[0].mxu0 %v3114
      %v3203 = vpop.f32.mrb[0].mxu0
      %v3204 = vadd.f32 0.0, %v3203
      %v3205 = vpop.f32.mrb[0].mxu0
      %v3206 = vpop.f32.mrb[0].mxu0
      %v3207 = vadd.f32 0.0, %v3206
      %v3208 = vpop.f32.mrb[0].mxu0
      %3209 = vmatprep.mubr.bf16.mxu0 0
      %3210 = vmatmul.mubr.bf16.gmra.mrb[0].mxu0 %v3117
      %v3211 = vpop.f32.mrb[0].mxu0
      %v3212 = vadd.f32 0.0, %v3211
      %v3213 = vpop.f32.mrb[0].mxu0
      %v3214 = vpop.f32.mrb[0].mxu0
      %v3215 = vadd.f32 0.0, %v3214
      %v3216 = vpop.f32.mrb[0].mxu0
      %3217 = vmatprep.mubr.bf16.mxu0 0
      %3218 = vmatmul.mubr.bf16.gmra.mrb[0].mxu0 %v3120
      %v3219 = vpop.f32.mrb[0].mxu0
      %v3220 = vadd.f32 0.0, %v3219
      %v3221 = vpop.f32.mrb[0].mxu0
      %v3222 = vpop.f32.mrb[0].mxu0
      %v3223 = vadd.f32 0.0, %v3222
      %v3224 = vpop.f32.mrb[0].mxu0
      %3225 = vmatprep.mubr.bf16.mxu0 0
      %3226 = vmatmul.mubr.bf16.gmra.mrb[0].mxu0 %v3123
      %v3227 = vpop.f32.mrb[0].mxu0
      %v3228 = vadd.f32 0.0, %v3227
      %v3229 = vpop.f32.mrb[0].mxu0
      %v3230 = vpop.f32.mrb[0].mxu0
      %v3231 = vadd.f32 0.0, %v3230
      %v3232 = vpop.f32.mrb[0].mxu0
      %3233 = vmatprep.mubr.bf16.mxu0 0
      %3234 = vmatmul.mubr.bf16.gmra.mrb[0].mxu0 %v3126
      %v3235 = vpop.f32.mrb[0].mxu0
      %v3236 = vadd.f32 0.0, %v3235
      %v3237 = vpop.f32.mrb[0].mxu0
      %v3238 = vpop.f32.mrb[0].mxu0
      %v3239 = vadd.f32 0.0, %v3238
      %v3240 = vpop.f32.mrb[0].mxu0
      %3241 = vmatprep.mubr.bf16.mxu0 0
      %3242 = vmatmul.mubr.bf16.gmra.mrb[0].mxu0 %v3129
      %v3243 = vpop.f32.mrb[0].mxu0
      %v3244 = vadd.f32 0.0, %v3243
      %v3245 = vpop.f32.mrb[0].mxu0
      %v3246 = vpop.f32.mrb[0].mxu0
      %v3247 = vadd.f32 0.0, %v3246
      %v3248 = vpop.f32.mrb[0].mxu0
      %3249 = vmatprep.mubr.bf16.mxu0 0
      %3250 = vmatmul.mubr.bf16.gmra.mrb[0].mxu0 %v3132
      %v3251 = vpop.f32.mrb[0].mxu0
      %v3252 = vadd.f32 0.0, %v3251
      %v3253 = vpop.f32.mrb[0].mxu0
      %v3254 = vpop.f32.mrb[0].mxu0
      %v3255 = vadd.f32 0.0, %v3254
      %v3256 = vpop.f32.mrb[0].mxu0
      %3257 = vmatprep.mubr.bf16.mxu0 0
      %3258 = vmatmul.mubr.bf16.gmra.mrb[0].mxu0 %v3135
      %v3259 = vpop.f32.mrb[0].mxu0
      %v3260 = vadd.f32 0.0, %v3259
      %v3261 = vpop.f32.mrb[0].mxu0
      %v3262 = vpop.f32.mrb[0].mxu0
      %v3263 = vadd.f32 0.0, %v3262
      %v3264 = vpop.f32.mrb[0].mxu0
      %3265 = vmatprep.mubr.bf16.mxu0 0
      %3266 = vmatmul.mubr.bf16.gmra.mrb[0].mxu0 %v3138
      %v3267 = vpop.f32.mrb[0].mxu0
      %v3268 = vadd.f32 0.0, %v3267
      %v3269 = vpop.f32.mrb[0].mxu0
      %v3270 = vpop.f32.mrb[0].mxu0
      %v3271 = vadd.f32 0.0, %v3270
      %v3272 = vpop.f32.mrb[0].mxu0
      %3273 = vmatprep.mubr.bf16.mxu0 0
      %3274 = vmatmul.mubr.bf16.gmra.mrb[0].mxu0 %v3141
      %v3275 = vpop.f32.mrb[0].mxu0
      %v3276 = vadd.f32 0.0, %v3275
      %v3277 = vpop.f32.mrb[0].mxu0
      %v3278 = vpop.f32.mrb[0].mxu0
      %v3279 = vadd.f32 0.0, %v3278
      %v3280 = vpop.f32.mrb[0].mxu0
      %3281 = vmatprep.mubr.bf16.mxu0 0
      %3282 = vmatmul.mubr.bf16.gmra.mrb[0].mxu0 %v3144
      %v3283 = vpop.f32.mrb[0].mxu0
      %v3284 = vadd.f32 0.0, %v3283
      %v3285 = vpop.f32.mrb[0].mxu0
      %v3286 = vpop.f32.mrb[0].mxu0
      %v3287 = vadd.f32 0.0, %v3286
      %v3288 = vpop.f32.mrb[0].mxu0
      %3289 = vmatprep.mubr.bf16.mxu0 0
      %3290 = vmatmul.mubr.bf16.gmra.mrb[0].mxu0 %v3147
      %v3291 = vpop.f32.mrb[0].mxu0
      %v3292 = vadd.f32 0.0, %v3291
      %v3293 = vpop.f32.mrb[0].mxu0
      %v3294 = vpop.f32.mrb[0].mxu0
      %v3295 = vadd.f32 0.0, %v3294
      %v3296 = vpop.f32.mrb[0].mxu0
      %3297 = vmatprep.mubr.bf16.mxu0 0
      %3298 = vmatmul.mubr.bf16.gmra.mrb[0].mxu0 %v3150
      %v3299 = vpop.f32.mrb[0].mxu0
      %v3300 = vadd.f32 0.0, %v3299
      %v3301 = vpop.f32.mrb[0].mxu0
      %v3302 = vpop.f32.mrb[0].mxu0
      %v3303 = vadd.f32 0.0, %v3302
      %v3304 = vpop.f32.mrb[0].mxu0
      %3305 = vmatprep.mubr.bf16.mxu0 0
      %3306 = vmatmul.mubr.bf16.gmra.mrb[0].mxu0 %v3153
      %v3307 = vpop.f32.mrb[0].mxu0
      %v3308 = vadd.f32 0.0, %v3307
      %v3309 = vpop.f32.mrb[0].mxu0
      %v3310 = vpop.f32.mrb[0].mxu0
      %v3311 = vadd.f32 0.0, %v3310
      %v3312 = vpop.f32.mrb[0].mxu0
      %3313 = vmatprep.mubr.bf16.mxu0 0
      %3314 = vmatmul.mubr.bf16.gmra.mrb[0].mxu0 %v3156
      %v3315 = vpop.f32.mrb[0].mxu0
      %v3316 = vadd.f32 0.0, %v3315
      %v3317 = vpop.f32.mrb[0].mxu0
      %v3318 = vpop.f32.mrb[0].mxu0
      %v3319 = vadd.f32 0.0, %v3318
      %v3320 = vpop.f32.mrb[0].mxu0
      %3321 = vdwg.mxu0
      %v3322 = vadd.f32 %v2833, %v3196
      %v3323 = vadd.f32 %v2834, %v3199
      %v3324 = vadd.f32 %v2835, %v3204
      %v3325 = vadd.f32 %v2836, %v3207
      %v3326 = vadd.f32 %v2837, %v3212
      %v3327 = vadd.f32 %v2838, %v3215
      %v3328 = vadd.f32 %v2839, %v3220
      %v3329 = vadd.f32 %v2840, %v3223
      %v3330 = vadd.f32 %v2841, %v3228
      %v3331 = vadd.f32 %v2842, %v3231
      %v3332 = vadd.f32 %v2843, %v3236
      %v3333 = vadd.f32 %v2844, %v3239
      %v3334 = vadd.f32 %v2845, %v3244
      %v3335 = vadd.f32 %v2846, %v3247
      %v3336 = vadd.f32 %v2847, %v3252
      %v3337 = vadd.f32 %v2848, %v3255
      %v3338 = vadd.f32 %v2849, %v3260
      %v3339 = vadd.f32 %v2850, %v3263
      %v3340 = vadd.f32 %v2851, %v3268
      %v3341 = vadd.f32 %v2852, %v3271
      %v3342 = vadd.f32 %v2853, %v3276
      %v3343 = vadd.f32 %v2854, %v3279
      %v3344 = vadd.f32 %v2855, %v3284
      %v3345 = vadd.f32 %v2856, %v3287
      %v3346 = vadd.f32 %v2857, %v3292
      %v3347 = vadd.f32 %v2858, %v3295
      %v3348 = vadd.f32 %v2859, %v3300
      %v3349 = vadd.f32 %v2860, %v3303
      %v3350 = vadd.f32 %v2861, %v3308
      %v3351 = vadd.f32 %v2862, %v3311
      %v3352 = vadd.f32 %v2863, %v3316
      %v3353 = vadd.f32 %v2864, %v3319
      %s3354 = scalar_lea.vmem %s216, 24
      %v3355 = vld [vmem:[%s3354] sm:$0xf]
      %v3356 = vld [vmem:[%s3354 + $0x4] sm:$0xf]
      %v3357 = vld [vmem:[%s3354 + $0xc] sm:$0xf]
      %v3358 = vld [vmem:[%s3354 + $0x10] sm:$0xf]
      %v3359 = vld [vmem:[%s3354 + $0x18] sm:$0xf]
      %v3360 = vld [vmem:[%s3354 + $0x1c] sm:$0xf]
      %v3361 = vld [vmem:[%s3354 + $0x24] sm:$0xf]
      %v3362 = vld [vmem:[%s3354 + $0x28] sm:$0xf]
      %v3363 = vld [vmem:[%s3354 + $0x30] sm:$0xf]
      %v3364 = vld [vmem:[%s3354 + $0x34] sm:$0xf]
      %v3365 = vld [vmem:[%s3354 + $0x3c] sm:$0xf]
      %v3366 = vld [vmem:[%s3354 + $0x40] sm:$0xf]
      %v3367 = vld [vmem:[%s3354 + $0x48] sm:$0xf]
      %v3368 = vld [vmem:[%s3354 + $0x4c] sm:$0xf]
      %v3369 = vld [vmem:[%s3354 + $0x54] sm:$0xf]
      %v3370 = vld [vmem:[%s3354 + $0x58] sm:$0xf]
      %v3371 = vld [vmem:[%s3354 + $0x60] sm:$0xf]
      %v3372 = vld [vmem:[%s3354 + $0x64] sm:$0xf]
      %v3373 = vld [vmem:[%s3354 + $0x6c] sm:$0xf]
      %v3374 = vld [vmem:[%s3354 + $0x70] sm:$0xf]
      %v3375 = vld [vmem:[%s3354 + $0x78] sm:$0xf]
      %v3376 = vld [vmem:[%s3354 + $0x7c] sm:$0xf]
      %v3377 = vld [vmem:[%s3354 + $0x84] sm:$0xf]
      %v3378 = vld [vmem:[%s3354 + $0x88] sm:$0xf]
      %v3379 = vld [vmem:[%s3354 + $0x90] sm:$0xf]
      %v3380 = vld [vmem:[%s3354 + $0x94] sm:$0xf]
      %v3381 = vld [vmem:[%s3354 + $0x9c] sm:$0xf]
      %v3382 = vld [vmem:[%s3354 + $0xa0] sm:$0xf]
      %v3383 = vld [vmem:[%s3354 + $0xa8] sm:$0xf]
      %v3384 = vld [vmem:[%s3354 + $0xac] sm:$0xf]
      %v3385 = vld [vmem:[%s3354 + $0xb4] sm:$0xf]
      %v3386 = vld [vmem:[%s3354 + $0xb8] sm:$0xf]
      %s3387 = scalar_lea.vmem %s1, 120
      %v3388 = vld [vmem:[%s3387] sm:$0xf]
      %v3389 = vld [vmem:[%s3387 + $0x4] sm:$0xf]
      %v3390 = vld [vmem:[%s3387 + $0x8] sm:$0xf]
      %v3391 = vld [vmem:[%s3387 + $0xc] sm:$0xf]
      %v3392 = vld [vmem:[%s3387 + $0x10] sm:$0x3]
      %v3425 = vunpack.c.l.b16 %v3355
      %v3426 = vunpack.c.l.b16 %v3356
      %v3427 = vunpack.c.l.b16 %v3357
      %v3428 = vunpack.c.l.b16 %v3358
      %v3429 = vunpack.c.l.b16 %v3359
      %v3430 = vunpack.c.l.b16 %v3360
      %v3431 = vunpack.c.l.b16 %v3361
      %v3432 = vunpack.c.l.b16 %v3362
      %v3433 = vunpack.c.l.b16 %v3363
      %v3434 = vunpack.c.l.b16 %v3364
      %v3435 = vunpack.c.l.b16 %v3365
      %v3436 = vunpack.c.l.b16 %v3366
      %v3437 = vunpack.c.l.b16 %v3367
      %v3438 = vunpack.c.l.b16 %v3368
      %v3439 = vunpack.c.l.b16 %v3369
      %v3440 = vunpack.c.l.b16 %v3370
      %v3441 = vunpack.c.l.b16 %v3371
      %v3442 = vunpack.c.l.b16 %v3372
      %v3443 = vunpack.c.l.b16 %v3373
      %v3444 = vunpack.c.l.b16 %v3374
      %v3445 = vunpack.c.l.b16 %v3375
      %v3446 = vunpack.c.l.b16 %v3376
      %v3447 = vunpack.c.l.b16 %v3377
      %v3448 = vunpack.c.l.b16 %v3378
      %v3449 = vunpack.c.l.b16 %v3379
      %v3450 = vunpack.c.l.b16 %v3380
      %v3451 = vunpack.c.l.b16 %v3381
      %v3452 = vunpack.c.l.b16 %v3382
      %v3453 = vunpack.c.l.b16 %v3383
      %v3454 = vunpack.c.l.b16 %v3384
      %v3455 = vunpack.c.l.b16 %v3385
      %v3456 = vunpack.c.l.b16 %v3386
      %v3457 = vpack.c.b16 %v3426, %v3425
      %v3458 = vpack.c.b16 %v3428, %v3427
      %v3459 = vpack.c.b16 %v3430, %v3429
      %v3460 = vpack.c.b16 %v3432, %v3431
      %v3461 = vpack.c.b16 %v3434, %v3433
      %v3462 = vpack.c.b16 %v3436, %v3435
      %v3463 = vpack.c.b16 %v3438, %v3437
      %v3464 = vpack.c.b16 %v3440, %v3439
      %v3465 = vpack.c.b16 %v3442, %v3441
      %v3466 = vpack.c.b16 %v3444, %v3443
      %v3467 = vpack.c.b16 %v3446, %v3445
      %v3468 = vpack.c.b16 %v3448, %v3447
      %v3469 = vpack.c.b16 %v3450, %v3449
      %v3470 = vpack.c.b16 %v3452, %v3451
      %v3471 = vpack.c.b16 %v3454, %v3453
      %v3472 = vpack.c.b16 %v3456, %v3455
      %v3478 = vunpack.c.l.b16 %v3388
      %v3479 = vunpack.c.l.b16 %v3389
      %v3480 = vunpack.c.l.b16 %v3390
      %v3481 = vunpack.c.l.b16 %v3391
      %v3482 = vunpack.c.l.b16 %v3392
      %v3483 = vpack.c.b16 %v3479, %v3478
      %v3484 = vpack.c.b16 %v3481, %v3480
      %v3485 = vpack.c.b16 %v3482, %v3482
      %v3489 = vsel %vm745, %v3457, 0
      %v3492 = vsel %vm745, %v3458, 0
      %v3495 = vsel %vm745, %v3459, 0
      %v3498 = vsel %vm745, %v3460, 0
      %v3501 = vsel %vm745, %v3461, 0
      %v3504 = vsel %vm745, %v3462, 0
      %v3507 = vsel %vm745, %v3463, 0
      %v3510 = vsel %vm745, %v3464, 0
      %v3513 = vsel %vm745, %v3465, 0
      %v3516 = vsel %vm745, %v3466, 0
      %v3519 = vsel %vm745, %v3467, 0
      %v3522 = vsel %vm745, %v3468, 0
      %v3525 = vsel %vm745, %v3469, 0
      %v3528 = vsel %vm745, %v3470, 0
      %v3531 = vsel %vm745, %v3471, 0
      %v3534 = vsel %vm745, %v3472, 0
      %v3537 = vsel %vm794, %v3485, 0
      %3539 = vmatprep.subr.bf16.mxu0 0
      %3540 = vmatpush1.bf16.msra.mxu0 %v3483
      %3541 = vmatprep.subr.bf16.mxu0 0
      %3542 = vmatpush1.bf16.msra.mxu0 %v3484
      %3543 = vmatprep.subr.bf16.mxu0 0
      %3544 = vmatpush1.bf16.msra.mxu0 %v3537
      %3545 = vmatprep.subr.bf16.mxu0 0
      %3546 = vmatpush1.bf16.msra.mxu0 0
      %3547 = vmatprep.subr.bf16.mxu0 0
      %3548 = vmatpush1.bf16.msra.mxu0 0
      %3549 = vmatprep.subr.bf16.mxu0 0
      %3550 = vmatpush1.bf16.msra.mxu0 0
      %3551 = vmatprep.subr.bf16.mxu0 0
      %3552 = vmatpush1.bf16.msra.mxu0 0
      %3553 = vmatprep.subr.bf16.mxu0 0
      %3554 = vmatpush1.bf16.msra.mxu0 0
      %3555 = vmatprep.subr.bf16.mxu0 0
      %3556 = vmatpush1.bf16.msra.mxu0 0
      %3557 = vmatprep.subr.bf16.mxu0 0
      %3558 = vmatpush1.bf16.msra.mxu0 0
      %3559 = vmatprep.subr.bf16.mxu0 0
      %3560 = vmatpush1.bf16.msra.mxu0 0
      %3561 = vmatprep.subr.bf16.mxu0 0
      %3562 = vmatpush1.bf16.msra.mxu0 0
      %3563 = vmatprep.subr.bf16.mxu0 0
      %3564 = vmatpush1.bf16.msra.mxu0 0
      %3565 = vmatprep.subr.bf16.mxu0 0
      %3566 = vmatpush1.bf16.msra.mxu0 0
      %3567 = vmatprep.subr.bf16.mxu0 0
      %3568 = vmatpush1.bf16.msra.mxu0 0
      %3569 = vmatprep.subr.bf16.mxu0 0
      %3570 = vmatpush1.bf16.msra.mxu0 0
      %3571 = vmatprep.mubr.bf16.mxu0 0
      %3572 = vmatmul.mubr.bf16.gmra.mrb[0].mxu0 %v3489
      %v3573 = vpop.f32.mrb[0].mxu0
      %v3574 = vadd.f32 0.0, %v3573
      %v3575 = vpop.f32.mrb[0].mxu0
      %v3576 = vpop.f32.mrb[0].mxu0
      %v3577 = vadd.f32 0.0, %v3576
      %v3578 = vpop.f32.mrb[0].mxu0
      %3579 = vmatprep.mubr.bf16.mxu0 0
      %3580 = vmatmul.mubr.bf16.gmra.mrb[0].mxu0 %v3492
      %v3581 = vpop.f32.mrb[0].mxu0
      %v3582 = vadd.f32 0.0, %v3581
      %v3583 = vpop.f32.mrb[0].mxu0
      %v3584 = vpop.f32.mrb[0].mxu0
      %v3585 = vadd.f32 0.0, %v3584
      %v3586 = vpop.f32.mrb[0].mxu0
      %3587 = vmatprep.mubr.bf16.mxu0 0
      %3588 = vmatmul.mubr.bf16.gmra.mrb[0].mxu0 %v3495
      %v3589 = vpop.f32.mrb[0].mxu0
      %v3590 = vadd.f32 0.0, %v3589
      %v3591 = vpop.f32.mrb[0].mxu0
      %v3592 = vpop.f32.mrb[0].mxu0
      %v3593 = vadd.f32 0.0, %v3592
      %v3594 = vpop.f32.mrb[0].mxu0
      %3595 = vmatprep.mubr.bf16.mxu0 0
      %3596 = vmatmul.mubr.bf16.gmra.mrb[0].mxu0 %v3498
      %v3597 = vpop.f32.mrb[0].mxu0
      %v3598 = vadd.f32 0.0, %v3597
      %v3599 = vpop.f32.mrb[0].mxu0
      %v3600 = vpop.f32.mrb[0].mxu0
      %v3601 = vadd.f32 0.0, %v3600
      %v3602 = vpop.f32.mrb[0].mxu0
      %3603 = vmatprep.mubr.bf16.mxu0 0
      %3604 = vmatmul.mubr.bf16.gmra.mrb[0].mxu0 %v3501
      %v3605 = vpop.f32.mrb[0].mxu0
      %v3606 = vadd.f32 0.0, %v3605
      %v3607 = vpop.f32.mrb[0].mxu0
      %v3608 = vpop.f32.mrb[0].mxu0
      %v3609 = vadd.f32 0.0, %v3608
      %v3610 = vpop.f32.mrb[0].mxu0
      %3611 = vmatprep.mubr.bf16.mxu0 0
      %3612 = vmatmul.mubr.bf16.gmra.mrb[0].mxu0 %v3504
      %v3613 = vpop.f32.mrb[0].mxu0
      %v3614 = vadd.f32 0.0, %v3613
      %v3615 = vpop.f32.mrb[0].mxu0
      %v3616 = vpop.f32.mrb[0].mxu0
      %v3617 = vadd.f32 0.0, %v3616
      %v3618 = vpop.f32.mrb[0].mxu0
      %3619 = vmatprep.mubr.bf16.mxu0 0
      %3620 = vmatmul.mubr.bf16.gmra.mrb[0].mxu0 %v3507
      %v3621 = vpop.f32.mrb[0].mxu0
      %v3622 = vadd.f32 0.0, %v3621
      %v3623 = vpop.f32.mrb[0].mxu0
      %v3624 = vpop.f32.mrb[0].mxu0
      %v3625 = vadd.f32 0.0, %v3624
      %v3626 = vpop.f32.mrb[0].mxu0
      %3627 = vmatprep.mubr.bf16.mxu0 0
      %3628 = vmatmul.mubr.bf16.gmra.mrb[0].mxu0 %v3510
      %v3629 = vpop.f32.mrb[0].mxu0
      %v3630 = vadd.f32 0.0, %v3629
      %v3631 = vpop.f32.mrb[0].mxu0
      %v3632 = vpop.f32.mrb[0].mxu0
      %v3633 = vadd.f32 0.0, %v3632
      %v3634 = vpop.f32.mrb[0].mxu0
      %3635 = vmatprep.mubr.bf16.mxu0 0
      %3636 = vmatmul.mubr.bf16.gmra.mrb[0].mxu0 %v3513
      %v3637 = vpop.f32.mrb[0].mxu0
      %v3638 = vadd.f32 0.0, %v3637
      %v3639 = vpop.f32.mrb[0].mxu0
      %v3640 = vpop.f32.mrb[0].mxu0
      %v3641 = vadd.f32 0.0, %v3640
      %v3642 = vpop.f32.mrb[0].mxu0
      %3643 = vmatprep.mubr.bf16.mxu0 0
      %3644 = vmatmul.mubr.bf16.gmra.mrb[0].mxu0 %v3516
      %v3645 = vpop.f32.mrb[0].mxu0
      %v3646 = vadd.f32 0.0, %v3645
      %v3647 = vpop.f32.mrb[0].mxu0
      %v3648 = vpop.f32.mrb[0].mxu0
      %v3649 = vadd.f32 0.0, %v3648
      %v3650 = vpop.f32.mrb[0].mxu0
      %3651 = vmatprep.mubr.bf16.mxu0 0
      %3652 = vmatmul.mubr.bf16.gmra.mrb[0].mxu0 %v3519
      %v3653 = vpop.f32.mrb[0].mxu0
      %v3654 = vadd.f32 0.0, %v3653
      %v3655 = vpop.f32.mrb[0].mxu0
      %v3656 = vpop.f32.mrb[0].mxu0
      %v3657 = vadd.f32 0.0, %v3656
      %v3658 = vpop.f32.mrb[0].mxu0
      %3659 = vmatprep.mubr.bf16.mxu0 0
      %3660 = vmatmul.mubr.bf16.gmra.mrb[0].mxu0 %v3522
      %v3661 = vpop.f32.mrb[0].mxu0
      %v3662 = vadd.f32 0.0, %v3661
      %v3663 = vpop.f32.mrb[0].mxu0
      %v3664 = vpop.f32.mrb[0].mxu0
      %v3665 = vadd.f32 0.0, %v3664
      %v3666 = vpop.f32.mrb[0].mxu0
      %3667 = vmatprep.mubr.bf16.mxu0 0
      %3668 = vmatmul.mubr.bf16.gmra.mrb[0].mxu0 %v3525
      %v3669 = vpop.f32.mrb[0].mxu0
      %v3670 = vadd.f32 0.0, %v3669
      %v3671 = vpop.f32.mrb[0].mxu0
      %v3672 = vpop.f32.mrb[0].mxu0
      %v3673 = vadd.f32 0.0, %v3672
      %v3674 = vpop.f32.mrb[0].mxu0
      %3675 = vmatprep.mubr.bf16.mxu0 0
      %3676 = vmatmul.mubr.bf16.gmra.mrb[0].mxu0 %v3528
      %v3677 = vpop.f32.mrb[0].mxu0
      %v3678 = vadd.f32 0.0, %v3677
      %v3679 = vpop.f32.mrb[0].mxu0
      %v3680 = vpop.f32.mrb[0].mxu0
      %v3681 = vadd.f32 0.0, %v3680
      %v3682 = vpop.f32.mrb[0].mxu0
      %3683 = vmatprep.mubr.bf16.mxu0 0
      %3684 = vmatmul.mubr.bf16.gmra.mrb[0].mxu0 %v3531
      %v3685 = vpop.f32.mrb[0].mxu0
      %v3686 = vadd.f32 0.0, %v3685
      %v3687 = vpop.f32.mrb[0].mxu0
      %v3688 = vpop.f32.mrb[0].mxu0
      %v3689 = vadd.f32 0.0, %v3688
      %v3690 = vpop.f32.mrb[0].mxu0
      %3691 = vmatprep.mubr.bf16.mxu0 0
      %3692 = vmatmul.mubr.bf16.gmra.mrb[0].mxu0 %v3534
      %v3693 = vpop.f32.mrb[0].mxu0
      %v3694 = vadd.f32 0.0, %v3693
      %v3695 = vpop.f32.mrb[0].mxu0
      %v3696 = vpop.f32.mrb[0].mxu0
      %v3697 = vadd.f32 0.0, %v3696
      %v3698 = vpop.f32.mrb[0].mxu0
      %3699 = vdwg.mxu0
      %v3700 = vadd.f32 %v3322, %v3574
      %v3701 = vadd.f32 %v3323, %v3577
      %v3702 = vadd.f32 %v3324, %v3582
      %v3703 = vadd.f32 %v3325, %v3585
      %v3704 = vadd.f32 %v3326, %v3590
      %v3705 = vadd.f32 %v3327, %v3593
      %v3706 = vadd.f32 %v3328, %v3598
      %v3707 = vadd.f32 %v3329, %v3601
      %v3708 = vadd.f32 %v3330, %v3606
      %v3709 = vadd.f32 %v3331, %v3609
      %v3710 = vadd.f32 %v3332, %v3614
      %v3711 = vadd.f32 %v3333, %v3617
      %v3712 = vadd.f32 %v3334, %v3622
      %v3713 = vadd.f32 %v3335, %v3625
      %v3714 = vadd.f32 %v3336, %v3630
      %v3715 = vadd.f32 %v3337, %v3633
      %v3716 = vadd.f32 %v3338, %v3638
      %v3717 = vadd.f32 %v3339, %v3641
      %v3718 = vadd.f32 %v3340, %v3646
      %v3719 = vadd.f32 %v3341, %v3649
      %v3720 = vadd.f32 %v3342, %v3654
      %v3721 = vadd.f32 %v3343, %v3657
      %v3722 = vadd.f32 %v3344, %v3662
      %v3723 = vadd.f32 %v3345, %v3665
      %v3724 = vadd.f32 %v3346, %v3670
      %v3725 = vadd.f32 %v3347, %v3673
      %v3726 = vadd.f32 %v3348, %v3678
      %v3727 = vadd.f32 %v3349, %v3681
      %v3728 = vadd.f32 %v3350, %v3686
      %v3729 = vadd.f32 %v3351, %v3689
      %v3730 = vadd.f32 %v3352, %v3694
      %v3731 = vadd.f32 %v3353, %v3697
      %v3732 = vld [vmem:[%s3354] sm:$0xf]
      %v3733 = vld [vmem:[%s3354 + $0x4] sm:$0xf]
      %v3734 = vld [vmem:[%s3354 + $0x8] sm:$0x1]
      %v3735 = vld [vmem:[%s3354 + $0xc] sm:$0xf]
      %v3736 = vld [vmem:[%s3354 + $0x10] sm:$0xf]
      %v3737 = vld [vmem:[%s3354 + $0x14] sm:$0x1]
      %v3738 = vld [vmem:[%s3354 + $0x18] sm:$0xf]
      %v3739 = vld [vmem:[%s3354 + $0x1c] sm:$0xf]
      %v3740 = vld [vmem:[%s3354 + $0x20] sm:$0x1]
      %v3741 = vld [vmem:[%s3354 + $0x24] sm:$0xf]
      %v3742 = vld [vmem:[%s3354 + $0x28] sm:$0xf]
      %v3743 = vld [vmem:[%s3354 + $0x2c] sm:$0x1]
      %v3744 = vld [vmem:[%s3354 + $0x30] sm:$0xf]
      %v3745 = vld [vmem:[%s3354 + $0x34] sm:$0xf]
      %v3746 = vld [vmem:[%s3354 + $0x38] sm:$0x1]
      %v3747 = vld [vmem:[%s3354 + $0x3c] sm:$0xf]
      %v3748 = vld [vmem:[%s3354 + $0x40] sm:$0xf]
      %v3749 = vld [vmem:[%s3354 + $0x44] sm:$0x1]
      %v3750 = vld [vmem:[%s3354 + $0x48] sm:$0xf]
      %v3751 = vld [vmem:[%s3354 + $0x4c] sm:$0xf]
      %v3752 = vld [vmem:[%s3354 + $0x50] sm:$0x1]
      %v3753 = vld [vmem:[%s3354 + $0x54] sm:$0xf]
      %v3754 = vld [vmem:[%s3354 + $0x58] sm:$0xf]
      %v3755 = vld [vmem:[%s3354 + $0x5c] sm:$0x1]
      %v3756 = vld [vmem:[%s3354 + $0x60] sm:$0xf]
      %v3757 = vld [vmem:[%s3354 + $0x64] sm:$0xf]
      %v3758 = vld [vmem:[%s3354 + $0x68] sm:$0x1]
      %v3759 = vld [vmem:[%s3354 + $0x6c] sm:$0xf]
      %v3760 = vld [vmem:[%s3354 + $0x70] sm:$0xf]
      %v3761 = vld [vmem:[%s3354 + $0x74] sm:$0x1]
      %v3762 = vld [vmem:[%s3354 + $0x78] sm:$0xf]
      %v3763 = vld [vmem:[%s3354 + $0x7c] sm:$0xf]
      %v3764 = vld [vmem:[%s3354 + $0x80] sm:$0x1]
      %v3765 = vld [vmem:[%s3354 + $0x84] sm:$0xf]
      %v3766 = vld [vmem:[%s3354 + $0x88] sm:$0xf]
      %v3767 = vld [vmem:[%s3354 + $0x8c] sm:$0x1]
      %v3768 = vld [vmem:[%s3354 + $0x90] sm:$0xf]
      %v3769 = vld [vmem:[%s3354 + $0x94] sm:$0xf]
      %v3770 = vld [vmem:[%s3354 + $0x98] sm:$0x1]
      %v3771 = vld [vmem:[%s3354 + $0x9c] sm:$0xf]
      %v3772 = vld [vmem:[%s3354 + $0xa0] sm:$0xf]
      %v3773 = vld [vmem:[%s3354 + $0xa4] sm:$0x1]
      %v3774 = vld [vmem:[%s3354 + $0xa8] sm:$0xf]
      %v3775 = vld [vmem:[%s3354 + $0xac] sm:$0xf]
      %v3776 = vld [vmem:[%s3354 + $0xb0] sm:$0x1]
      %v3777 = vld [vmem:[%s3354 + $0xb4] sm:$0xf]
      %v3778 = vld [vmem:[%s3354 + $0xb8] sm:$0xf]
      %v3779 = vld [vmem:[%s3354 + $0xbc] sm:$0x1]
      %v3781 = vshrl.u32 %v3732, 16
      %v3783 = vrot.slane %v3781, 4
      %v3784 = vshll.u32 %v3732, 16
      %v3786 = vrot.slane %v3784, 5
      %v3787 = vor.u32 %v3783, %v3786
      %v3788 = vrot.slane %v3787, 4
      %v3790 = vshll.u32 %v3733, 16
      %v3792 = vrot.slane %v3790, 5
      %v3793 = vsel %vm291, %v3788, %v3792
      %v3794 = vshrl.u32 %v3733, 16
      %v3796 = vrot.slane %v3794, 4
      %v3797 = vor.u32 %v3796, %v3792
      %v3798 = vrot.slane %v3797, 4
      %v3800 = vshll.u32 %v3734, 16
      %v3802 = vrot.slane %v3800, 5
      %v3803 = vsel %vm291, %v3798, %v3802
      %v3805 = vshrl.u32 %v3735, 16
      %v3807 = vrot.slane %v3805, 4
      %v3808 = vshll.u32 %v3735, 16
      %v3810 = vrot.slane %v3808, 5
      %v3811 = vor.u32 %v3807, %v3810
      %v3812 = vrot.slane %v3811, 4
      %v3814 = vshll.u32 %v3736, 16
      %v3816 = vrot.slane %v3814, 5
      %v3817 = vsel %vm291, %v3812, %v3816
      %v3818 = vshrl.u32 %v3736, 16
      %v3820 = vrot.slane %v3818, 4
      %v3821 = vor.u32 %v3820, %v3816
      %v3822 = vrot.slane %v3821, 4
      %v3824 = vshll.u32 %v3737, 16
      %v3826 = vrot.slane %v3824, 5
      %v3827 = vsel %vm291, %v3822, %v3826
      %v3829 = vshrl.u32 %v3738, 16
      %v3831 = vrot.slane %v3829, 4
      %v3832 = vshll.u32 %v3738, 16
      %v3834 = vrot.slane %v3832, 5
      %v3835 = vor.u32 %v3831, %v3834
      %v3836 = vrot.slane %v3835, 4
      %v3838 = vshll.u32 %v3739, 16
      %v3840 = vrot.slane %v3838, 5
      %v3841 = vsel %vm291, %v3836, %v3840
      %v3842 = vshrl.u32 %v3739, 16
      %v3844 = vrot.slane %v3842, 4
      %v3845 = vor.u32 %v3844, %v3840
      %v3846 = vrot.slane %v3845, 4
      %v3848 = vshll.u32 %v3740, 16
      %v3850 = vrot.slane %v3848, 5
      %v3851 = vsel %vm291, %v3846, %v3850
      %v3853 = vshrl.u32 %v3741, 16
      %v3855 = vrot.slane %v3853, 4
      %v3856 = vshll.u32 %v3741, 16
      %v3858 = vrot.slane %v3856, 5
      %v3859 = vor.u32 %v3855, %v3858
      %v3860 = vrot.slane %v3859, 4
      %v3862 = vshll.u32 %v3742, 16
      %v3864 = vrot.slane %v3862, 5
      %v3865 = vsel %vm291, %v3860, %v3864
      %v3866 = vshrl.u32 %v3742, 16
      %v3868 = vrot.slane %v3866, 4
      %v3869 = vor.u32 %v3868, %v3864
      %v3870 = vrot.slane %v3869, 4
      %v3872 = vshll.u32 %v3743, 16
      %v3874 = vrot.slane %v3872, 5
      %v3875 = vsel %vm291, %v3870, %v3874
      %v3877 = vshrl.u32 %v3744, 16
      %v3879 = vrot.slane %v3877, 4
      %v3880 = vshll.u32 %v3744, 16
      %v3882 = vrot.slane %v3880, 5
      %v3883 = vor.u32 %v3879, %v3882
      %v3884 = vrot.slane %v3883, 4
      %v3886 = vshll.u32 %v3745, 16
      %v3888 = vrot.slane %v3886, 5
      %v3889 = vsel %vm291, %v3884, %v3888
      %v3890 = vshrl.u32 %v3745, 16
      %v3892 = vrot.slane %v3890, 4
      %v3893 = vor.u32 %v3892, %v3888
      %v3894 = vrot.slane %v3893, 4
      %v3896 = vshll.u32 %v3746, 16
      %v3898 = vrot.slane %v3896, 5
      %v3899 = vsel %vm291, %v3894, %v3898
      %v3901 = vshrl.u32 %v3747, 16
      %v3903 = vrot.slane %v3901, 4
      %v3904 = vshll.u32 %v3747, 16
      %v3906 = vrot.slane %v3904, 5
      %v3907 = vor.u32 %v3903, %v3906
      %v3908 = vrot.slane %v3907, 4
      %v3910 = vshll.u32 %v3748, 16
      %v3912 = vrot.slane %v3910, 5
      %v3913 = vsel %vm291, %v3908, %v3912
      %v3914 = vshrl.u32 %v3748, 16
      %v3916 = vrot.slane %v3914, 4
      %v3917 = vor.u32 %v3916, %v3912
      %v3918 = vrot.slane %v3917, 4
      %v3920 = vshll.u32 %v3749, 16
      %v3922 = vrot.slane %v3920, 5
      %v3923 = vsel %vm291, %v3918, %v3922
      %v3925 = vshrl.u32 %v3750, 16
      %v3927 = vrot.slane %v3925, 4
      %v3928 = vshll.u32 %v3750, 16
      %v3930 = vrot.slane %v3928, 5
      %v3931 = vor.u32 %v3927, %v3930
      %v3932 = vrot.slane %v3931, 4
      %v3934 = vshll.u32 %v3751, 16
      %v3936 = vrot.slane %v3934, 5
      %v3937 = vsel %vm291, %v3932, %v3936
      %v3938 = vshrl.u32 %v3751, 16
      %v3940 = vrot.slane %v3938, 4
      %v3941 = vor.u32 %v3940, %v3936
      %v3942 = vrot.slane %v3941, 4
      %v3944 = vshll.u32 %v3752, 16
      %v3946 = vrot.slane %v3944, 5
      %v3947 = vsel %vm291, %v3942, %v3946
      %v3949 = vshrl.u32 %v3753, 16
      %v3951 = vrot.slane %v3949, 4
      %v3952 = vshll.u32 %v3753, 16
      %v3954 = vrot.slane %v3952, 5
      %v3955 = vor.u32 %v3951, %v3954
      %v3956 = vrot.slane %v3955, 4
      %v3958 = vshll.u32 %v3754, 16
      %v3960 = vrot.slane %v3958, 5
      %v3961 = vsel %vm291, %v3956, %v3960
      %v3962 = vshrl.u32 %v3754, 16
      %v3964 = vrot.slane %v3962, 4
      %v3965 = vor.u32 %v3964, %v3960
      %v3966 = vrot.slane %v3965, 4
      %v3968 = vshll.u32 %v3755, 16
      %v3970 = vrot.slane %v3968, 5
      %v3971 = vsel %vm291, %v3966, %v3970
      %v3973 = vshrl.u32 %v3756, 16
      %v3975 = vrot.slane %v3973, 4
      %v3976 = vshll.u32 %v3756, 16
      %v3978 = vrot.slane %v3976, 5
      %v3979 = vor.u32 %v3975, %v3978
      %v3980 = vrot.slane %v3979, 4
      %v3982 = vshll.u32 %v3757, 16
      %v3984 = vrot.slane %v3982, 5
      %v3985 = vsel %vm291, %v3980, %v3984
      %v3986 = vshrl.u32 %v3757, 16
      %v3988 = vrot.slane %v3986, 4
      %v3989 = vor.u32 %v3988, %v3984
      %v3990 = vrot.slane %v3989, 4
      %v3992 = vshll.u32 %v3758, 16
      %v3994 = vrot.slane %v3992, 5
      %v3995 = vsel %vm291, %v3990, %v3994
      %v3997 = vshrl.u32 %v3759, 16
      %v3999 = vrot.slane %v3997, 4
      %v4000 = vshll.u32 %v3759, 16
      %v4002 = vrot.slane %v4000, 5
      %v4003 = vor.u32 %v3999, %v4002
      %v4004 = vrot.slane %v4003, 4
      %v4006 = vshll.u32 %v3760, 16
      %v4008 = vrot.slane %v4006, 5
      %v4009 = vsel %vm291, %v4004, %v4008
      %v4010 = vshrl.u32 %v3760, 16
      %v4012 = vrot.slane %v4010, 4
      %v4013 = vor.u32 %v4012, %v4008
      %v4014 = vrot.slane %v4013, 4
      %v4016 = vshll.u32 %v3761, 16
      %v4018 = vrot.slane %v4016, 5
      %v4019 = vsel %vm291, %v4014, %v4018
      %v4021 = vshrl.u32 %v3762, 16
      %v4023 = vrot.slane %v4021, 4
      %v4024 = vshll.u32 %v3762, 16
      %v4026 = vrot.slane %v4024, 5
      %v4027 = vor.u32 %v4023, %v4026
      %v4028 = vrot.slane %v4027, 4
      %v4030 = vshll.u32 %v3763, 16
      %v4032 = vrot.slane %v4030, 5
      %v4033 = vsel %vm291, %v4028, %v4032
      %v4034 = vshrl.u32 %v3763, 16
      %v4036 = vrot.slane %v4034, 4
      %v4037 = vor.u32 %v4036, %v4032
      %v4038 = vrot.slane %v4037, 4
      %v4040 = vshll.u32 %v3764, 16
      %v4042 = vrot.slane %v4040, 5
      %v4043 = vsel %vm291, %v4038, %v4042
      %v4045 = vshrl.u32 %v3765, 16
      %v4047 = vrot.slane %v4045, 4
      %v4048 = vshll.u32 %v3765, 16
      %v4050 = vrot.slane %v4048, 5
      %v4051 = vor.u32 %v4047, %v4050
      %v4052 = vrot.slane %v4051, 4
      %v4054 = vshll.u32 %v3766, 16
      %v4056 = vrot.slane %v4054, 5
      %v4057 = vsel %vm291, %v4052, %v4056
      %v4058 = vshrl.u32 %v3766, 16
      %v4060 = vrot.slane %v4058, 4
      %v4061 = vor.u32 %v4060, %v4056
      %v4062 = vrot.slane %v4061, 4
      %v4064 = vshll.u32 %v3767, 16
      %v4066 = vrot.slane %v4064, 5
      %v4067 = vsel %vm291, %v4062, %v4066
      %v4069 = vshrl.u32 %v3768, 16
      %v4071 = vrot.slane %v4069, 4
      %v4072 = vshll.u32 %v3768, 16
      %v4074 = vrot.slane %v4072, 5
      %v4075 = vor.u32 %v4071, %v4074
      %v4076 = vrot.slane %v4075, 4
      %v4078 = vshll.u32 %v3769, 16
      %v4080 = vrot.slane %v4078, 5
      %v4081 = vsel %vm291, %v4076, %v4080
      %v4082 = vshrl.u32 %v3769, 16
      %v4084 = vrot.slane %v4082, 4
      %v4085 = vor.u32 %v4084, %v4080
      %v4086 = vrot.slane %v4085, 4
      %v4088 = vshll.u32 %v3770, 16
      %v4090 = vrot.slane %v4088, 5
      %v4091 = vsel %vm291, %v4086, %v4090
      %v4093 = vshrl.u32 %v3771, 16
      %v4095 = vrot.slane %v4093, 4
      %v4096 = vshll.u32 %v3771, 16
      %v4098 = vrot.slane %v4096, 5
      %v4099 = vor.u32 %v4095, %v4098
      %v4100 = vrot.slane %v4099, 4
      %v4102 = vshll.u32 %v3772, 16
      %v4104 = vrot.slane %v4102, 5
      %v4105 = vsel %vm291, %v4100, %v4104
      %v4106 = vshrl.u32 %v3772, 16
      %v4108 = vrot.slane %v4106, 4
      %v4109 = vor.u32 %v4108, %v4104
      %v4110 = vrot.slane %v4109, 4
      %v4112 = vshll.u32 %v3773, 16
      %v4114 = vrot.slane %v4112, 5
      %v4115 = vsel %vm291, %v4110, %v4114
      %v4117 = vshrl.u32 %v3774, 16
      %v4119 = vrot.slane %v4117, 4
      %v4120 = vshll.u32 %v3774, 16
      %v4122 = vrot.slane %v4120, 5
      %v4123 = vor.u32 %v4119, %v4122
      %v4124 = vrot.slane %v4123, 4
      %v4126 = vshll.u32 %v3775, 16
      %v4128 = vrot.slane %v4126, 5
      %v4129 = vsel %vm291, %v4124, %v4128
      %v4130 = vshrl.u32 %v3775, 16
      %v4132 = vrot.slane %v4130, 4
      %v4133 = vor.u32 %v4132, %v4128
      %v4134 = vrot.slane %v4133, 4
      %v4136 = vshll.u32 %v3776, 16
      %v4138 = vrot.slane %v4136, 5
      %v4139 = vsel %vm291, %v4134, %v4138
      %v4141 = vshrl.u32 %v3777, 16
      %v4143 = vrot.slane %v4141, 4
      %v4144 = vshll.u32 %v3777, 16
      %v4146 = vrot.slane %v4144, 5
      %v4147 = vor.u32 %v4143, %v4146
      %v4148 = vrot.slane %v4147, 4
      %v4150 = vshll.u32 %v3778, 16
      %v4152 = vrot.slane %v4150, 5
      %v4153 = vsel %vm291, %v4148, %v4152
      %v4154 = vshrl.u32 %v3778, 16
      %v4156 = vrot.slane %v4154, 4
      %v4157 = vor.u32 %v4156, %v4152
      %v4158 = vrot.slane %v4157, 4
      %v4160 = vshll.u32 %v3779, 16
      %v4162 = vrot.slane %v4160, 5
      %v4163 = vsel %vm291, %v4158, %v4162
      %s4164 = scalar_lea.vmem %s1, 140
      %v4165 = vld [vmem:[%s4164] sm:$0xf]
      %v4166 = vld [vmem:[%s4164 + $0x4] sm:$0xf]
      %v4167 = vld [vmem:[%s4164 + $0x8] sm:$0xf]
      %v4168 = vld [vmem:[%s4164 + $0xc] sm:$0xf]
      %v4169 = vld [vmem:[%s4164 + $0x10] sm:$0x3]
      %v4170 = vunpack.c.l.b16 %v3793
      %v4171 = vunpack.c.l.b16 %v3803
      %v4172 = vunpack.c.l.b16 %v3817
      %v4173 = vunpack.c.l.b16 %v3827
      %v4174 = vunpack.c.l.b16 %v3841
      %v4175 = vunpack.c.l.b16 %v3851
      %v4176 = vunpack.c.l.b16 %v3865
      %v4177 = vunpack.c.l.b16 %v3875
      %v4178 = vunpack.c.l.b16 %v3889
      %v4179 = vunpack.c.l.b16 %v3899
      %v4180 = vunpack.c.l.b16 %v3913
      %v4181 = vunpack.c.l.b16 %v3923
      %v4182 = vunpack.c.l.b16 %v3937
      %v4183 = vunpack.c.l.b16 %v3947
      %v4184 = vunpack.c.l.b16 %v3961
      %v4185 = vunpack.c.l.b16 %v3971
      %v4186 = vunpack.c.l.b16 %v3985
      %v4187 = vunpack.c.l.b16 %v3995
      %v4188 = vunpack.c.l.b16 %v4009
      %v4189 = vunpack.c.l.b16 %v4019
      %v4190 = vunpack.c.l.b16 %v4033
      %v4191 = vunpack.c.l.b16 %v4043
      %v4192 = vunpack.c.l.b16 %v4057
      %v4193 = vunpack.c.l.b16 %v4067
      %v4194 = vunpack.c.l.b16 %v4081
      %v4195 = vunpack.c.l.b16 %v4091
      %v4196 = vunpack.c.l.b16 %v4105
      %v4197 = vunpack.c.l.b16 %v4115
      %v4198 = vunpack.c.l.b16 %v4129
      %v4199 = vunpack.c.l.b16 %v4139
      %v4200 = vunpack.c.l.b16 %v4153
      %v4201 = vunpack.c.l.b16 %v4163
      %v4202 = vpack.c.b16 %v4171, %v4170
      %v4203 = vpack.c.b16 %v4173, %v4172
      %v4204 = vpack.c.b16 %v4175, %v4174
      %v4205 = vpack.c.b16 %v4177, %v4176
      %v4206 = vpack.c.b16 %v4179, %v4178
      %v4207 = vpack.c.b16 %v4181, %v4180
      %v4208 = vpack.c.b16 %v4183, %v4182
      %v4209 = vpack.c.b16 %v4185, %v4184
      %v4210 = vpack.c.b16 %v4187, %v4186
      %v4211 = vpack.c.b16 %v4189, %v4188
      %v4212 = vpack.c.b16 %v4191, %v4190
      %v4213 = vpack.c.b16 %v4193, %v4192
      %v4214 = vpack.c.b16 %v4195, %v4194
      %v4215 = vpack.c.b16 %v4197, %v4196
      %v4216 = vpack.c.b16 %v4199, %v4198
      %v4217 = vpack.c.b16 %v4201, %v4200
      %v4223 = vunpack.c.l.b16 %v4165
      %v4224 = vunpack.c.l.b16 %v4166
      %v4225 = vunpack.c.l.b16 %v4167
      %v4226 = vunpack.c.l.b16 %v4168
      %v4227 = vunpack.c.l.b16 %v4169
      %v4228 = vpack.c.b16 %v4224, %v4223
      %v4229 = vpack.c.b16 %v4226, %v4225
      %v4230 = vpack.c.b16 %v4227, %v4227
      %v4234 = vsel %vm745, %v4202, 0
      %v4237 = vsel %vm745, %v4203, 0
      %v4240 = vsel %vm745, %v4204, 0
      %v4243 = vsel %vm745, %v4205, 0
      %v4246 = vsel %vm745, %v4206, 0
      %v4249 = vsel %vm745, %v4207, 0
      %v4252 = vsel %vm745, %v4208, 0
      %v4255 = vsel %vm745, %v4209, 0
      %v4258 = vsel %vm745, %v4210, 0
      %v4261 = vsel %vm745, %v4211, 0
      %v4264 = vsel %vm745, %v4212, 0
      %v4267 = vsel %vm745, %v4213, 0
      %v4270 = vsel %vm745, %v4214, 0
      %v4273 = vsel %vm745, %v4215, 0
      %v4276 = vsel %vm745, %v4216, 0
      %v4279 = vsel %vm745, %v4217, 0
      %v4282 = vsel %vm794, %v4230, 0
      %4284 = vmatprep.subr.bf16.mxu0 0
      %4285 = vmatpush1.bf16.msra.mxu0 %v4228
      %4286 = vmatprep.subr.bf16.mxu0 0
      %4287 = vmatpush1.bf16.msra.mxu0 %v4229
      %4288 = vmatprep.subr.bf16.mxu0 0
      %4289 = vmatpush1.bf16.msra.mxu0 %v4282
      %4290 = vmatprep.subr.bf16.mxu0 0
      %4291 = vmatpush1.bf16.msra.mxu0 0
      %4292 = vmatprep.subr.bf16.mxu0 0
      %4293 = vmatpush1.bf16.msra.mxu0 0
      %4294 = vmatprep.subr.bf16.mxu0 0
      %4295 = vmatpush1.bf16.msra.mxu0 0
      %4296 = vmatprep.subr.bf16.mxu0 0
      %4297 = vmatpush1.bf16.msra.mxu0 0
      %4298 = vmatprep.subr.bf16.mxu0 0
      %4299 = vmatpush1.bf16.msra.mxu0 0
      %4300 = vmatprep.subr.bf16.mxu0 0
      %4301 = vmatpush1.bf16.msra.mxu0 0
      %4302 = vmatprep.subr.bf16.mxu0 0
      %4303 = vmatpush1.bf16.msra.mxu0 0
      %4304 = vmatprep.subr.bf16.mxu0 0
      %4305 = vmatpush1.bf16.msra.mxu0 0
      %4306 = vmatprep.subr.bf16.mxu0 0
      %4307 = vmatpush1.bf16.msra.mxu0 0
      %4308 = vmatprep.subr.bf16.mxu0 0
      %4309 = vmatpush1.bf16.msra.mxu0 0
      %4310 = vmatprep.subr.bf16.mxu0 0
      %4311 = vmatpush1.bf16.msra.mxu0 0
      %4312 = vmatprep.subr.bf16.mxu0 0
      %4313 = vmatpush1.bf16.msra.mxu0 0
      %4314 = vmatprep.subr.bf16.mxu0 0
      %4315 = vmatpush1.bf16.msra.mxu0 0
      %4316 = vmatprep.mubr.bf16.mxu0 0
      %4317 = vmatmul.mubr.bf16.gmra.mrb[0].mxu0 %v4234
      %v4318 = vpop.f32.mrb[0].mxu0
      %v4319 = vadd.f32 0.0, %v4318
      %v4320 = vpop.f32.mrb[0].mxu0
      %v4321 = vpop.f32.mrb[0].mxu0
      %v4322 = vadd.f32 0.0, %v4321
      %v4323 = vpop.f32.mrb[0].mxu0
      %4324 = vmatprep.mubr.bf16.mxu0 0
      %4325 = vmatmul.mubr.bf16.gmra.mrb[0].mxu0 %v4237
      %v4326 = vpop.f32.mrb[0].mxu0
      %v4327 = vadd.f32 0.0, %v4326
      %v4328 = vpop.f32.mrb[0].mxu0
      %v4329 = vpop.f32.mrb[0].mxu0
      %v4330 = vadd.f32 0.0, %v4329
      %v4331 = vpop.f32.mrb[0].mxu0
      %4332 = vmatprep.mubr.bf16.mxu0 0
      %4333 = vmatmul.mubr.bf16.gmra.mrb[0].mxu0 %v4240
      %v4334 = vpop.f32.mrb[0].mxu0
      %v4335 = vadd.f32 0.0, %v4334
      %v4336 = vpop.f32.mrb[0].mxu0
      %v4337 = vpop.f32.mrb[0].mxu0
      %v4338 = vadd.f32 0.0, %v4337
      %v4339 = vpop.f32.mrb[0].mxu0
      %4340 = vmatprep.mubr.bf16.mxu0 0
      %4341 = vmatmul.mubr.bf16.gmra.mrb[0].mxu0 %v4243
      %v4342 = vpop.f32.mrb[0].mxu0
      %v4343 = vadd.f32 0.0, %v4342
      %v4344 = vpop.f32.mrb[0].mxu0
      %v4345 = vpop.f32.mrb[0].mxu0
      %v4346 = vadd.f32 0.0, %v4345
      %v4347 = vpop.f32.mrb[0].mxu0
      %4348 = vmatprep.mubr.bf16.mxu0 0
      %4349 = vmatmul.mubr.bf16.gmra.mrb[0].mxu0 %v4246
      %v4350 = vpop.f32.mrb[0].mxu0
      %v4351 = vadd.f32 0.0, %v4350
      %v4352 = vpop.f32.mrb[0].mxu0
      %v4353 = vpop.f32.mrb[0].mxu0
      %v4354 = vadd.f32 0.0, %v4353
      %v4355 = vpop.f32.mrb[0].mxu0
      %4356 = vmatprep.mubr.bf16.mxu0 0
      %4357 = vmatmul.mubr.bf16.gmra.mrb[0].mxu0 %v4249
      %v4358 = vpop.f32.mrb[0].mxu0
      %v4359 = vadd.f32 0.0, %v4358
      %v4360 = vpop.f32.mrb[0].mxu0
      %v4361 = vpop.f32.mrb[0].mxu0
      %v4362 = vadd.f32 0.0, %v4361
      %v4363 = vpop.f32.mrb[0].mxu0
      %4364 = vmatprep.mubr.bf16.mxu0 0
      %4365 = vmatmul.mubr.bf16.gmra.mrb[0].mxu0 %v4252
      %v4366 = vpop.f32.mrb[0].mxu0
      %v4367 = vadd.f32 0.0, %v4366
      %v4368 = vpop.f32.mrb[0].mxu0
      %v4369 = vpop.f32.mrb[0].mxu0
      %v4370 = vadd.f32 0.0, %v4369
      %v4371 = vpop.f32.mrb[0].mxu0
      %4372 = vmatprep.mubr.bf16.mxu0 0
      %4373 = vmatmul.mubr.bf16.gmra.mrb[0].mxu0 %v4255
      %v4374 = vpop.f32.mrb[0].mxu0
      %v4375 = vadd.f32 0.0, %v4374
      %v4376 = vpop.f32.mrb[0].mxu0
      %v4377 = vpop.f32.mrb[0].mxu0
      %v4378 = vadd.f32 0.0, %v4377
      %v4379 = vpop.f32.mrb[0].mxu0
      %4380 = vmatprep.mubr.bf16.mxu0 0
      %4381 = vmatmul.mubr.bf16.gmra.mrb[0].mxu0 %v4258
      %v4382 = vpop.f32.mrb[0].mxu0
      %v4383 = vadd.f32 0.0, %v4382
      %v4384 = vpop.f32.mrb[0].mxu0
      %v4385 = vpop.f32.mrb[0].mxu0
      %v4386 = vadd.f32 0.0, %v4385
      %v4387 = vpop.f32.mrb[0].mxu0
      %4388 = vmatprep.mubr.bf16.mxu0 0
      %4389 = vmatmul.mubr.bf16.gmra.mrb[0].mxu0 %v4261
      %v4390 = vpop.f32.mrb[0].mxu0
      %v4391 = vadd.f32 0.0, %v4390
      %v4392 = vpop.f32.mrb[0].mxu0
      %v4393 = vpop.f32.mrb[0].mxu0
      %v4394 = vadd.f32 0.0, %v4393
      %v4395 = vpop.f32.mrb[0].mxu0
      %4396 = vmatprep.mubr.bf16.mxu0 0
      %4397 = vmatmul.mubr.bf16.gmra.mrb[0].mxu0 %v4264
      %v4398 = vpop.f32.mrb[0].mxu0
      %v4399 = vadd.f32 0.0, %v4398
      %v4400 = vpop.f32.mrb[0].mxu0
      %v4401 = vpop.f32.mrb[0].mxu0
      %v4402 = vadd.f32 0.0, %v4401
      %v4403 = vpop.f32.mrb[0].mxu0
      %4404 = vmatprep.mubr.bf16.mxu0 0
      %4405 = vmatmul.mubr.bf16.gmra.mrb[0].mxu0 %v4267
      %v4406 = vpop.f32.mrb[0].mxu0
      %v4407 = vadd.f32 0.0, %v4406
      %v4408 = vpop.f32.mrb[0].mxu0
      %v4409 = vpop.f32.mrb[0].mxu0
      %v4410 = vadd.f32 0.0, %v4409
      %v4411 = vpop.f32.mrb[0].mxu0
      %4412 = vmatprep.mubr.bf16.mxu0 0
      %4413 = vmatmul.mubr.bf16.gmra.mrb[0].mxu0 %v4270
      %v4414 = vpop.f32.mrb[0].mxu0
      %v4415 = vadd.f32 0.0, %v4414
      %v4416 = vpop.f32.mrb[0].mxu0
      %v4417 = vpop.f32.mrb[0].mxu0
      %v4418 = vadd.f32 0.0, %v4417
      %v4419 = vpop.f32.mrb[0].mxu0
      %4420 = vmatprep.mubr.bf16.mxu0 0
      %4421 = vmatmul.mubr.bf16.gmra.mrb[0].mxu0 %v4273
      %v4422 = vpop.f32.mrb[0].mxu0
      %v4423 = vadd.f32 0.0, %v4422
      %v4424 = vpop.f32.mrb[0].mxu0
      %v4425 = vpop.f32.mrb[0].mxu0
      %v4426 = vadd.f32 0.0, %v4425
      %v4427 = vpop.f32.mrb[0].mxu0
      %4428 = vmatprep.mubr.bf16.mxu0 0
      %4429 = vmatmul.mubr.bf16.gmra.mrb[0].mxu0 %v4276
      %v4430 = vpop.f32.mrb[0].mxu0
      %v4431 = vadd.f32 0.0, %v4430
      %v4432 = vpop.f32.mrb[0].mxu0
      %v4433 = vpop.f32.mrb[0].mxu0
      %v4434 = vadd.f32 0.0, %v4433
      %v4435 = vpop.f32.mrb[0].mxu0
      %4436 = vmatprep.mubr.bf16.mxu0 0
      %4437 = vmatmul.mubr.bf16.gmra.mrb[0].mxu0 %v4279
      %v4438 = vpop.f32.mrb[0].mxu0
      %v4439 = vadd.f32 0.0, %v4438
      %v4440 = vpop.f32.mrb[0].mxu0
      %v4441 = vpop.f32.mrb[0].mxu0
      %v4442 = vadd.f32 0.0, %v4441
      %v4443 = vpop.f32.mrb[0].mxu0
      %4444 = vdwg.mxu0
      %v4445 = vadd.f32 %v3700, %v4319
      %v4446 = vadd.f32 %v3701, %v4322
      %v4447 = vadd.f32 %v3702, %v4327
      %v4448 = vadd.f32 %v3703, %v4330
      %v4449 = vadd.f32 %v3704, %v4335
      %v4450 = vadd.f32 %v3705, %v4338
      %v4451 = vadd.f32 %v3706, %v4343
      %v4452 = vadd.f32 %v3707, %v4346
      %v4453 = vadd.f32 %v3708, %v4351
      %v4454 = vadd.f32 %v3709, %v4354
      %v4455 = vadd.f32 %v3710, %v4359
      %v4456 = vadd.f32 %v3711, %v4362
      %v4457 = vadd.f32 %v3712, %v4367
      %v4458 = vadd.f32 %v3713, %v4370
      %v4459 = vadd.f32 %v3714, %v4375
      %v4460 = vadd.f32 %v3715, %v4378
      %v4461 = vadd.f32 %v3716, %v4383
      %v4462 = vadd.f32 %v3717, %v4386
      %v4463 = vadd.f32 %v3718, %v4391
      %v4464 = vadd.f32 %v3719, %v4394
      %v4465 = vadd.f32 %v3720, %v4399
      %v4466 = vadd.f32 %v3721, %v4402
      %v4467 = vadd.f32 %v3722, %v4407
      %v4468 = vadd.f32 %v3723, %v4410
      %v4469 = vadd.f32 %v3724, %v4415
      %v4470 = vadd.f32 %v3725, %v4418
      %v4471 = vadd.f32 %v3726, %v4423
      %v4472 = vadd.f32 %v3727, %v4426
      %v4473 = vadd.f32 %v3728, %v4431
      %v4474 = vadd.f32 %v3729, %v4434
      %v4475 = vadd.f32 %v3730, %v4439
      %v4476 = vadd.f32 %v3731, %v4442
      %v4477 = vld [vmem:[%s3354] sm:$0xe]
      %v4478 = vld [vmem:[%s3354 + $0xc] sm:$0xe]
      %v4479 = vld [vmem:[%s3354 + $0x18] sm:$0xe]
      %v4480 = vld [vmem:[%s3354 + $0x24] sm:$0xe]
      %v4481 = vld [vmem:[%s3354 + $0x30] sm:$0xe]
      %v4482 = vld [vmem:[%s3354 + $0x3c] sm:$0xe]
      %v4483 = vld [vmem:[%s3354 + $0x48] sm:$0xe]
      %v4484 = vld [vmem:[%s3354 + $0x54] sm:$0xe]
      %v4485 = vld [vmem:[%s3354 + $0x60] sm:$0xe]
      %v4486 = vld [vmem:[%s3354 + $0x6c] sm:$0xe]
      %v4487 = vld [vmem:[%s3354 + $0x78] sm:$0xe]
      %v4488 = vld [vmem:[%s3354 + $0x84] sm:$0xe]
      %v4489 = vld [vmem:[%s3354 + $0x90] sm:$0xe]
      %v4490 = vld [vmem:[%s3354 + $0x9c] sm:$0xe]
      %v4491 = vld [vmem:[%s3354 + $0xa8] sm:$0xe]
      %v4492 = vld [vmem:[%s3354 + $0xb4] sm:$0xe]
      %v4541 = vrot.slane %v4477, 5
      %v4542 = vrot.slane %v4541, 4
      %v4543 = vrot.slane %v3733, 5
      %v4544 = vsel %vm1316, %v4542, %v4543
      %v4545 = vrot.slane %v4543, 4
      %v4546 = vrot.slane %v3734, 5
      %v4547 = vsel %vm1316, %v4545, %v4546
      %v4548 = vrot.slane %v4478, 5
      %v4549 = vrot.slane %v4548, 4
      %v4550 = vrot.slane %v3736, 5
      %v4551 = vsel %vm1316, %v4549, %v4550
      %v4552 = vrot.slane %v4550, 4
      %v4553 = vrot.slane %v3737, 5
      %v4554 = vsel %vm1316, %v4552, %v4553
      %v4555 = vrot.slane %v4479, 5
      %v4556 = vrot.slane %v4555, 4
      %v4557 = vrot.slane %v3739, 5
      %v4558 = vsel %vm1316, %v4556, %v4557
      %v4559 = vrot.slane %v4557, 4
      %v4560 = vrot.slane %v3740, 5
      %v4561 = vsel %vm1316, %v4559, %v4560
      %v4562 = vrot.slane %v4480, 5
      %v4563 = vrot.slane %v4562, 4
      %v4564 = vrot.slane %v3742, 5
      %v4565 = vsel %vm1316, %v4563, %v4564
      %v4566 = vrot.slane %v4564, 4
      %v4567 = vrot.slane %v3743, 5
      %v4568 = vsel %vm1316, %v4566, %v4567
      %v4569 = vrot.slane %v4481, 5
      %v4570 = vrot.slane %v4569, 4
      %v4571 = vrot.slane %v3745, 5
      %v4572 = vsel %vm1316, %v4570, %v4571
      %v4573 = vrot.slane %v4571, 4
      %v4574 = vrot.slane %v3746, 5
      %v4575 = vsel %vm1316, %v4573, %v4574
      %v4576 = vrot.slane %v4482, 5
      %v4577 = vrot.slane %v4576, 4
      %v4578 = vrot.slane %v3748, 5
      %v4579 = vsel %vm1316, %v4577, %v4578
      %v4580 = vrot.slane %v4578, 4
      %v4581 = vrot.slane %v3749, 5
      %v4582 = vsel %vm1316, %v4580, %v4581
      %v4583 = vrot.slane %v4483, 5
      %v4584 = vrot.slane %v4583, 4
      %v4585 = vrot.slane %v3751, 5
      %v4586 = vsel %vm1316, %v4584, %v4585
      %v4587 = vrot.slane %v4585, 4
      %v4588 = vrot.slane %v3752, 5
      %v4589 = vsel %vm1316, %v4587, %v4588
      %v4590 = vrot.slane %v4484, 5
      %v4591 = vrot.slane %v4590, 4
      %v4592 = vrot.slane %v3754, 5
      %v4593 = vsel %vm1316, %v4591, %v4592
      %v4594 = vrot.slane %v4592, 4
      %v4595 = vrot.slane %v3755, 5
      %v4596 = vsel %vm1316, %v4594, %v4595
      %v4597 = vrot.slane %v4485, 5
      %v4598 = vrot.slane %v4597, 4
      %v4599 = vrot.slane %v3757, 5
      %v4600 = vsel %vm1316, %v4598, %v4599
      %v4601 = vrot.slane %v4599, 4
      %v4602 = vrot.slane %v3758, 5
      %v4603 = vsel %vm1316, %v4601, %v4602
      %v4604 = vrot.slane %v4486, 5
      %v4605 = vrot.slane %v4604, 4
      %v4606 = vrot.slane %v3760, 5
      %v4607 = vsel %vm1316, %v4605, %v4606
      %v4608 = vrot.slane %v4606, 4
      %v4609 = vrot.slane %v3761, 5
      %v4610 = vsel %vm1316, %v4608, %v4609
      %v4611 = vrot.slane %v4487, 5
      %v4612 = vrot.slane %v4611, 4
      %v4613 = vrot.slane %v3763, 5
      %v4614 = vsel %vm1316, %v4612, %v4613
      %v4615 = vrot.slane %v4613, 4
      %v4616 = vrot.slane %v3764, 5
      %v4617 = vsel %vm1316, %v4615, %v4616
      %v4618 = vrot.slane %v4488, 5
      %v4619 = vrot.slane %v4618, 4
      %v4620 = vrot.slane %v3766, 5
      %v4621 = vsel %vm1316, %v4619, %v4620
      %v4622 = vrot.slane %v4620, 4
      %v4623 = vrot.slane %v3767, 5
      %v4624 = vsel %vm1316, %v4622, %v4623
      %v4625 = vrot.slane %v4489, 5
      %v4626 = vrot.slane %v4625, 4
      %v4627 = vrot.slane %v3769, 5
      %v4628 = vsel %vm1316, %v4626, %v4627
      %v4629 = vrot.slane %v4627, 4
      %v4630 = vrot.slane %v3770, 5
      %v4631 = vsel %vm1316, %v4629, %v4630
      %v4632 = vrot.slane %v4490, 5
      %v4633 = vrot.slane %v4632, 4
      %v4634 = vrot.slane %v3772, 5
      %v4635 = vsel %vm1316, %v4633, %v4634
      %v4636 = vrot.slane %v4634, 4
      %v4637 = vrot.slane %v3773, 5
      %v4638 = vsel %vm1316, %v4636, %v4637
      %v4639 = vrot.slane %v4491, 5
      %v4640 = vrot.slane %v4639, 4
      %v4641 = vrot.slane %v3775, 5
      %v4642 = vsel %vm1316, %v4640, %v4641
      %v4643 = vrot.slane %v4641, 4
      %v4644 = vrot.slane %v3776, 5
      %v4645 = vsel %vm1316, %v4643, %v4644
      %v4646 = vrot.slane %v4492, 5
      %v4647 = vrot.slane %v4646, 4
      %v4648 = vrot.slane %v3778, 5
      %v4649 = vsel %vm1316, %v4647, %v4648
      %v4650 = vrot.slane %v4648, 4
      %v4651 = vrot.slane %v3779, 5
      %v4652 = vsel %vm1316, %v4650, %v4651
      %s4653 = scalar_lea.vmem %s1, 160
      %v4654 = vld [vmem:[%s4653] sm:$0xf]
      %v4655 = vld [vmem:[%s4653 + $0x4] sm:$0xf]
      %v4656 = vld [vmem:[%s4653 + $0x8] sm:$0xf]
      %v4657 = vld [vmem:[%s4653 + $0xc] sm:$0xf]
      %v4658 = vld [vmem:[%s4653 + $0x10] sm:$0x3]
      %v4659 = vunpack.c.l.b16 %v4544
      %v4660 = vunpack.c.l.b16 %v4547
      %v4661 = vunpack.c.l.b16 %v4551
      %v4662 = vunpack.c.l.b16 %v4554
      %v4663 = vunpack.c.l.b16 %v4558
      %v4664 = vunpack.c.l.b16 %v4561
      %v4665 = vunpack.c.l.b16 %v4565
      %v4666 = vunpack.c.l.b16 %v4568
      %v4667 = vunpack.c.l.b16 %v4572
      %v4668 = vunpack.c.l.b16 %v4575
      %v4669 = vunpack.c.l.b16 %v4579
      %v4670 = vunpack.c.l.b16 %v4582
      %v4671 = vunpack.c.l.b16 %v4586
      %v4672 = vunpack.c.l.b16 %v4589
      %v4673 = vunpack.c.l.b16 %v4593
      %v4674 = vunpack.c.l.b16 %v4596
      %v4675 = vunpack.c.l.b16 %v4600
      %v4676 = vunpack.c.l.b16 %v4603
      %v4677 = vunpack.c.l.b16 %v4607
      %v4678 = vunpack.c.l.b16 %v4610
      %v4679 = vunpack.c.l.b16 %v4614
      %v4680 = vunpack.c.l.b16 %v4617
      %v4681 = vunpack.c.l.b16 %v4621
      %v4682 = vunpack.c.l.b16 %v4624
      %v4683 = vunpack.c.l.b16 %v4628
      %v4684 = vunpack.c.l.b16 %v4631
      %v4685 = vunpack.c.l.b16 %v4635
      %v4686 = vunpack.c.l.b16 %v4638
      %v4687 = vunpack.c.l.b16 %v4642
      %v4688 = vunpack.c.l.b16 %v4645
      %v4689 = vunpack.c.l.b16 %v4649
      %v4690 = vunpack.c.l.b16 %v4652
      %v4691 = vpack.c.b16 %v4660, %v4659
      %v4692 = vpack.c.b16 %v4662, %v4661
      %v4693 = vpack.c.b16 %v4664, %v4663
      %v4694 = vpack.c.b16 %v4666, %v4665
      %v4695 = vpack.c.b16 %v4668, %v4667
      %v4696 = vpack.c.b16 %v4670, %v4669
      %v4697 = vpack.c.b16 %v4672, %v4671
      %v4698 = vpack.c.b16 %v4674, %v4673
      %v4699 = vpack.c.b16 %v4676, %v4675
      %v4700 = vpack.c.b16 %v4678, %v4677
      %v4701 = vpack.c.b16 %v4680, %v4679
      %v4702 = vpack.c.b16 %v4682, %v4681
      %v4703 = vpack.c.b16 %v4684, %v4683
      %v4704 = vpack.c.b16 %v4686, %v4685
      %v4705 = vpack.c.b16 %v4688, %v4687
      %v4706 = vpack.c.b16 %v4690, %v4689
      %v4712 = vunpack.c.l.b16 %v4654
      %v4713 = vunpack.c.l.b16 %v4655
      %v4714 = vunpack.c.l.b16 %v4656
      %v4715 = vunpack.c.l.b16 %v4657
      %v4716 = vunpack.c.l.b16 %v4658
      %v4717 = vpack.c.b16 %v4713, %v4712
      %v4718 = vpack.c.b16 %v4715, %v4714
      %v4719 = vpack.c.b16 %v4716, %v4716
      %v4723 = vsel %vm745, %v4691, 0
      %v4726 = vsel %vm745, %v4692, 0
      %v4729 = vsel %vm745, %v4693, 0
      %v4732 = vsel %vm745, %v4694, 0
      %v4735 = vsel %vm745, %v4695, 0
      %v4738 = vsel %vm745, %v4696, 0
      %v4741 = vsel %vm745, %v4697, 0
      %v4744 = vsel %vm745, %v4698, 0
      %v4747 = vsel %vm745, %v4699, 0
      %v4750 = vsel %vm745, %v4700, 0
      %v4753 = vsel %vm745, %v4701, 0
      %v4756 = vsel %vm745, %v4702, 0
      %v4759 = vsel %vm745, %v4703, 0
      %v4762 = vsel %vm745, %v4704, 0
      %v4765 = vsel %vm745, %v4705, 0
      %v4768 = vsel %vm745, %v4706, 0
      %v4771 = vsel %vm794, %v4719, 0
      %4773 = vmatprep.subr.bf16.mxu0 0
      %4774 = vmatpush1.bf16.msra.mxu0 %v4717
      %4775 = vmatprep.subr.bf16.mxu0 0
      %4776 = vmatpush1.bf16.msra.mxu0 %v4718
      %4777 = vmatprep.subr.bf16.mxu0 0
      %4778 = vmatpush1.bf16.msra.mxu0 %v4771
      %4779 = vmatprep.subr.bf16.mxu0 0
      %4780 = vmatpush1.bf16.msra.mxu0 0
      %4781 = vmatprep.subr.bf16.mxu0 0
      %4782 = vmatpush1.bf16.msra.mxu0 0
      %4783 = vmatprep.subr.bf16.mxu0 0
      %4784 = vmatpush1.bf16.msra.mxu0 0
      %4785 = vmatprep.subr.bf16.mxu0 0
      %4786 = vmatpush1.bf16.msra.mxu0 0
      %4787 = vmatprep.subr.bf16.mxu0 0
      %4788 = vmatpush1.bf16.msra.mxu0 0
      %4789 = vmatprep.subr.bf16.mxu0 0
      %4790 = vmatpush1.bf16.msra.mxu0 0
      %4791 = vmatprep.subr.bf16.mxu0 0
      %4792 = vmatpush1.bf16.msra.mxu0 0
      %4793 = vmatprep.subr.bf16.mxu0 0
      %4794 = vmatpush1.bf16.msra.mxu0 0
      %4795 = vmatprep.subr.bf16.mxu0 0
      %4796 = vmatpush1.bf16.msra.mxu0 0
      %4797 = vmatprep.subr.bf16.mxu0 0
      %4798 = vmatpush1.bf16.msra.mxu0 0
      %4799 = vmatprep.subr.bf16.mxu0 0
      %4800 = vmatpush1.bf16.msra.mxu0 0
      %4801 = vmatprep.subr.bf16.mxu0 0
      %4802 = vmatpush1.bf16.msra.mxu0 0
      %4803 = vmatprep.subr.bf16.mxu0 0
      %4804 = vmatpush1.bf16.msra.mxu0 0
      %4805 = vmatprep.mubr.bf16.mxu0 0
      %4806 = vmatmul.mubr.bf16.gmra.mrb[0].mxu0 %v4723
      %v4807 = vpop.f32.mrb[0].mxu0
      %v4808 = vadd.f32 0.0, %v4807
      %v4809 = vpop.f32.mrb[0].mxu0
      %v4810 = vpop.f32.mrb[0].mxu0
      %v4811 = vadd.f32 0.0, %v4810
      %v4812 = vpop.f32.mrb[0].mxu0
      %4813 = vmatprep.mubr.bf16.mxu0 0
      %4814 = vmatmul.mubr.bf16.gmra.mrb[0].mxu0 %v4726
      %v4815 = vpop.f32.mrb[0].mxu0
      %v4816 = vadd.f32 0.0, %v4815
      %v4817 = vpop.f32.mrb[0].mxu0
      %v4818 = vpop.f32.mrb[0].mxu0
      %v4819 = vadd.f32 0.0, %v4818
      %v4820 = vpop.f32.mrb[0].mxu0
      %4821 = vmatprep.mubr.bf16.mxu0 0
      %4822 = vmatmul.mubr.bf16.gmra.mrb[0].mxu0 %v4729
      %v4823 = vpop.f32.mrb[0].mxu0
      %v4824 = vadd.f32 0.0, %v4823
      %v4825 = vpop.f32.mrb[0].mxu0
      %v4826 = vpop.f32.mrb[0].mxu0
      %v4827 = vadd.f32 0.0, %v4826
      %v4828 = vpop.f32.mrb[0].mxu0
      %4829 = vmatprep.mubr.bf16.mxu0 0
      %4830 = vmatmul.mubr.bf16.gmra.mrb[0].mxu0 %v4732
      %v4831 = vpop.f32.mrb[0].mxu0
      %v4832 = vadd.f32 0.0, %v4831
      %v4833 = vpop.f32.mrb[0].mxu0
      %v4834 = vpop.f32.mrb[0].mxu0
      %v4835 = vadd.f32 0.0, %v4834
      %v4836 = vpop.f32.mrb[0].mxu0
      %4837 = vmatprep.mubr.bf16.mxu0 0
      %4838 = vmatmul.mubr.bf16.gmra.mrb[0].mxu0 %v4735
      %v4839 = vpop.f32.mrb[0].mxu0
      %v4840 = vadd.f32 0.0, %v4839
      %v4841 = vpop.f32.mrb[0].mxu0
      %v4842 = vpop.f32.mrb[0].mxu0
      %v4843 = vadd.f32 0.0, %v4842
      %v4844 = vpop.f32.mrb[0].mxu0
      %4845 = vmatprep.mubr.bf16.mxu0 0
      %4846 = vmatmul.mubr.bf16.gmra.mrb[0].mxu0 %v4738
      %v4847 = vpop.f32.mrb[0].mxu0
      %v4848 = vadd.f32 0.0, %v4847
      %v4849 = vpop.f32.mrb[0].mxu0
      %v4850 = vpop.f32.mrb[0].mxu0
      %v4851 = vadd.f32 0.0, %v4850
      %v4852 = vpop.f32.mrb[0].mxu0
      %4853 = vmatprep.mubr.bf16.mxu0 0
      %4854 = vmatmul.mubr.bf16.gmra.mrb[0].mxu0 %v4741
      %v4855 = vpop.f32.mrb[0].mxu0
      %v4856 = vadd.f32 0.0, %v4855
      %v4857 = vpop.f32.mrb[0].mxu0
      %v4858 = vpop.f32.mrb[0].mxu0
      %v4859 = vadd.f32 0.0, %v4858
      %v4860 = vpop.f32.mrb[0].mxu0
      %4861 = vmatprep.mubr.bf16.mxu0 0
      %4862 = vmatmul.mubr.bf16.gmra.mrb[0].mxu0 %v4744
      %v4863 = vpop.f32.mrb[0].mxu0
      %v4864 = vadd.f32 0.0, %v4863
      %v4865 = vpop.f32.mrb[0].mxu0
      %v4866 = vpop.f32.mrb[0].mxu0
      %v4867 = vadd.f32 0.0, %v4866
      %v4868 = vpop.f32.mrb[0].mxu0
      %4869 = vmatprep.mubr.bf16.mxu0 0
      %4870 = vmatmul.mubr.bf16.gmra.mrb[0].mxu0 %v4747
      %v4871 = vpop.f32.mrb[0].mxu0
      %v4872 = vadd.f32 0.0, %v4871
      %v4873 = vpop.f32.mrb[0].mxu0
      %v4874 = vpop.f32.mrb[0].mxu0
      %v4875 = vadd.f32 0.0, %v4874
      %v4876 = vpop.f32.mrb[0].mxu0
      %4877 = vmatprep.mubr.bf16.mxu0 0
      %4878 = vmatmul.mubr.bf16.gmra.mrb[0].mxu0 %v4750
      %v4879 = vpop.f32.mrb[0].mxu0
      %v4880 = vadd.f32 0.0, %v4879
      %v4881 = vpop.f32.mrb[0].mxu0
      %v4882 = vpop.f32.mrb[0].mxu0
      %v4883 = vadd.f32 0.0, %v4882
      %v4884 = vpop.f32.mrb[0].mxu0
      %4885 = vmatprep.mubr.bf16.mxu0 0
      %4886 = vmatmul.mubr.bf16.gmra.mrb[0].mxu0 %v4753
      %v4887 = vpop.f32.mrb[0].mxu0
      %v4888 = vadd.f32 0.0, %v4887
      %v4889 = vpop.f32.mrb[0].mxu0
      %v4890 = vpop.f32.mrb[0].mxu0
      %v4891 = vadd.f32 0.0, %v4890
      %v4892 = vpop.f32.mrb[0].mxu0
      %4893 = vmatprep.mubr.bf16.mxu0 0
      %4894 = vmatmul.mubr.bf16.gmra.mrb[0].mxu0 %v4756
      %v4895 = vpop.f32.mrb[0].mxu0
      %v4896 = vadd.f32 0.0, %v4895
      %v4897 = vpop.f32.mrb[0].mxu0
      %v4898 = vpop.f32.mrb[0].mxu0
      %v4899 = vadd.f32 0.0, %v4898
      %v4900 = vpop.f32.mrb[0].mxu0
      %4901 = vmatprep.mubr.bf16.mxu0 0
      %4902 = vmatmul.mubr.bf16.gmra.mrb[0].mxu0 %v4759
      %v4903 = vpop.f32.mrb[0].mxu0
      %v4904 = vadd.f32 0.0, %v4903
      %v4905 = vpop.f32.mrb[0].mxu0
      %v4906 = vpop.f32.mrb[0].mxu0
      %v4907 = vadd.f32 0.0, %v4906
      %v4908 = vpop.f32.mrb[0].mxu0
      %4909 = vmatprep.mubr.bf16.mxu0 0
      %4910 = vmatmul.mubr.bf16.gmra.mrb[0].mxu0 %v4762
      %v4911 = vpop.f32.mrb[0].mxu0
      %v4912 = vadd.f32 0.0, %v4911
      %v4913 = vpop.f32.mrb[0].mxu0
      %v4914 = vpop.f32.mrb[0].mxu0
      %v4915 = vadd.f32 0.0, %v4914
      %v4916 = vpop.f32.mrb[0].mxu0
      %4917 = vmatprep.mubr.bf16.mxu0 0
      %4918 = vmatmul.mubr.bf16.gmra.mrb[0].mxu0 %v4765
      %v4919 = vpop.f32.mrb[0].mxu0
      %v4920 = vadd.f32 0.0, %v4919
      %v4921 = vpop.f32.mrb[0].mxu0
      %v4922 = vpop.f32.mrb[0].mxu0
      %v4923 = vadd.f32 0.0, %v4922
      %v4924 = vpop.f32.mrb[0].mxu0
      %4925 = vmatprep.mubr.bf16.mxu0 0
      %4926 = vmatmul.mubr.bf16.gmra.mrb[0].mxu0 %v4768
      %v4927 = vpop.f32.mrb[0].mxu0
      %v4928 = vadd.f32 0.0, %v4927
      %v4929 = vpop.f32.mrb[0].mxu0
      %v4930 = vpop.f32.mrb[0].mxu0
      %v4931 = vadd.f32 0.0, %v4930
      %v4932 = vpop.f32.mrb[0].mxu0
      %4933 = vdwg.mxu0
      %v4934 = vadd.f32 %v4445, %v4808
      %v4935 = vadd.f32 %v4446, %v4811
      %v4936 = vadd.f32 %v4447, %v4816
      %v4937 = vadd.f32 %v4448, %v4819
      %v4938 = vadd.f32 %v4449, %v4824
      %v4939 = vadd.f32 %v4450, %v4827
      %v4940 = vadd.f32 %v4451, %v4832
      %v4941 = vadd.f32 %v4452, %v4835
      %v4942 = vadd.f32 %v4453, %v4840
      %v4943 = vadd.f32 %v4454, %v4843
      %v4944 = vadd.f32 %v4455, %v4848
      %v4945 = vadd.f32 %v4456, %v4851
      %v4946 = vadd.f32 %v4457, %v4856
      %v4947 = vadd.f32 %v4458, %v4859
      %v4948 = vadd.f32 %v4459, %v4864
      %v4949 = vadd.f32 %v4460, %v4867
      %v4950 = vadd.f32 %v4461, %v4872
      %v4951 = vadd.f32 %v4462, %v4875
      %v4952 = vadd.f32 %v4463, %v4880
      %v4953 = vadd.f32 %v4464, %v4883
      %v4954 = vadd.f32 %v4465, %v4888
      %v4955 = vadd.f32 %v4466, %v4891
      %v4956 = vadd.f32 %v4467, %v4896
      %v4957 = vadd.f32 %v4468, %v4899
      %v4958 = vadd.f32 %v4469, %v4904
      %v4959 = vadd.f32 %v4470, %v4907
      %v4960 = vadd.f32 %v4471, %v4912
      %v4961 = vadd.f32 %v4472, %v4915
      %v4962 = vadd.f32 %v4473, %v4920
      %v4963 = vadd.f32 %v4474, %v4923
      %v4964 = vadd.f32 %v4475, %v4928
      %v4965 = vadd.f32 %v4476, %v4931
      %v4966 = vxor.u32 %v4934, 2147483648
      %v4967 = vxor.u32 %v4935, 2147483648
      %v4968 = vxor.u32 %v4936, 2147483648
      %v4969 = vxor.u32 %v4937, 2147483648
      %v4970 = vxor.u32 %v4938, 2147483648
      %v4971 = vxor.u32 %v4939, 2147483648
      %v4972 = vxor.u32 %v4940, 2147483648
      %v4973 = vxor.u32 %v4941, 2147483648
      %v4974 = vxor.u32 %v4942, 2147483648
      %v4975 = vxor.u32 %v4943, 2147483648
      %v4976 = vxor.u32 %v4944, 2147483648
      %v4977 = vxor.u32 %v4945, 2147483648
      %v4978 = vxor.u32 %v4946, 2147483648
      %v4979 = vxor.u32 %v4947, 2147483648
      %v4980 = vxor.u32 %v4948, 2147483648
      %v4981 = vxor.u32 %v4949, 2147483648
      %v4982 = vxor.u32 %v4950, 2147483648
      %v4983 = vxor.u32 %v4951, 2147483648
      %v4984 = vxor.u32 %v4952, 2147483648
      %v4985 = vxor.u32 %v4953, 2147483648
      %v4986 = vxor.u32 %v4954, 2147483648
      %v4987 = vxor.u32 %v4955, 2147483648
      %v4988 = vxor.u32 %v4956, 2147483648
      %v4989 = vxor.u32 %v4957, 2147483648
      %v4990 = vxor.u32 %v4958, 2147483648
      %v4991 = vxor.u32 %v4959, 2147483648
      %v4992 = vxor.u32 %v4960, 2147483648
      %v4993 = vxor.u32 %v4961, 2147483648
      %v4994 = vxor.u32 %v4962, 2147483648
      %v4995 = vxor.u32 %v4963, 2147483648
      %v4996 = vxor.u32 %v4964, 2147483648
      %v4997 = vxor.u32 %v4965, 2147483648
      %v4998 = vmul.f32 %v4966, 1.442695
      %v4999 = vpow.pop %v4998
      %v5000 = vmul.f32 %v4967, 1.442695
      %v5001 = vpow.pop %v5000
      %v5002 = vmul.f32 %v4968, 1.442695
      %v5003 = vpow.pop %v5002
      %v5004 = vmul.f32 %v4969, 1.442695
      %v5005 = vpow.pop %v5004
      %v5006 = vmul.f32 %v4970, 1.442695
      %v5007 = vpow.pop %v5006
      %v5008 = vmul.f32 %v4971, 1.442695
      %v5009 = vpow.pop %v5008
      %v5010 = vmul.f32 %v4972, 1.442695
      %v5011 = vpow.pop %v5010
      %v5012 = vmul.f32 %v4973, 1.442695
      %v5013 = vpow.pop %v5012
      %v5014 = vmul.f32 %v4974, 1.442695
      %v5015 = vpow.pop %v5014
      %v5016 = vmul.f32 %v4975, 1.442695
      %v5017 = vpow.pop %v5016
      %v5018 = vmul.f32 %v4976, 1.442695
      %v5019 = vpow.pop %v5018
      %v5020 = vmul.f32 %v4977, 1.442695
      %v5021 = vpow.pop %v5020
      %v5022 = vmul.f32 %v4978, 1.442695
      %v5023 = vpow.pop %v5022
      %v5024 = vmul.f32 %v4979, 1.442695
      %v5025 = vpow.pop %v5024
      %v5026 = vmul.f32 %v4980, 1.442695
      %v5027 = vpow.pop %v5026
      %v5028 = vmul.f32 %v4981, 1.442695
      %v5029 = vpow.pop %v5028
      %v5030 = vmul.f32 %v4982, 1.442695
      %v5031 = vpow.pop %v5030
      %v5032 = vmul.f32 %v4983, 1.442695
      %v5033 = vpow.pop %v5032
      %v5034 = vmul.f32 %v4984, 1.442695
      %v5035 = vpow.pop %v5034
      %v5036 = vmul.f32 %v4985, 1.442695
      %v5037 = vpow.pop %v5036
      %v5038 = vmul.f32 %v4986, 1.442695
      %v5039 = vpow.pop %v5038
      %v5040 = vmul.f32 %v4987, 1.442695
      %v5041 = vpow.pop %v5040
      %v5042 = vmul.f32 %v4988, 1.442695
      %v5043 = vpow.pop %v5042
      %v5044 = vmul.f32 %v4989, 1.442695
      %v5045 = vpow.pop %v5044
      %v5046 = vmul.f32 %v4990, 1.442695
      %v5047 = vpow.pop %v5046
      %v5048 = vmul.f32 %v4991, 1.442695
      %v5049 = vpow.pop %v5048
      %v5050 = vmul.f32 %v4992, 1.442695
      %v5051 = vpow.pop %v5050
      %v5052 = vmul.f32 %v4993, 1.442695
      %v5053 = vpow.pop %v5052
      %v5054 = vmul.f32 %v4994, 1.442695
      %v5055 = vpow.pop %v5054
      %v5056 = vmul.f32 %v4995, 1.442695
      %v5057 = vpow.pop %v5056
      %v5058 = vmul.f32 %v4996, 1.442695
      %v5059 = vpow.pop %v5058
      %v5060 = vmul.f32 %v4997, 1.442695
      %v5061 = vpow.pop %v5060
      %v5062 = vadd.f32 %v4999, 1.0
      %v5063 = vadd.f32 %v5001, 1.0
      %v5064 = vadd.f32 %v5003, 1.0
      %v5065 = vadd.f32 %v5005, 1.0
      %v5066 = vadd.f32 %v5007, 1.0
      %v5067 = vadd.f32 %v5009, 1.0
      %v5068 = vadd.f32 %v5011, 1.0
      %v5069 = vadd.f32 %v5013, 1.0
      %v5070 = vadd.f32 %v5015, 1.0
      %v5071 = vadd.f32 %v5017, 1.0
      %v5072 = vadd.f32 %v5019, 1.0
      %v5073 = vadd.f32 %v5021, 1.0
      %v5074 = vadd.f32 %v5023, 1.0
      %v5075 = vadd.f32 %v5025, 1.0
      %v5076 = vadd.f32 %v5027, 1.0
      %v5077 = vadd.f32 %v5029, 1.0
      %v5078 = vadd.f32 %v5031, 1.0
      %v5079 = vadd.f32 %v5033, 1.0
      %v5080 = vadd.f32 %v5035, 1.0
      %v5081 = vadd.f32 %v5037, 1.0
      %v5082 = vadd.f32 %v5039, 1.0
      %v5083 = vadd.f32 %v5041, 1.0
      %v5084 = vadd.f32 %v5043, 1.0
      %v5085 = vadd.f32 %v5045, 1.0
      %v5086 = vadd.f32 %v5047, 1.0
      %v5087 = vadd.f32 %v5049, 1.0
      %v5088 = vadd.f32 %v5051, 1.0
      %v5089 = vadd.f32 %v5053, 1.0
      %v5090 = vadd.f32 %v5055, 1.0
      %v5091 = vadd.f32 %v5057, 1.0
      %v5092 = vadd.f32 %v5059, 1.0
      %v5093 = vadd.f32 %v5061, 1.0
      %v5094 = vrcp.pop %v5062
      %v5095 = vmul.f32 1.0, %v5094
      %v5096 = vrcp.pop %v5063
      %v5097 = vmul.f32 1.0, %v5096
      %v5098 = vrcp.pop %v5064
      %v5099 = vmul.f32 1.0, %v5098
      %v5100 = vrcp.pop %v5065
      %v5101 = vmul.f32 1.0, %v5100
      %v5102 = vrcp.pop %v5066
      %v5103 = vmul.f32 1.0, %v5102
      %v5104 = vrcp.pop %v5067
      %v5105 = vmul.f32 1.0, %v5104
      %v5106 = vrcp.pop %v5068
      %v5107 = vmul.f32 1.0, %v5106
      %v5108 = vrcp.pop %v5069
      %v5109 = vmul.f32 1.0, %v5108
      %v5110 = vrcp.pop %v5070
      %v5111 = vmul.f32 1.0, %v5110
      %v5112 = vrcp.pop %v5071
      %v5113 = vmul.f32 1.0, %v5112
      %v5114 = vrcp.pop %v5072
      %v5115 = vmul.f32 1.0, %v5114
      %v5116 = vrcp.pop %v5073
      %v5117 = vmul.f32 1.0, %v5116
      %v5118 = vrcp.pop %v5074
      %v5119 = vmul.f32 1.0, %v5118
      %v5120 = vrcp.pop %v5075
      %v5121 = vmul.f32 1.0, %v5120
      %v5122 = vrcp.pop %v5076
      %v5123 = vmul.f32 1.0, %v5122
      %v5124 = vrcp.pop %v5077
      %v5125 = vmul.f32 1.0, %v5124
      %v5126 = vrcp.pop %v5078
      %v5127 = vmul.f32 1.0, %v5126
      %v5128 = vrcp.pop %v5079
      %v5129 = vmul.f32 1.0, %v5128
      %v5130 = vrcp.pop %v5080
      %v5131 = vmul.f32 1.0, %v5130
      %v5132 = vrcp.pop %v5081
      %v5133 = vmul.f32 1.0, %v5132
      %v5134 = vrcp.pop %v5082
      %v5135 = vmul.f32 1.0, %v5134
      %v5136 = vrcp.pop %v5083
      %v5137 = vmul.f32 1.0, %v5136
      %v5138 = vrcp.pop %v5084
      %v5139 = vmul.f32 1.0, %v5138
      %v5140 = vrcp.pop %v5085
      %v5141 = vmul.f32 1.0, %v5140
      %v5142 = vrcp.pop %v5086
      %v5143 = vmul.f32 1.0, %v5142
      %v5144 = vrcp.pop %v5087
      %v5145 = vmul.f32 1.0, %v5144
      %v5146 = vrcp.pop %v5088
      %v5147 = vmul.f32 1.0, %v5146
      %v5148 = vrcp.pop %v5089
      %v5149 = vmul.f32 1.0, %v5148
      %v5150 = vrcp.pop %v5090
      %v5151 = vmul.f32 1.0, %v5150
      %v5152 = vrcp.pop %v5091
      %v5153 = vmul.f32 1.0, %v5152
      %v5154 = vrcp.pop %v5092
      %v5155 = vmul.f32 1.0, %v5154
      %v5156 = vrcp.pop %v5093
      %v5157 = vmul.f32 1.0, %v5156
      %v5158 = vld [vmem:[%s221] sm:$0xff]
      %v5159 = vld [vmem:[%s221 + $0x8] sm:$0xff]
      %v5160 = vld [vmem:[%s221 + $0x10] sm:$0xff]
      %v5161 = vld [vmem:[%s221 + $0x18] sm:$0xff]
      %v5162 = vld [vmem:[%s221 + $0x20] sm:$0xff]
      %v5163 = vld [vmem:[%s221 + $0x28] sm:$0xff]
      %v5164 = vld [vmem:[%s221 + $0x30] sm:$0xff]
      %v5165 = vld [vmem:[%s221 + $0x38] sm:$0xff]
      %v5166 = vld [vmem:[%s221 + $0x40] sm:$0xff]
      %v5167 = vld [vmem:[%s221 + $0x48] sm:$0xff]
      %v5168 = vld [vmem:[%s221 + $0x50] sm:$0xff]
      %v5169 = vld [vmem:[%s221 + $0x58] sm:$0xff]
      %v5170 = vld [vmem:[%s221 + $0x60] sm:$0xff]
      %v5171 = vld [vmem:[%s221 + $0x68] sm:$0xff]
      %v5172 = vld [vmem:[%s221 + $0x70] sm:$0xff]
      %v5173 = vld [vmem:[%s221 + $0x78] sm:$0xff]
      %v5174 = vld [vmem:[%s221 + $0x80] sm:$0xff]
      %v5175 = vld [vmem:[%s221 + $0x88] sm:$0xff]
      %v5176 = vld [vmem:[%s221 + $0x90] sm:$0xff]
      %v5177 = vld [vmem:[%s221 + $0x98] sm:$0xff]
      %v5178 = vld [vmem:[%s221 + $0xa0] sm:$0xff]
      %v5179 = vld [vmem:[%s221 + $0xa8] sm:$0xff]
      %v5180 = vld [vmem:[%s221 + $0xb0] sm:$0xff]
      %v5181 = vld [vmem:[%s221 + $0xb8] sm:$0xff]
      %v5182 = vld [vmem:[%s221 + $0xc0] sm:$0xff]
      %v5183 = vld [vmem:[%s221 + $0xc8] sm:$0xff]
      %v5184 = vld [vmem:[%s221 + $0xd0] sm:$0xff]
      %v5185 = vld [vmem:[%s221 + $0xd8] sm:$0xff]
      %v5186 = vld [vmem:[%s221 + $0xe0] sm:$0xff]
      %v5187 = vld [vmem:[%s221 + $0xe8] sm:$0xff]
      %v5188 = vld [vmem:[%s221 + $0xf0] sm:$0xff]
      %v5189 = vld [vmem:[%s221 + $0xf8] sm:$0xff]
      %5222 = vrot.lane.b32.xlu0 %v5158, 32
      %v5223 = vpop.permute.xlu0 %5222
      %5224 = vrot.lane.b32.xlu0 %v5159, 32
      %v5225 = vpop.permute.xlu0 %5224
      %5226 = vrot.lane.b32.xlu0 %v5160, 32
      %v5227 = vpop.permute.xlu0 %5226
      %5228 = vrot.lane.b32.xlu0 %v5161, 32
      %v5229 = vpop.permute.xlu0 %5228
      %5230 = vrot.lane.b32.xlu0 %v5162, 32
      %v5231 = vpop.permute.xlu0 %5230
      %5232 = vrot.lane.b32.xlu0 %v5163, 32
      %v5233 = vpop.permute.xlu0 %5232
      %5234 = vrot.lane.b32.xlu0 %v5164, 32
      %v5235 = vpop.permute.xlu0 %5234
      %5236 = vrot.lane.b32.xlu0 %v5165, 32
      %v5237 = vpop.permute.xlu0 %5236
      %5238 = vrot.lane.b32.xlu0 %v5166, 32
      %v5239 = vpop.permute.xlu0 %5238
      %5240 = vrot.lane.b32.xlu0 %v5167, 32
      %v5241 = vpop.permute.xlu0 %5240
      %5242 = vrot.lane.b32.xlu0 %v5168, 32
      %v5243 = vpop.permute.xlu0 %5242
      %5244 = vrot.lane.b32.xlu0 %v5169, 32
      %v5245 = vpop.permute.xlu0 %5244
      %5246 = vrot.lane.b32.xlu0 %v5170, 32
      %v5247 = vpop.permute.xlu0 %5246
      %5248 = vrot.lane.b32.xlu0 %v5171, 32
      %v5249 = vpop.permute.xlu0 %5248
      %5250 = vrot.lane.b32.xlu0 %v5172, 32
      %v5251 = vpop.permute.xlu0 %5250
      %5252 = vrot.lane.b32.xlu0 %v5173, 32
      %v5253 = vpop.permute.xlu0 %5252
      %5254 = vrot.lane.b32.xlu0 %v5174, 32
      %v5255 = vpop.permute.xlu0 %5254
      %5256 = vrot.lane.b32.xlu0 %v5175, 32
      %v5257 = vpop.permute.xlu0 %5256
      %5258 = vrot.lane.b32.xlu0 %v5176, 32
      %v5259 = vpop.permute.xlu0 %5258
      %5260 = vrot.lane.b32.xlu0 %v5177, 32
      %v5261 = vpop.permute.xlu0 %5260
      %5262 = vrot.lane.b32.xlu0 %v5178, 32
      %v5263 = vpop.permute.xlu0 %5262
      %5264 = vrot.lane.b32.xlu0 %v5179, 32
      %v5265 = vpop.permute.xlu0 %5264
      %5266 = vrot.lane.b32.xlu0 %v5180, 32
      %v5267 = vpop.permute.xlu0 %5266
      %5268 = vrot.lane.b32.xlu0 %v5181, 32
      %v5269 = vpop.permute.xlu0 %5268
      %5270 = vrot.lane.b32.xlu0 %v5182, 32
      %v5271 = vpop.permute.xlu0 %5270
      %5272 = vrot.lane.b32.xlu0 %v5183, 32
      %v5273 = vpop.permute.xlu0 %5272
      %5274 = vrot.lane.b32.xlu0 %v5184, 32
      %v5275 = vpop.permute.xlu0 %5274
      %5276 = vrot.lane.b32.xlu0 %v5185, 32
      %v5277 = vpop.permute.xlu0 %5276
      %5278 = vrot.lane.b32.xlu0 %v5186, 32
      %v5279 = vpop.permute.xlu0 %5278
      %5280 = vrot.lane.b32.xlu0 %v5187, 32
      %v5281 = vpop.permute.xlu0 %5280
      %5282 = vrot.lane.b32.xlu0 %v5188, 32
      %v5283 = vpop.permute.xlu0 %5282
      %5284 = vrot.lane.b32.xlu0 %v5189, 32
      %v5285 = vpop.permute.xlu0 %5284
      %v5318 = vmul.f32 %v5095, %v5223
      %v5319 = vmul.f32 %v5097, %v5225
      %v5320 = vmul.f32 %v5099, %v5227
      %v5321 = vmul.f32 %v5101, %v5229
      %v5322 = vmul.f32 %v5103, %v5231
      %v5323 = vmul.f32 %v5105, %v5233
      %v5324 = vmul.f32 %v5107, %v5235
      %v5325 = vmul.f32 %v5109, %v5237
      %v5326 = vmul.f32 %v5111, %v5239
      %v5327 = vmul.f32 %v5113, %v5241
      %v5328 = vmul.f32 %v5115, %v5243
      %v5329 = vmul.f32 %v5117, %v5245
      %v5330 = vmul.f32 %v5119, %v5247
      %v5331 = vmul.f32 %v5121, %v5249
      %v5332 = vmul.f32 %v5123, %v5251
      %v5333 = vmul.f32 %v5125, %v5253
      %v5334 = vmul.f32 %v5127, %v5255
      %v5335 = vmul.f32 %v5129, %v5257
      %v5336 = vmul.f32 %v5131, %v5259
      %v5337 = vmul.f32 %v5133, %v5261
      %v5338 = vmul.f32 %v5135, %v5263
      %v5339 = vmul.f32 %v5137, %v5265
      %v5340 = vmul.f32 %v5139, %v5267
      %v5341 = vmul.f32 %v5141, %v5269
      %v5342 = vmul.f32 %v5143, %v5271
      %v5343 = vmul.f32 %v5145, %v5273
      %v5344 = vmul.f32 %v5147, %v5275
      %v5345 = vmul.f32 %v5149, %v5277
      %v5346 = vmul.f32 %v5151, %v5279
      %v5347 = vmul.f32 %v5153, %v5281
      %v5348 = vmul.f32 %v5155, %v5283
      %v5349 = vmul.f32 %v5157, %v5285
      %5382 = vrot.lane.b32.xlu0 %v4934, 64
      %v5383 = vpop.permute.xlu0 %5382
      %5384 = vrot.lane.b32.xlu0 %v4935, 64
      %v5385 = vpop.permute.xlu0 %5384
      %5386 = vrot.lane.b32.xlu0 %v4936, 64
      %v5387 = vpop.permute.xlu0 %5386
      %5388 = vrot.lane.b32.xlu0 %v4937, 64
      %v5389 = vpop.permute.xlu0 %5388
      %5390 = vrot.lane.b32.xlu0 %v4938, 64
      %v5391 = vpop.permute.xlu0 %5390
      %5392 = vrot.lane.b32.xlu0 %v4939, 64
      %v5393 = vpop.permute.xlu0 %5392
      %5394 = vrot.lane.b32.xlu0 %v4940, 64
      %v5395 = vpop.permute.xlu0 %5394
      %5396 = vrot.lane.b32.xlu0 %v4941, 64
      %v5397 = vpop.permute.xlu0 %5396
      %5398 = vrot.lane.b32.xlu0 %v4942, 64
      %v5399 = vpop.permute.xlu0 %5398
      %5400 = vrot.lane.b32.xlu0 %v4943, 64
      %v5401 = vpop.permute.xlu0 %5400
      %5402 = vrot.lane.b32.xlu0 %v4944, 64
      %v5403 = vpop.permute.xlu0 %5402
      %5404 = vrot.lane.b32.xlu0 %v4945, 64
      %v5405 = vpop.permute.xlu0 %5404
      %5406 = vrot.lane.b32.xlu0 %v4946, 64
      %v5407 = vpop.permute.xlu0 %5406
      %5408 = vrot.lane.b32.xlu0 %v4947, 64
      %v5409 = vpop.permute.xlu0 %5408
      %5410 = vrot.lane.b32.xlu0 %v4948, 64
      %v5411 = vpop.permute.xlu0 %5410
      %5412 = vrot.lane.b32.xlu0 %v4949, 64
      %v5413 = vpop.permute.xlu0 %5412
      %5414 = vrot.lane.b32.xlu0 %v4950, 64
      %v5415 = vpop.permute.xlu0 %5414
      %5416 = vrot.lane.b32.xlu0 %v4951, 64
      %v5417 = vpop.permute.xlu0 %5416
      %5418 = vrot.lane.b32.xlu0 %v4952, 64
      %v5419 = vpop.permute.xlu0 %5418
      %5420 = vrot.lane.b32.xlu0 %v4953, 64
      %v5421 = vpop.permute.xlu0 %5420
      %5422 = vrot.lane.b32.xlu0 %v4954, 64
      %v5423 = vpop.permute.xlu0 %5422
      %5424 = vrot.lane.b32.xlu0 %v4955, 64
      %v5425 = vpop.permute.xlu0 %5424
      %5426 = vrot.lane.b32.xlu0 %v4956, 64
      %v5427 = vpop.permute.xlu0 %5426
      %5428 = vrot.lane.b32.xlu0 %v4957, 64
      %v5429 = vpop.permute.xlu0 %5428
      %5430 = vrot.lane.b32.xlu0 %v4958, 64
      %v5431 = vpop.permute.xlu0 %5430
      %5432 = vrot.lane.b32.xlu0 %v4959, 64
      %v5433 = vpop.permute.xlu0 %5432
      %5434 = vrot.lane.b32.xlu0 %v4960, 64
      %v5435 = vpop.permute.xlu0 %5434
      %5436 = vrot.lane.b32.xlu0 %v4961, 64
      %v5437 = vpop.permute.xlu0 %5436
      %5438 = vrot.lane.b32.xlu0 %v4962, 64
      %v5439 = vpop.permute.xlu0 %5438
      %5440 = vrot.lane.b32.xlu0 %v4963, 64
      %v5441 = vpop.permute.xlu0 %5440
      %5442 = vrot.lane.b32.xlu0 %v4964, 64
      %v5443 = vpop.permute.xlu0 %5442
      %5444 = vrot.lane.b32.xlu0 %v4965, 64
      %v5445 = vpop.permute.xlu0 %5444
      %v5478 = vmul.f32 %v5095, %v5383
      %v5479 = vmul.f32 %v5097, %v5385
      %v5480 = vmul.f32 %v5099, %v5387
      %v5481 = vmul.f32 %v5101, %v5389
      %v5482 = vmul.f32 %v5103, %v5391
      %v5483 = vmul.f32 %v5105, %v5393
      %v5484 = vmul.f32 %v5107, %v5395
      %v5485 = vmul.f32 %v5109, %v5397
      %v5486 = vmul.f32 %v5111, %v5399
      %v5487 = vmul.f32 %v5113, %v5401
      %v5488 = vmul.f32 %v5115, %v5403
      %v5489 = vmul.f32 %v5117, %v5405
      %v5490 = vmul.f32 %v5119, %v5407
      %v5491 = vmul.f32 %v5121, %v5409
      %v5492 = vmul.f32 %v5123, %v5411
      %v5493 = vmul.f32 %v5125, %v5413
      %v5494 = vmul.f32 %v5127, %v5415
      %v5495 = vmul.f32 %v5129, %v5417
      %v5496 = vmul.f32 %v5131, %v5419
      %v5497 = vmul.f32 %v5133, %v5421
      %v5498 = vmul.f32 %v5135, %v5423
      %v5499 = vmul.f32 %v5137, %v5425
      %v5500 = vmul.f32 %v5139, %v5427
      %v5501 = vmul.f32 %v5141, %v5429
      %v5502 = vmul.f32 %v5143, %v5431
      %v5503 = vmul.f32 %v5145, %v5433
      %v5504 = vmul.f32 %v5147, %v5435
      %v5505 = vmul.f32 %v5149, %v5437
      %v5506 = vmul.f32 %v5151, %v5439
      %v5507 = vmul.f32 %v5153, %v5441
      %v5508 = vmul.f32 %v5155, %v5443
      %v5509 = vmul.f32 %v5157, %v5445
      %5542 = vrot.lane.b32.xlu0 %v5478, 32
      %v5543 = vpop.permute.xlu0 %5542
      %5544 = vrot.lane.b32.xlu0 %v5479, 32
      %v5545 = vpop.permute.xlu0 %5544
      %5546 = vrot.lane.b32.xlu0 %v5480, 32
      %v5547 = vpop.permute.xlu0 %5546
      %5548 = vrot.lane.b32.xlu0 %v5481, 32
      %v5549 = vpop.permute.xlu0 %5548
      %5550 = vrot.lane.b32.xlu0 %v5482, 32
      %v5551 = vpop.permute.xlu0 %5550
      %5552 = vrot.lane.b32.xlu0 %v5483, 32
      %v5553 = vpop.permute.xlu0 %5552
      %5554 = vrot.lane.b32.xlu0 %v5484, 32
      %v5555 = vpop.permute.xlu0 %5554
      %5556 = vrot.lane.b32.xlu0 %v5485, 32
      %v5557 = vpop.permute.xlu0 %5556
      %5558 = vrot.lane.b32.xlu0 %v5486, 32
      %v5559 = vpop.permute.xlu0 %5558
      %5560 = vrot.lane.b32.xlu0 %v5487, 32
      %v5561 = vpop.permute.xlu0 %5560
      %5562 = vrot.lane.b32.xlu0 %v5488, 32
      %v5563 = vpop.permute.xlu0 %5562
      %5564 = vrot.lane.b32.xlu0 %v5489, 32
      %v5565 = vpop.permute.xlu0 %5564
      %5566 = vrot.lane.b32.xlu0 %v5490, 32
      %v5567 = vpop.permute.xlu0 %5566
      %5568 = vrot.lane.b32.xlu0 %v5491, 32
      %v5569 = vpop.permute.xlu0 %5568
      %5570 = vrot.lane.b32.xlu0 %v5492, 32
      %v5571 = vpop.permute.xlu0 %5570
      %5572 = vrot.lane.b32.xlu0 %v5493, 32
      %v5573 = vpop.permute.xlu0 %5572
      %5574 = vrot.lane.b32.xlu0 %v5494, 32
      %v5575 = vpop.permute.xlu0 %5574
      %5576 = vrot.lane.b32.xlu0 %v5495, 32
      %v5577 = vpop.permute.xlu0 %5576
      %5578 = vrot.lane.b32.xlu0 %v5496, 32
      %v5579 = vpop.permute.xlu0 %5578
      %5580 = vrot.lane.b32.xlu0 %v5497, 32
      %v5581 = vpop.permute.xlu0 %5580
      %5582 = vrot.lane.b32.xlu0 %v5498, 32
      %v5583 = vpop.permute.xlu0 %5582
      %5584 = vrot.lane.b32.xlu0 %v5499, 32
      %v5585 = vpop.permute.xlu0 %5584
      %5586 = vrot.lane.b32.xlu0 %v5500, 32
      %v5587 = vpop.permute.xlu0 %5586
      %5588 = vrot.lane.b32.xlu0 %v5501, 32
      %v5589 = vpop.permute.xlu0 %5588
      %5590 = vrot.lane.b32.xlu0 %v5502, 32
      %v5591 = vpop.permute.xlu0 %5590
      %5592 = vrot.lane.b32.xlu0 %v5503, 32
      %v5593 = vpop.permute.xlu0 %5592
      %5594 = vrot.lane.b32.xlu0 %v5504, 32
      %v5595 = vpop.permute.xlu0 %5594
      %5596 = vrot.lane.b32.xlu0 %v5505, 32
      %v5597 = vpop.permute.xlu0 %5596
      %5598 = vrot.lane.b32.xlu0 %v5506, 32
      %v5599 = vpop.permute.xlu0 %5598
      %5600 = vrot.lane.b32.xlu0 %v5507, 32
      %v5601 = vpop.permute.xlu0 %5600
      %5602 = vrot.lane.b32.xlu0 %v5508, 32
      %v5603 = vpop.permute.xlu0 %5602
      %5604 = vrot.lane.b32.xlu0 %v5509, 32
      %v5605 = vpop.permute.xlu0 %5604
      %v5638 = vadd.f32 %v5318, %v5543
      %v5639 = vadd.f32 %v5319, %v5545
      %v5640 = vadd.f32 %v5320, %v5547
      %v5641 = vadd.f32 %v5321, %v5549
      %v5642 = vadd.f32 %v5322, %v5551
      %v5643 = vadd.f32 %v5323, %v5553
      %v5644 = vadd.f32 %v5324, %v5555
      %v5645 = vadd.f32 %v5325, %v5557
      %v5646 = vadd.f32 %v5326, %v5559
      %v5647 = vadd.f32 %v5327, %v5561
      %v5648 = vadd.f32 %v5328, %v5563
      %v5649 = vadd.f32 %v5329, %v5565
      %v5650 = vadd.f32 %v5330, %v5567
      %v5651 = vadd.f32 %v5331, %v5569
      %v5652 = vadd.f32 %v5332, %v5571
      %v5653 = vadd.f32 %v5333, %v5573
      %v5654 = vadd.f32 %v5334, %v5575
      %v5655 = vadd.f32 %v5335, %v5577
      %v5656 = vadd.f32 %v5336, %v5579
      %v5657 = vadd.f32 %v5337, %v5581
      %v5658 = vadd.f32 %v5338, %v5583
      %v5659 = vadd.f32 %v5339, %v5585
      %v5660 = vadd.f32 %v5340, %v5587
      %v5661 = vadd.f32 %v5341, %v5589
      %v5662 = vadd.f32 %v5342, %v5591
      %v5663 = vadd.f32 %v5343, %v5593
      %v5664 = vadd.f32 %v5344, %v5595
      %v5665 = vadd.f32 %v5345, %v5597
      %v5666 = vadd.f32 %v5346, %v5599
      %v5667 = vadd.f32 %v5347, %v5601
      %v5668 = vadd.f32 %v5348, %v5603
      %v5669 = vadd.f32 %v5349, %v5605
      %v5670 = vtanh.pop %v5638
      %v5671 = vtanh.pop %v5639
      %v5672 = vtanh.pop %v5640
      %v5673 = vtanh.pop %v5641
      %v5674 = vtanh.pop %v5642
      %v5675 = vtanh.pop %v5643
      %v5676 = vtanh.pop %v5644
      %v5677 = vtanh.pop %v5645
      %v5678 = vtanh.pop %v5646
      %v5679 = vtanh.pop %v5647
      %v5680 = vtanh.pop %v5648
      %v5681 = vtanh.pop %v5649
      %v5682 = vtanh.pop %v5650
      %v5683 = vtanh.pop %v5651
      %v5684 = vtanh.pop %v5652
      %v5685 = vtanh.pop %v5653
      %v5686 = vtanh.pop %v5654
      %v5687 = vtanh.pop %v5655
      %v5688 = vtanh.pop %v5656
      %v5689 = vtanh.pop %v5657
      %v5690 = vtanh.pop %v5658
      %v5691 = vtanh.pop %v5659
      %v5692 = vtanh.pop %v5660
      %v5693 = vtanh.pop %v5661
      %v5694 = vtanh.pop %v5662
      %v5695 = vtanh.pop %v5663
      %v5696 = vtanh.pop %v5664
      %v5697 = vtanh.pop %v5665
      %v5698 = vtanh.pop %v5666
      %v5699 = vtanh.pop %v5667
      %v5700 = vtanh.pop %v5668
      %v5701 = vtanh.pop %v5669
      %5734 = vrot.lane.b32.xlu0 %v5670, 64
      %v5735 = vpop.permute.xlu0 %5734
      %5736 = vrot.lane.b32.xlu0 %v5671, 64
      %v5737 = vpop.permute.xlu0 %5736
      %5738 = vrot.lane.b32.xlu0 %v5672, 64
      %v5739 = vpop.permute.xlu0 %5738
      %5740 = vrot.lane.b32.xlu0 %v5673, 64
      %v5741 = vpop.permute.xlu0 %5740
      %5742 = vrot.lane.b32.xlu0 %v5674, 64
      %v5743 = vpop.permute.xlu0 %5742
      %5744 = vrot.lane.b32.xlu0 %v5675, 64
      %v5745 = vpop.permute.xlu0 %5744
      %5746 = vrot.lane.b32.xlu0 %v5676, 64
      %v5747 = vpop.permute.xlu0 %5746
      %5748 = vrot.lane.b32.xlu0 %v5677, 64
      %v5749 = vpop.permute.xlu0 %5748
      %5750 = vrot.lane.b32.xlu0 %v5678, 64
      %v5751 = vpop.permute.xlu0 %5750
      %5752 = vrot.lane.b32.xlu0 %v5679, 64
      %v5753 = vpop.permute.xlu0 %5752
      %5754 = vrot.lane.b32.xlu0 %v5680, 64
      %v5755 = vpop.permute.xlu0 %5754
      %5756 = vrot.lane.b32.xlu0 %v5681, 64
      %v5757 = vpop.permute.xlu0 %5756
      %5758 = vrot.lane.b32.xlu0 %v5682, 64
      %v5759 = vpop.permute.xlu0 %5758
      %5760 = vrot.lane.b32.xlu0 %v5683, 64
      %v5761 = vpop.permute.xlu0 %5760
      %5762 = vrot.lane.b32.xlu0 %v5684, 64
      %v5763 = vpop.permute.xlu0 %5762
      %5764 = vrot.lane.b32.xlu0 %v5685, 64
      %v5765 = vpop.permute.xlu0 %5764
      %5766 = vrot.lane.b32.xlu0 %v5686, 64
      %v5767 = vpop.permute.xlu0 %5766
      %5768 = vrot.lane.b32.xlu0 %v5687, 64
      %v5769 = vpop.permute.xlu0 %5768
      %5770 = vrot.lane.b32.xlu0 %v5688, 64
      %v5771 = vpop.permute.xlu0 %5770
      %5772 = vrot.lane.b32.xlu0 %v5689, 64
      %v5773 = vpop.permute.xlu0 %5772
      %5774 = vrot.lane.b32.xlu0 %v5690, 64
      %v5775 = vpop.permute.xlu0 %5774
      %5776 = vrot.lane.b32.xlu0 %v5691, 64
      %v5777 = vpop.permute.xlu0 %5776
      %5778 = vrot.lane.b32.xlu0 %v5692, 64
      %v5779 = vpop.permute.xlu0 %5778
      %5780 = vrot.lane.b32.xlu0 %v5693, 64
      %v5781 = vpop.permute.xlu0 %5780
      %5782 = vrot.lane.b32.xlu0 %v5694, 64
      %v5783 = vpop.permute.xlu0 %5782
      %5784 = vrot.lane.b32.xlu0 %v5695, 64
      %v5785 = vpop.permute.xlu0 %5784
      %5786 = vrot.lane.b32.xlu0 %v5696, 64
      %v5787 = vpop.permute.xlu0 %5786
      %5788 = vrot.lane.b32.xlu0 %v5697, 64
      %v5789 = vpop.permute.xlu0 %5788
      %5790 = vrot.lane.b32.xlu0 %v5698, 64
      %v5791 = vpop.permute.xlu0 %5790
      %5792 = vrot.lane.b32.xlu0 %v5699, 64
      %v5793 = vpop.permute.xlu0 %5792
      %5794 = vrot.lane.b32.xlu0 %v5700, 64
      %v5795 = vpop.permute.xlu0 %5794
      %5796 = vrot.lane.b32.xlu0 %v5701, 64
      %v5797 = vpop.permute.xlu0 %5796
      %v5830 = vmul.f32 %v5095, %v5735
      %v5831 = vmul.f32 %v5097, %v5737
      %v5832 = vmul.f32 %v5099, %v5739
      %v5833 = vmul.f32 %v5101, %v5741
      %v5834 = vmul.f32 %v5103, %v5743
      %v5835 = vmul.f32 %v5105, %v5745
      %v5836 = vmul.f32 %v5107, %v5747
      %v5837 = vmul.f32 %v5109, %v5749
      %v5838 = vmul.f32 %v5111, %v5751
      %v5839 = vmul.f32 %v5113, %v5753
      %v5840 = vmul.f32 %v5115, %v5755
      %v5841 = vmul.f32 %v5117, %v5757
      %v5842 = vmul.f32 %v5119, %v5759
      %v5843 = vmul.f32 %v5121, %v5761
      %v5844 = vmul.f32 %v5123, %v5763
      %v5845 = vmul.f32 %v5125, %v5765
      %v5846 = vmul.f32 %v5127, %v5767
      %v5847 = vmul.f32 %v5129, %v5769
      %v5848 = vmul.f32 %v5131, %v5771
      %v5849 = vmul.f32 %v5133, %v5773
      %v5850 = vmul.f32 %v5135, %v5775
      %v5851 = vmul.f32 %v5137, %v5777
      %v5852 = vmul.f32 %v5139, %v5779
      %v5853 = vmul.f32 %v5141, %v5781
      %v5854 = vmul.f32 %v5143, %v5783
      %v5855 = vmul.f32 %v5145, %v5785
      %v5856 = vmul.f32 %v5147, %v5787
      %v5857 = vmul.f32 %v5149, %v5789
      %v5858 = vmul.f32 %v5151, %v5791
      %v5859 = vmul.f32 %v5153, %v5793
      %v5860 = vmul.f32 %v5155, %v5795
      %v5861 = vmul.f32 %v5157, %v5797
      %5894 = vrot.lane.b32.xlu0 %v5830, 32
      %v5895 = vpop.permute.xlu0 %5894
      %5896 = vrot.lane.b32.xlu0 %v5831, 32
      %v5897 = vpop.permute.xlu0 %5896
      %5898 = vrot.lane.b32.xlu0 %v5832, 32
      %v5899 = vpop.permute.xlu0 %5898
      %5900 = vrot.lane.b32.xlu0 %v5833, 32
      %v5901 = vpop.permute.xlu0 %5900
      %5902 = vrot.lane.b32.xlu0 %v5834, 32
      %v5903 = vpop.permute.xlu0 %5902
      %5904 = vrot.lane.b32.xlu0 %v5835, 32
      %v5905 = vpop.permute.xlu0 %5904
      %5906 = vrot.lane.b32.xlu0 %v5836, 32
      %v5907 = vpop.permute.xlu0 %5906
      %5908 = vrot.lane.b32.xlu0 %v5837, 32
      %v5909 = vpop.permute.xlu0 %5908
      %5910 = vrot.lane.b32.xlu0 %v5838, 32
      %v5911 = vpop.permute.xlu0 %5910
      %5912 = vrot.lane.b32.xlu0 %v5839, 32
      %v5913 = vpop.permute.xlu0 %5912
      %5914 = vrot.lane.b32.xlu0 %v5840, 32
      %v5915 = vpop.permute.xlu0 %5914
      %5916 = vrot.lane.b32.xlu0 %v5841, 32
      %v5917 = vpop.permute.xlu0 %5916
      %5918 = vrot.lane.b32.xlu0 %v5842, 32
      %v5919 = vpop.permute.xlu0 %5918
      %5920 = vrot.lane.b32.xlu0 %v5843, 32
      %v5921 = vpop.permute.xlu0 %5920
      %5922 = vrot.lane.b32.xlu0 %v5844, 32
      %v5923 = vpop.permute.xlu0 %5922
      %5924 = vrot.lane.b32.xlu0 %v5845, 32
      %v5925 = vpop.permute.xlu0 %5924
      %5926 = vrot.lane.b32.xlu0 %v5846, 32
      %v5927 = vpop.permute.xlu0 %5926
      %5928 = vrot.lane.b32.xlu0 %v5847, 32
      %v5929 = vpop.permute.xlu0 %5928
      %5930 = vrot.lane.b32.xlu0 %v5848, 32
      %v5931 = vpop.permute.xlu0 %5930
      %5932 = vrot.lane.b32.xlu0 %v5849, 32
      %v5933 = vpop.permute.xlu0 %5932
      %5934 = vrot.lane.b32.xlu0 %v5850, 32
      %v5935 = vpop.permute.xlu0 %5934
      %5936 = vrot.lane.b32.xlu0 %v5851, 32
      %v5937 = vpop.permute.xlu0 %5936
      %5938 = vrot.lane.b32.xlu0 %v5852, 32
      %v5939 = vpop.permute.xlu0 %5938
      %5940 = vrot.lane.b32.xlu0 %v5853, 32
      %v5941 = vpop.permute.xlu0 %5940
      %5942 = vrot.lane.b32.xlu0 %v5854, 32
      %v5943 = vpop.permute.xlu0 %5942
      %5944 = vrot.lane.b32.xlu0 %v5855, 32
      %v5945 = vpop.permute.xlu0 %5944
      %5946 = vrot.lane.b32.xlu0 %v5856, 32
      %v5947 = vpop.permute.xlu0 %5946
      %5948 = vrot.lane.b32.xlu0 %v5857, 32
      %v5949 = vpop.permute.xlu0 %5948
      %5950 = vrot.lane.b32.xlu0 %v5858, 32
      %v5951 = vpop.permute.xlu0 %5950
      %5952 = vrot.lane.b32.xlu0 %v5859, 32
      %v5953 = vpop.permute.xlu0 %5952
      %5954 = vrot.lane.b32.xlu0 %v5860, 32
      %v5955 = vpop.permute.xlu0 %5954
      %5956 = vrot.lane.b32.xlu0 %v5861, 32
      %v5957 = vpop.permute.xlu0 %5956
      %vm5990 = vcmask 261120
      %5991 = vst.msk [vmem:[%s227] sm:$0xff] %vm5990, %v5895
      %5992 = vst.msk [vmem:[%s227 + $0x8] sm:$0xff] %vm5990, %v5897
      %5993 = vst.msk [vmem:[%s227 + $0x10] sm:$0xff] %vm5990, %v5899
      %5994 = vst.msk [vmem:[%s227 + $0x18] sm:$0xff] %vm5990, %v5901
      %5995 = vst.msk [vmem:[%s227 + $0x20] sm:$0xff] %vm5990, %v5903
      %5996 = vst.msk [vmem:[%s227 + $0x28] sm:$0xff] %vm5990, %v5905
      %5997 = vst.msk [vmem:[%s227 + $0x30] sm:$0xff] %vm5990, %v5907
      %5998 = vst.msk [vmem:[%s227 + $0x38] sm:$0xff] %vm5990, %v5909
      %5999 = vst.msk [vmem:[%s227 + $0x40] sm:$0xff] %vm5990, %v5911
      %6000 = vst.msk [vmem:[%s227 + $0x48] sm:$0xff] %vm5990, %v5913
      %6001 = vst.msk [vmem:[%s227 + $0x50] sm:$0xff] %vm5990, %v5915
      %6002 = vst.msk [vmem:[%s227 + $0x58] sm:$0xff] %vm5990, %v5917
      %6003 = vst.msk [vmem:[%s227 + $0x60] sm:$0xff] %vm5990, %v5919
      %6004 = vst.msk [vmem:[%s227 + $0x68] sm:$0xff] %vm5990, %v5921
      %6005 = vst.msk [vmem:[%s227 + $0x70] sm:$0xff] %vm5990, %v5923
      %6006 = vst.msk [vmem:[%s227 + $0x78] sm:$0xff] %vm5990, %v5925
      %6007 = vst.msk [vmem:[%s227 + $0x80] sm:$0xff] %vm5990, %v5927
      %6008 = vst.msk [vmem:[%s227 + $0x88] sm:$0xff] %vm5990, %v5929
      %6009 = vst.msk [vmem:[%s227 + $0x90] sm:$0xff] %vm5990, %v5931
      %6010 = vst.msk [vmem:[%s227 + $0x98] sm:$0xff] %vm5990, %v5933
      %6011 = vst.msk [vmem:[%s227 + $0xa0] sm:$0xff] %vm5990, %v5935
      %6012 = vst.msk [vmem:[%s227 + $0xa8] sm:$0xff] %vm5990, %v5937
      %6013 = vst.msk [vmem:[%s227 + $0xb0] sm:$0xff] %vm5990, %v5939
      %6014 = vst.msk [vmem:[%s227 + $0xb8] sm:$0xff] %vm5990, %v5941
      %6015 = vst.msk [vmem:[%s227 + $0xc0] sm:$0xff] %vm5990, %v5943
      %6016 = vst.msk [vmem:[%s227 + $0xc8] sm:$0xff] %vm5990, %v5945
      %6017 = vst.msk [vmem:[%s227 + $0xd0] sm:$0xff] %vm5990, %v5947
      %6018 = vst.msk [vmem:[%s227 + $0xd8] sm:$0xff] %vm5990, %v5949
      %6019 = vst.msk [vmem:[%s227 + $0xe0] sm:$0xff] %vm5990, %v5951
      %6020 = vst.msk [vmem:[%s227 + $0xe8] sm:$0xff] %vm5990, %v5953
      %6021 = vst.msk [vmem:[%s227 + $0xf0] sm:$0xff] %vm5990, %v5955
      %6022 = vst.msk [vmem:[%s227 + $0xf8] sm:$0xff] %vm5990, %v5957
      %6055 = vrot.lane.b32.xlu0 %v5638, 96
      %v6056 = vpop.permute.xlu0 %6055
      %6057 = vrot.lane.b32.xlu0 %v5639, 96
      %v6058 = vpop.permute.xlu0 %6057
      %6059 = vrot.lane.b32.xlu0 %v5640, 96
      %v6060 = vpop.permute.xlu0 %6059
      %6061 = vrot.lane.b32.xlu0 %v5641, 96
      %v6062 = vpop.permute.xlu0 %6061
      %6063 = vrot.lane.b32.xlu0 %v5642, 96
      %v6064 = vpop.permute.xlu0 %6063
      %6065 = vrot.lane.b32.xlu0 %v5643, 96
      %v6066 = vpop.permute.xlu0 %6065
      %6067 = vrot.lane.b32.xlu0 %v5644, 96
      %v6068 = vpop.permute.xlu0 %6067
      %6069 = vrot.lane.b32.xlu0 %v5645, 96
      %v6070 = vpop.permute.xlu0 %6069
      %6071 = vrot.lane.b32.xlu0 %v5646, 96
      %v6072 = vpop.permute.xlu0 %6071
      %6073 = vrot.lane.b32.xlu0 %v5647, 96
      %v6074 = vpop.permute.xlu0 %6073
      %6075 = vrot.lane.b32.xlu0 %v5648, 96
      %v6076 = vpop.permute.xlu0 %6075
      %6077 = vrot.lane.b32.xlu0 %v5649, 96
      %v6078 = vpop.permute.xlu0 %6077
      %6079 = vrot.lane.b32.xlu0 %v5650, 96
      %v6080 = vpop.permute.xlu0 %6079
      %6081 = vrot.lane.b32.xlu0 %v5651, 96
      %v6082 = vpop.permute.xlu0 %6081
      %6083 = vrot.lane.b32.xlu0 %v5652, 96
      %v6084 = vpop.permute.xlu0 %6083
      %6085 = vrot.lane.b32.xlu0 %v5653, 96
      %v6086 = vpop.permute.xlu0 %6085
      %6087 = vrot.lane.b32.xlu0 %v5654, 96
      %v6088 = vpop.permute.xlu0 %6087
      %6089 = vrot.lane.b32.xlu0 %v5655, 96
      %v6090 = vpop.permute.xlu0 %6089
      %6091 = vrot.lane.b32.xlu0 %v5656, 96
      %v6092 = vpop.permute.xlu0 %6091
      %6093 = vrot.lane.b32.xlu0 %v5657, 96
      %v6094 = vpop.permute.xlu0 %6093
      %6095 = vrot.lane.b32.xlu0 %v5658, 96
      %v6096 = vpop.permute.xlu0 %6095
      %6097 = vrot.lane.b32.xlu0 %v5659, 96
      %v6098 = vpop.permute.xlu0 %6097
      %6099 = vrot.lane.b32.xlu0 %v5660, 96
      %v6100 = vpop.permute.xlu0 %6099
      %6101 = vrot.lane.b32.xlu0 %v5661, 96
      %v6102 = vpop.permute.xlu0 %6101
      %6103 = vrot.lane.b32.xlu0 %v5662, 96
      %v6104 = vpop.permute.xlu0 %6103
      %6105 = vrot.lane.b32.xlu0 %v5663, 96
      %v6106 = vpop.permute.xlu0 %6105
      %6107 = vrot.lane.b32.xlu0 %v5664, 96
      %v6108 = vpop.permute.xlu0 %6107
      %6109 = vrot.lane.b32.xlu0 %v5665, 96
      %v6110 = vpop.permute.xlu0 %6109
      %6111 = vrot.lane.b32.xlu0 %v5666, 96
      %v6112 = vpop.permute.xlu0 %6111
      %6113 = vrot.lane.b32.xlu0 %v5667, 96
      %v6114 = vpop.permute.xlu0 %6113
      %6115 = vrot.lane.b32.xlu0 %v5668, 96
      %v6116 = vpop.permute.xlu0 %6115
      %6117 = vrot.lane.b32.xlu0 %v5669, 96
      %v6118 = vpop.permute.xlu0 %6117
      %6151 = vst.msk [vmem:[%s233] sm:$0xff] %vm5990, %v6056
      %6152 = vst.msk [vmem:[%s233 + $0x8] sm:$0xff] %vm5990, %v6058
      %6153 = vst.msk [vmem:[%s233 + $0x10] sm:$0xff] %vm5990, %v6060
      %6154 = vst.msk [vmem:[%s233 + $0x18] sm:$0xff] %vm5990, %v6062
      %6155 = vst.msk [vmem:[%s233 + $0x20] sm:$0xff] %vm5990, %v6064
      %6156 = vst.msk [vmem:[%s233 + $0x28] sm:$0xff] %vm5990, %v6066
      %6157 = vst.msk [vmem:[%s233 + $0x30] sm:$0xff] %vm5990, %v6068
      %6158 = vst.msk [vmem:[%s233 + $0x38] sm:$0xff] %vm5990, %v6070
      %6159 = vst.msk [vmem:[%s233 + $0x40] sm:$0xff] %vm5990, %v6072
      %6160 = vst.msk [vmem:[%s233 + $0x48] sm:$0xff] %vm5990, %v6074
      %6161 = vst.msk [vmem:[%s233 + $0x50] sm:$0xff] %vm5990, %v6076
      %6162 = vst.msk [vmem:[%s233 + $0x58] sm:$0xff] %vm5990, %v6078
      %6163 = vst.msk [vmem:[%s233 + $0x60] sm:$0xff] %vm5990, %v6080
      %6164 = vst.msk [vmem:[%s233 + $0x68] sm:$0xff] %vm5990, %v6082
      %6165 = vst.msk [vmem:[%s233 + $0x70] sm:$0xff] %vm5990, %v6084
      %6166 = vst.msk [vmem:[%s233 + $0x78] sm:$0xff] %vm5990, %v6086
      %6167 = vst.msk [vmem:[%s233 + $0x80] sm:$0xff] %vm5990, %v6088
      %6168 = vst.msk [vmem:[%s233 + $0x88] sm:$0xff] %vm5990, %v6090
      %6169 = vst.msk [vmem:[%s233 + $0x90] sm:$0xff] %vm5990, %v6092
      %6170 = vst.msk [vmem:[%s233 + $0x98] sm:$0xff] %vm5990, %v6094
      %6171 = vst.msk [vmem:[%s233 + $0xa0] sm:$0xff] %vm5990, %v6096
      %6172 = vst.msk [vmem:[%s233 + $0xa8] sm:$0xff] %vm5990, %v6098
      %6173 = vst.msk [vmem:[%s233 + $0xb0] sm:$0xff] %vm5990, %v6100
      %6174 = vst.msk [vmem:[%s233 + $0xb8] sm:$0xff] %vm5990, %v6102
      %6175 = vst.msk [vmem:[%s233 + $0xc0] sm:$0xff] %vm5990, %v6104
      %6176 = vst.msk [vmem:[%s233 + $0xc8] sm:$0xff] %vm5990, %v6106
      %6177 = vst.msk [vmem:[%s233 + $0xd0] sm:$0xff] %vm5990, %v6108
      %6178 = vst.msk [vmem:[%s233 + $0xd8] sm:$0xff] %vm5990, %v6110
      %6179 = vst.msk [vmem:[%s233 + $0xe0] sm:$0xff] %vm5990, %v6112
      %6180 = vst.msk [vmem:[%s233 + $0xe8] sm:$0xff] %vm5990, %v6114
      %6181 = vst.msk [vmem:[%s233 + $0xf0] sm:$0xff] %vm5990, %v6116
      %6182 = vst.msk [vmem:[%s233 + $0xf8] sm:$0xff] %vm5990, %v6118
      %s6183 = smul.u32 32, %s16
      %p6184 = scmp.lt.s32.totalorder %s6183, 63
      %s6185 = scalar_select %p6184, %s6183, 63
      %s6186 = smul.addr %s6185, 8
      %s6187 = scalar_lea.vmem %s3, %s6186
      %s6188 = smul.u32 32, %s16
      %p6189 = scmp.lt.s32.totalorder %s6188, 63
      %s6190 = scalar_select %p6189, %s6188, 63
      %s6191 = smul.addr %s6190, 8
      %s6192 = scalar_lea.vmem %s4, %s6191
      // Predicated region
      $region33: #{tpu_custom_call.1} parent=31 // pred_check
        %p6193 = pneg %p107
      $region34: #{tpu_custom_call.1} parent=31 // pred_check_branch
        %6195 = sbr.rel (%p6193) target = $region36
      $region35: #{tpu_custom_call.1} parent=31 // pred_region
        %s6196 = smul.u32 32, %s16
      $region36: #{tpu_custom_call.1} parent=31 // pred_fallthru
        _
      // Predicated region
      $region37: #{tpu_custom_call.1} parent=31 // pred_check
        %p6197 = pneg %p133
      $region38: #{tpu_custom_call.1} parent=31 // pred_check_branch
        %6199 = sbr.rel (%p6197) target = $region40
      $region39: #{tpu_custom_call.1} parent=31 // pred_region
        %s6200 = smul.u32 32, %s16
      $region40: #{tpu_custom_call.1} parent=31 // pred_fallthru
        _
    $region32: #{tpu_custom_call.1} parent=5 // pred_fallthru
      _
    %p6201 = scmp.le.s32.totalorder 2, %s11
    // Predicated region
    $region41: #{tpu_custom_call.1} parent=5 // pred_check
      %p6202 = pneg %p6201
    $region42: #{tpu_custom_call.1} parent=5 // pred_check_branch
      %6204 = sbr.rel (%p6202) target = $region44
    $region43: #{tpu_custom_call.1} parent=5 // pred_region
      %s6205 = ssub.s32 %s11, 2
      // Predicated region
      $region45: #{tpu_custom_call.1} parent=43 // pred_check
        %p6206 = pneg %p113
      $region46: #{tpu_custom_call.1} parent=43 // pred_check_branch
        %6208 = sbr.rel (%p6206) target = $region48
      $region47: #{tpu_custom_call.1} parent=43 // pred_region
        %s6209 = smul.u32 32, %s17
        %p6210 = scmp.lt.s32.totalorder %s6209, 63
        %s6211 = scalar_select %p6210, %s6209, 63
        %s6212 = smul.addr %s6211, 8
        %s6213 = scalar_lea.vmem %s3, %s6212
      $region48: #{tpu_custom_call.1} parent=43 // pred_fallthru
        _
      // Predicated region
      $region49: #{tpu_custom_call.1} parent=43 // pred_check
        %p6214 = pneg %p139
      $region50: #{tpu_custom_call.1} parent=43 // pred_check_branch
        %6216 = sbr.rel (%p6214) target = $region52
      $region51: #{tpu_custom_call.1} parent=43 // pred_region
        %s6217 = smul.u32 32, %s17
        %p6218 = scmp.lt.s32.totalorder %s6217, 63
        %s6219 = scalar_select %p6218, %s6217, 63
        %s6220 = smul.addr %s6219, 8
        %s6221 = scalar_lea.vmem %s4, %s6220
      $region52: #{tpu_custom_call.1} parent=43 // pred_fallthru
        _
    $region44: #{tpu_custom_call.1} parent=5 // pred_fallthru
      _
  $region6: #{tpu_custom_call.1} parent=0 // loop_footer
    %s15 = sadd.s32 1, %s11
  $region7: #{tpu_custom_call.1} parent=0 // loop_footer_branch
    %10 = sbr.rel target = $region3
  $region8: #{tpu_custom_call.1} parent=0 // loop_exit
    _

</llo_original>
